<compile_context>
chip_gen: v5e
topology: v5e:2x2
jax: 0.10.0
libtpu: 0.0.40
codegen_flags: <defaults>
</compile_context>

<pallas_src>
import functools

import jax
import jax.numpy as jnp
from jax.experimental import pallas as pl
from jax.experimental.pallas import tpu as pltpu

_LANE = 128


def _round_up(x, m):
    return (x + m - 1) // m * m


def _choose_strip_rows(h_out, w_out, target_rows=256):
    """Strip height for the in-kernel row loop.

    Aims for ~target_rows output pixels per matmul (bounds the live f32 dot
    result) while keeping every strip's flat row offset (rows * w_out)
    8-aligned so accumulator / output slices start on a sublane boundary.
    """
    sh = max(1, min(h_out, target_rows // max(1, w_out)))
    if sh >= h_out:
        return h_out
    for cand in range(sh, h_out):
        if (cand * w_out) % 8 == 0:
            return cand
    return h_out


def _vmem_bytes(hp, wp, ct, cout_blk, h_out, w_out, sh, n_ct, k):
    """Per-grid-step VMEM estimate (double-buffered blocks + scratch)."""
    x_blk = hp * wp * ct * 2                       # bf16 input block
    w_blk = k * k * ct * cout_blk * 2              # bf16 weight block
    o_blk = h_out * w_out * cout_blk * 4           # f32 output block
    patch = sh * w_out * k * k * ct * 2            # bf16 im2col scratch
    acc = h_out * w_out * cout_blk * 4 if n_ct > 1 else 0
    return 2 * (x_blk + w_blk + o_blk) + patch + acc


def _aspp_kernel(x_ref, w_ref, scale_ref, shift_ref, o_ref, patch_ref, *acc,
                 H_out, W_out, K, dil, ct, sh, n_ct):
    """Grid = (batch n, cout block j, cin tile c)   [c = reduction, last].

    x_ref:     (1, Hp, Wp, ct)              padded input image, one cin tile (bf16)
    w_ref:     (1, K*K*ct, cout_blk)        im2col-ordered weights, one cin tile (bf16)
    scale_ref: (1, cout_blk)                folded BN scale (f32)
    shift_ref: (1, cout_blk)                folded BN shift (f32)
    o_ref:     (1, H_out*W_out, cout_blk)   flat lane-dense output slab
    patch_ref: (sh*W_out, K*K*ct)           im2col scratch (bf16)
    acc:       ((H_out*W_out, cout_blk),)   f32 accumulator, only when n_ct > 1
    """
    acc_ref = acc[0] if acc else None
    c = pl.program_id(2)
    last_c = n_ct - 1

    n_strips = (H_out + sh - 1) // sh
    for s in range(n_strips):                        # static in-kernel row loop
        row0 = s * sh
        sh_cur = min(sh, H_out - row0)
        m_cur = sh_cur * W_out
        rows = pl.ds(row0 * W_out, m_cur)            # flat, 8-aligned start

        # Build one im2col slab for this strip: columns grouped (kh, kw, cin).
        for kh in range(K):
            for kw in range(K):
                win = x_ref[0, pl.ds(row0 + kh * dil, sh_cur),
                            pl.ds(kw * dil, W_out), :]
                patch_ref[pl.ds(0, m_cur),
                          pl.ds((kh * K + kw) * ct, ct)] = win.reshape(m_cur, ct)

        # One MXU matmul per strip: the K*K*ct reduction accumulates in-MXU.
        part = jnp.dot(patch_ref[pl.ds(0, m_cur), :], w_ref[0],
                       preferred_element_type=jnp.float32)

        def _bn_relu_store(total, rows=rows):
            y = jnp.maximum(total * scale_ref[...] + shift_ref[...], 0.0)
            o_ref[0, rows, :] = y.astype(o_ref.dtype)

        if n_ct == 1:
            _bn_relu_store(part)
        else:
            @pl.when(c == 0)
            def _(part=part, rows=rows):             # first cin tile: plain store
                acc_ref[rows, :] = part

            @pl.when(jnp.logical_and(c > 0, c < last_c))
            def _(part=part, rows=rows):             # middle cin tiles: accumulate
                acc_ref[rows, :] = acc_ref[rows, :] + part

            @pl.when(c == last_c)
            def _(part=part, rows=rows, store=_bn_relu_store):
                store(acc_ref[rows, :] + part)       # last tile: fused epilogue


def aspp_module_forward(x_nchw, weight_oihw, gamma, beta, running_mean,
                        running_var, *, padding, dilation, eps=1e-5,
                        cin_tile=None, cout_blocks=None):
    """Pallas implementation of _ASPPModule.forward (inference-mode BN).

    x_nchw:      (N, Cin, H, W)    float32
    weight_oihw: (Cout, Cin, K, K) conv weight (PyTorch layout, no bias)
    Returns (N, Cout, H_out, W_out) float32.
    """
    N, cin, H, W = x_nchw.shape
    cout, cin_w, K, K2 = weight_oihw.shape
    assert cin == cin_w and K == K2

    # Output spatial size for a stride-1 dilated conv.
    H_out = H + 2 * padding - dilation * (K - 1)
    W_out = W + 2 * padding - dilation * (K - 1)
    assert H_out > 0 and W_out > 0

    cin_p = _round_up(cin, _LANE)
    cout_p = _round_up(cout, _LANE)
    Hp, Wp = H + 2 * padding, W + 2 * padding

    # Optional cout split: keeps a 2-wide "parallel" axis for v7x's two
    # TensorCores when batch == 1 (costs one extra read of the input).
    if cout_blocks is None:
        cout_blocks = 2 if (N == 1 and cout_p % (2 * _LANE) == 0) else 1
    assert cout_p % cout_blocks == 0
    cout_blk = cout_p // cout_blocks

    sh = _choose_strip_rows(H_out, W_out)

    # Per-generation VMEM budget (v7x: 64 MiB physical; v5e/v6e: 128 MiB).
    try:
        cap = int(getattr(pltpu.get_tpu_info(), "vmem_capacity_bytes",
                          64 * 1024 * 1024))
    except Exception:  # conservative (v7x-safe) fallback
        cap = 64 * 1024 * 1024
    budget = int(cap * 0.8)

    # cin tile: biggest multiple of 128 dividing cin_p that fits the budget,
    # capped at 512 (enough to feed the 256-wide MXUs on v6e/v7x).
    ct_cap = min(cin_p, _round_up(cin_tile, _LANE) if cin_tile else 512)
    cands = [c for c in range(ct_cap, 0, -_LANE) if cin_p % c == 0]
    ct = cands[-1]
    for c in cands:
        if _vmem_bytes(Hp, Wp, c, cout_blk, H_out, W_out, sh,
                       cin_p // c, K) <= budget:
            ct = c
            break
    n_ct = cin_p // ct

    est = _vmem_bytes(Hp, Wp, ct, cout_blk, H_out, W_out, sh, n_ct, K)
    vmem_limit = max(32 * 1024 * 1024, min(int(cap * 0.85), 2 * est))

    # ---- layout glue (one pass: cast + transpose + pad fuse under XLA) ----
    x_nhwc = jnp.transpose(x_nchw, (0, 2, 3, 1)).astype(jnp.bfloat16)
    x_pad = jnp.pad(
        x_nhwc,
        ((0, 0), (padding, padding), (padding, padding), (0, cin_p - cin)))

    # Weights: OIHW -> HWIO, pad channels, reorder to (n_ct, K*K*ct, cout_p)
    # so rows match the in-kernel im2col column order (kh, kw, cin-in-tile).
    w_hwio = jnp.transpose(weight_oihw, (2, 3, 1, 0))
    w_pad = jnp.pad(
        w_hwio, ((0, 0), (0, 0), (0, cin_p - cin), (0, cout_p - cout))
    ).astype(jnp.bfloat16)
    w_r = w_pad.reshape(K, K, n_ct, ct, cout_p)
    w_r = jnp.transpose(w_r, (2, 0, 1, 3, 4)).reshape(n_ct, K * K * ct, cout_p)

    # Fold BatchNorm (inference form) into per-channel scale/shift (f32).
    inv_std = 1.0 / jnp.sqrt(running_var + eps)
    scale = jnp.pad(gamma * inv_std, (0, cout_p - cout))
    shift = jnp.pad(beta - running_mean * gamma * inv_std, (0, cout_p - cout))
    scale = scale.reshape(1, cout_p).astype(jnp.float32)
    shift = shift.reshape(1, cout_p).astype(jnp.float32)

    flops = 2 * N * H_out * W_out * K * K * cin_p * cout_p
    bytes_accessed = (x_pad.size * 2 * cout_blocks + w_r.size * 2 * N
                      + N * H_out * W_out * cout_p * 4)
    cost = pl.CostEstimate(flops=int(flops), transcendentals=0,
                           bytes_accessed=int(bytes_accessed))

    kernel = functools.partial(_aspp_kernel, H_out=H_out, W_out=W_out, K=K,
                               dil=dilation, ct=ct, sh=sh, n_ct=n_ct)

    scratch = [pltpu.VMEM((sh * W_out, K * K * ct), jnp.bfloat16)]
    if n_ct > 1:
        scratch.append(pltpu.VMEM((H_out * W_out, cout_blk), jnp.float32))

    out_flat = pl.pallas_call(
        kernel,
        out_shape=jax.ShapeDtypeStruct((N, H_out * W_out, cout_p),
                                       x_nchw.dtype),
        grid_spec=pltpu.PrefetchScalarGridSpec(
            num_scalar_prefetch=0,
            grid=(N, cout_blocks, n_ct),
            in_specs=[
                # Full padded image per batch element, one cin tile.
                pl.BlockSpec((1, Hp, Wp, ct), lambda n, j, c: (n, 0, 0, c)),
                # im2col-ordered weight tile.
                pl.BlockSpec((1, K * K * ct, cout_blk),
                             lambda n, j, c: (c, 0, j)),
                pl.BlockSpec((1, cout_blk), lambda n, j, c: (0, j)),
                pl.BlockSpec((1, cout_blk), lambda n, j, c: (0, j)),
            ],
            out_specs=pl.BlockSpec((1, H_out * W_out, cout_blk),
                                   lambda n, j, c: (n, 0, j)),
            scratch_shapes=scratch,
        ),
        compiler_params=pltpu.CompilerParams(
            dimension_semantics=("parallel", "parallel", "arbitrary"),
            vmem_limit_bytes=vmem_limit,
        ),
        cost_estimate=cost,
    )(x_pad, w_r, scale, shift)

    # Drop channel padding, back to NCHW.  (Production would keep the padded
    # NHWC bf16 slab for the downstream ASPP concat.)
    out = out_flat.reshape(N, H_out, W_out, cout_p)[..., :cout]
    return jnp.transpose(out, (0, 3, 1, 2))


def _reference(x_nchw, weight_oihw, gamma, beta, running_mean, running_var, *,
               padding, dilation, eps=1e-5):
    """Pure-JAX f32 reference (lax conv) for correctness checking."""
    y = jax.lax.conv_general_dilated(
        x_nchw, weight_oihw,
        window_strides=(1, 1),
        padding=((padding, padding), (padding, padding)),
        rhs_dilation=(dilation, dilation),
        dimension_numbers=("NCHW", "OIHW", "NCHW"))
    scale = (gamma / jnp.sqrt(running_var + eps)).reshape(1, -1, 1, 1)
    shift = (beta - running_mean * gamma /
             jnp.sqrt(running_var + eps)).reshape(1, -1, 1, 1)
    return jnp.maximum(y * scale + shift, 0.0)


if __name__ == "__main__":
    def run_case(name, N, inplanes, planes, H, W, dilation, cin_tile=None):
        padding = dilation                       # typical ASPP branch
        kernel_size = 3
        key = jax.random.PRNGKey(0)
        kx, kw = jax.random.split(key)

        x = jax.random.normal(kx, (N, inplanes, H, W), dtype=jnp.float32)
        # kaiming_normal_ (fan_in, relu gain) -> std = sqrt(2/fan_in)
        fan_in = inplanes * kernel_size * kernel_size
        weight = jax.random.normal(
            kw, (planes, inplanes, kernel_size, kernel_size),
            dtype=jnp.float32) * jnp.sqrt(2.0 / fan_in)

        # BN per _init_weight: gamma=1, beta=0; running stats at defaults.
        gamma = jnp.ones((planes,), jnp.float32)
        beta = jnp.zeros((planes,), jnp.float32)
        running_mean = jnp.zeros((planes,), jnp.float32)
        running_var = jnp.ones((planes,), jnp.float32)

        fwd = jax.jit(functools.partial(
            aspp_module_forward, padding=padding, dilation=dilation,
            cin_tile=cin_tile))
        out = jax.block_until_ready(
            fwd(x, weight, gamma, beta, running_mean, running_var))

        ref = _reference(x, weight, gamma, beta, running_mean, running_var,
                         padding=padding, dilation=dilation)
        assert out.shape == ref.shape, (name, out.shape, ref.shape)
        # bf16 matmul operands (f32 accumulation) -> loosened tolerance.
        assert jnp.allclose(out, ref, atol=5e-2, rtol=5e-2), \
            f"{name}: mismatch vs reference"

    # Base toy config (3x3 atrous conv, pad = dilation, inference-mode BN).
    run_case("base", N=2, inplanes=4, planes=8, H=16, W=16, dilation=2)
    # Exercise the multi-cin-tile accumulator path and the multi-strip /
    # non-multiple-of-8 W_out path (cin_p = 384 forced into 128-wide tiles).
    run_case("tiled", N=1, inplanes=300, planes=8, H=40, W=13, dilation=2,
             cin_tile=128)

    print("KERNEL_OK")
</pallas_src>

<mosaic_0001>
module attributes {stable_mosaic.version = 11 : i64} {
  func.func @_aspp_kernel(%arg0: i32, %arg1: i32, %arg2: i32, %arg3: memref<1x20x20x128xbf16, #tpu.memory_space<vmem>>, %arg4: memref<1x1152x128xbf16, #tpu.memory_space<vmem>>, %arg5: memref<1x128xf32, #tpu.memory_space<vmem>>, %arg6: memref<1x128xf32, #tpu.memory_space<vmem>>, %arg7: memref<1x256x128xf32, #tpu.memory_space<vmem>>, %arg8: memref<256x1152xbf16, #tpu.memory_space<vmem>>) attributes {dimension_semantics = [#tpu.dimension_semantics<parallel>, #tpu.dimension_semantics<parallel>, #tpu.dimension_semantics<arbitrary>], iteration_bounds = array<i64: 2, 1, 1>, scalar_prefetch = 0 : i64, scratch_operands = 1 : i64, tpu.core_type = #tpu.core_type<tc>, window_params = [{transform_indices = @transform_0, window_bounds = array<i64: 1, 20, 20, 128>}, {transform_indices = @transform_1, window_bounds = array<i64: 1, 1152, 128>}, {transform_indices = @transform_2, window_bounds = array<i64: 1, 128>}, {transform_indices = @transform_3, window_bounds = array<i64: 1, 128>}, {transform_indices = @transform_4, window_bounds = array<i64: 1, 256, 128>}]} {
    %c0 = arith.constant 0 : index
    %c0_0 = arith.constant 0 : index
    %c0_1 = arith.constant 0 : index
    %c0_2 = arith.constant 0 : index
    %0 = vector.load %arg3[%c0, %c0_0, %c0_1, %c0_2] : memref<1x20x20x128xbf16, #tpu.memory_space<vmem>>, vector<1x16x16x128xbf16>
    %1 = vector.shape_cast %0 : vector<1x16x16x128xbf16> to vector<16x16x128xbf16>
    %2 = vector.shape_cast %1 : vector<16x16x128xbf16> to vector<256x128xbf16>
    %c0_3 = arith.constant 0 : index
    %c0_4 = arith.constant 0 : index
    %3 = vector.load %arg8[%c0_3, %c0_4] : memref<256x1152xbf16, #tpu.memory_space<vmem>>, vector<256x128xbf16>
    tpu.vector_store %arg8[%c0_3, %c0_4], %2 {strides = array<i32>} : memref<256x1152xbf16, #tpu.memory_space<vmem>>, vector<256x128xbf16>,
    %c0_5 = arith.constant 0 : index
    %c0_6 = arith.constant 0 : index
    %c2 = arith.constant 2 : index
    %c0_7 = arith.constant 0 : index
    %4 = vector.load %arg3[%c0_5, %c0_6, %c2, %c0_7] : memref<1x20x20x128xbf16, #tpu.memory_space<vmem>>, vector<1x16x16x128xbf16>
    %5 = vector.shape_cast %4 : vector<1x16x16x128xbf16> to vector<16x16x128xbf16>
    %6 = vector.shape_cast %5 : vector<16x16x128xbf16> to vector<256x128xbf16>
    %c0_8 = arith.constant 0 : index
    %c128 = arith.constant 128 : index
    %7 = vector.load %arg8[%c0_8, %c128] : memref<256x1152xbf16, #tpu.memory_space<vmem>>, vector<256x128xbf16>
    tpu.vector_store %arg8[%c0_8, %c128], %6 {strides = array<i32>} : memref<256x1152xbf16, #tpu.memory_space<vmem>>, vector<256x128xbf16>,
    %c0_9 = arith.constant 0 : index
    %c0_10 = arith.constant 0 : index
    %c4 = arith.constant 4 : index
    %c0_11 = arith.constant 0 : index
    %8 = vector.load %arg3[%c0_9, %c0_10, %c4, %c0_11] : memref<1x20x20x128xbf16, #tpu.memory_space<vmem>>, vector<1x16x16x128xbf16>
    %9 = vector.shape_cast %8 : vector<1x16x16x128xbf16> to vector<16x16x128xbf16>
    %10 = vector.shape_cast %9 : vector<16x16x128xbf16> to vector<256x128xbf16>
    %c0_12 = arith.constant 0 : index
    %c256 = arith.constant 256 : index
    %11 = vector.load %arg8[%c0_12, %c256] : memref<256x1152xbf16, #tpu.memory_space<vmem>>, vector<256x128xbf16>
    tpu.vector_store %arg8[%c0_12, %c256], %10 {strides = array<i32>} : memref<256x1152xbf16, #tpu.memory_space<vmem>>, vector<256x128xbf16>,
    %c0_13 = arith.constant 0 : index
    %c2_14 = arith.constant 2 : index
    %c0_15 = arith.constant 0 : index
    %c0_16 = arith.constant 0 : index
    %12 = vector.load %arg3[%c0_13, %c2_14, %c0_15, %c0_16] : memref<1x20x20x128xbf16, #tpu.memory_space<vmem>>, vector<1x16x16x128xbf16>
    %13 = vector.shape_cast %12 : vector<1x16x16x128xbf16> to vector<16x16x128xbf16>
    %14 = vector.shape_cast %13 : vector<16x16x128xbf16> to vector<256x128xbf16>
    %c0_17 = arith.constant 0 : index
    %c384 = arith.constant 384 : index
    %15 = vector.load %arg8[%c0_17, %c384] : memref<256x1152xbf16, #tpu.memory_space<vmem>>, vector<256x128xbf16>
    tpu.vector_store %arg8[%c0_17, %c384], %14 {strides = array<i32>} : memref<256x1152xbf16, #tpu.memory_space<vmem>>, vector<256x128xbf16>,
    %c0_18 = arith.constant 0 : index
    %c2_19 = arith.constant 2 : index
    %c2_20 = arith.constant 2 : index
    %c0_21 = arith.constant 0 : index
    %16 = vector.load %arg3[%c0_18, %c2_19, %c2_20, %c0_21] : memref<1x20x20x128xbf16, #tpu.memory_space<vmem>>, vector<1x16x16x128xbf16>
    %17 = vector.shape_cast %16 : vector<1x16x16x128xbf16> to vector<16x16x128xbf16>
    %18 = vector.shape_cast %17 : vector<16x16x128xbf16> to vector<256x128xbf16>
    %c0_22 = arith.constant 0 : index
    %c512 = arith.constant 512 : index
    %19 = vector.load %arg8[%c0_22, %c512] : memref<256x1152xbf16, #tpu.memory_space<vmem>>, vector<256x128xbf16>
    tpu.vector_store %arg8[%c0_22, %c512], %18 {strides = array<i32>} : memref<256x1152xbf16, #tpu.memory_space<vmem>>, vector<256x128xbf16>,
    %c0_23 = arith.constant 0 : index
    %c2_24 = arith.constant 2 : index
    %c4_25 = arith.constant 4 : index
    %c0_26 = arith.constant 0 : index
    %20 = vector.load %arg3[%c0_23, %c2_24, %c4_25, %c0_26] : memref<1x20x20x128xbf16, #tpu.memory_space<vmem>>, vector<1x16x16x128xbf16>
    %21 = vector.shape_cast %20 : vector<1x16x16x128xbf16> to vector<16x16x128xbf16>
    %22 = vector.shape_cast %21 : vector<16x16x128xbf16> to vector<256x128xbf16>
    %c0_27 = arith.constant 0 : index
    %c640 = arith.constant 640 : index
    %23 = vector.load %arg8[%c0_27, %c640] : memref<256x1152xbf16, #tpu.memory_space<vmem>>, vector<256x128xbf16>
    tpu.vector_store %arg8[%c0_27, %c640], %22 {strides = array<i32>} : memref<256x1152xbf16, #tpu.memory_space<vmem>>, vector<256x128xbf16>,
    %c0_28 = arith.constant 0 : index
    %c4_29 = arith.constant 4 : index
    %c0_30 = arith.constant 0 : index
    %c0_31 = arith.constant 0 : index
    %24 = vector.load %arg3[%c0_28, %c4_29, %c0_30, %c0_31] : memref<1x20x20x128xbf16, #tpu.memory_space<vmem>>, vector<1x16x16x128xbf16>
    %25 = vector.shape_cast %24 : vector<1x16x16x128xbf16> to vector<16x16x128xbf16>
    %26 = vector.shape_cast %25 : vector<16x16x128xbf16> to vector<256x128xbf16>
    %c0_32 = arith.constant 0 : index
    %c768 = arith.constant 768 : index
    %27 = vector.load %arg8[%c0_32, %c768] : memref<256x1152xbf16, #tpu.memory_space<vmem>>, vector<256x128xbf16>
    tpu.vector_store %arg8[%c0_32, %c768], %26 {strides = array<i32>} : memref<256x1152xbf16, #tpu.memory_space<vmem>>, vector<256x128xbf16>,
    %c0_33 = arith.constant 0 : index
    %c4_34 = arith.constant 4 : index
    %c2_35 = arith.constant 2 : index
    %c0_36 = arith.constant 0 : index
    %28 = vector.load %arg3[%c0_33, %c4_34, %c2_35, %c0_36] : memref<1x20x20x128xbf16, #tpu.memory_space<vmem>>, vector<1x16x16x128xbf16>
    %29 = vector.shape_cast %28 : vector<1x16x16x128xbf16> to vector<16x16x128xbf16>
    %30 = vector.shape_cast %29 : vector<16x16x128xbf16> to vector<256x128xbf16>
    %c0_37 = arith.constant 0 : index
    %c896 = arith.constant 896 : index
    %31 = vector.load %arg8[%c0_37, %c896] : memref<256x1152xbf16, #tpu.memory_space<vmem>>, vector<256x128xbf16>
    tpu.vector_store %arg8[%c0_37, %c896], %30 {strides = array<i32>} : memref<256x1152xbf16, #tpu.memory_space<vmem>>, vector<256x128xbf16>,
    %c0_38 = arith.constant 0 : index
    %c4_39 = arith.constant 4 : index
    %c4_40 = arith.constant 4 : index
    %c0_41 = arith.constant 0 : index
    %32 = vector.load %arg3[%c0_38, %c4_39, %c4_40, %c0_41] : memref<1x20x20x128xbf16, #tpu.memory_space<vmem>>, vector<1x16x16x128xbf16>
    %33 = vector.shape_cast %32 : vector<1x16x16x128xbf16> to vector<16x16x128xbf16>
    %34 = vector.shape_cast %33 : vector<16x16x128xbf16> to vector<256x128xbf16>
    %c0_42 = arith.constant 0 : index
    %c1024 = arith.constant 1024 : index
    %35 = vector.load %arg8[%c0_42, %c1024] : memref<256x1152xbf16, #tpu.memory_space<vmem>>, vector<256x128xbf16>
    tpu.vector_store %arg8[%c0_42, %c1024], %34 {strides = array<i32>} : memref<256x1152xbf16, #tpu.memory_space<vmem>>, vector<256x128xbf16>,
    %c0_43 = arith.constant 0 : index
    %c0_44 = arith.constant 0 : index
    %36 = vector.load %arg8[%c0_43, %c0_44] : memref<256x1152xbf16, #tpu.memory_space<vmem>>, vector<256x1152xbf16>
    %c0_45 = arith.constant 0 : index
    %c0_46 = arith.constant 0 : index
    %c0_47 = arith.constant 0 : index
    %37 = vector.load %arg4[%c0_45, %c0_46, %c0_47] : memref<1x1152x128xbf16, #tpu.memory_space<vmem>>, vector<1x1152x128xbf16>
    %38 = vector.shape_cast %37 : vector<1x1152x128xbf16> to vector<1152x128xbf16>
    %cst = arith.constant dense<0.000000e+00> : vector<256x128xf32>
    %39 = tpu.matmul %36, %38, %cst {dimension_numbers = #tpu.dot_dimension_numbers<[1], [0], [0], [1], [0, 0, 1, 1], [], []>} : vector<256x1152xbf16>, vector<1152x128xbf16>, vector<256x128xf32> -> vector<256x128xf32>
    %c0_48 = arith.constant 0 : index
    %c0_49 = arith.constant 0 : index
    %40 = vector.load %arg5[%c0_48, %c0_49] : memref<1x128xf32, #tpu.memory_space<vmem>>, vector<1x128xf32>
    %41 = vector.broadcast %40 : vector<1x128xf32> to vector<256x128xf32>
    %42 = arith.mulf %39, %41 : vector<256x128xf32>
    %c0_50 = arith.constant 0 : index
    %c0_51 = arith.constant 0 : index
    %43 = vector.load %arg6[%c0_50, %c0_51] : memref<1x128xf32, #tpu.memory_space<vmem>>, vector<1x128xf32>
    %44 = vector.broadcast %43 : vector<1x128xf32> to vector<256x128xf32>
    %45 = arith.addf %42, %44 : vector<256x128xf32>
    %cst_52 = arith.constant 0.000000e+00 : f32
    %46 = vector.broadcast %cst_52 : f32 to vector<256x128xf32>
    %47 = arith.maximumf %45, %46 : vector<256x128xf32>
    %c0_53 = arith.constant 0 : index
    %c0_54 = arith.constant 0 : index
    %c0_55 = arith.constant 0 : index
    %48 = vector.load %arg7[%c0_53, %c0_54, %c0_55] : memref<1x256x128xf32, #tpu.memory_space<vmem>>, vector<1x256x128xf32>
    %49 = vector.shape_cast %48 : vector<1x256x128xf32> to vector<256x128xf32>
    %50 = vector.shape_cast %47 : vector<256x128xf32> to vector<1x256x128xf32>
    tpu.vector_store %arg7[%c0_53, %c0_54, %c0_55], %50 {strides = array<i32>} : memref<1x256x128xf32, #tpu.memory_space<vmem>>, vector<1x256x128xf32>,
    return
  }
  func.func @transform_0(%arg0: i32, %arg1: i32, %arg2: i32) -> (i32, i32, i32, i32) {
    %c0_i32 = arith.constant 0 : i32
    %c0_i32_0 = arith.constant 0 : i32
    %c0_i32_1 = arith.constant 0 : i32
    return %arg0, %c0_i32, %c0_i32_0, %arg2 : i32, i32, i32, i32
  }
  func.func @transform_1(%arg0: i32, %arg1: i32, %arg2: i32) -> (i32, i32, i32) {
    %c0_i32 = arith.constant 0 : i32
    %c0_i32_0 = arith.constant 0 : i32
    return %arg2, %c0_i32, %arg1 : i32, i32, i32
  }
  func.func @transform_2(%arg0: i32, %arg1: i32, %arg2: i32) -> (i32, i32) {
    %c0_i32 = arith.constant 0 : i32
    %c0_i32_0 = arith.constant 0 : i32
    return %c0_i32, %arg1 : i32, i32
  }
  func.func @transform_3(%arg0: i32, %arg1: i32, %arg2: i32) -> (i32, i32) {
    %c0_i32 = arith.constant 0 : i32
    %c0_i32_0 = arith.constant 0 : i32
    return %c0_i32, %arg1 : i32, i32
  }
  func.func @transform_4(%arg0: i32, %arg1: i32, %arg2: i32) -> (i32, i32, i32) {
    %c0_i32 = arith.constant 0 : i32
    %c0_i32_0 = arith.constant 0 : i32
    return %arg0, %c0_i32, %arg1 : i32, i32, i32
  }
}

</mosaic_0001>

<llo_original>
// kernel: aspp_module_forward.1
$region0: #{aspp_module_forward.1}
  #allocation0 [shape = 'u32[]', space=smem, size = 0x4, offset = 0x4, fixed_abs, tag = 'smem constant byte address 0x4 - core index']
  #allocation1 [shape = 'u32[72,128]{1,0:T(1,128)}', space=vmem, size = 0x9000, scoped, tag = 'internal scratch']
  #allocation2 [shape = 'bf16[256,1152]{1,0:T(8,128)(2,1)}', space=vmem, size = 0x90000, scoped, tag = 'scratch operand']
  %s0 = inlined_call_operand.vmem [shape: bf16[2,20,20,128], index: 0, kind: input, shape index: {}]
  %s1 = inlined_call_operand.vmem [shape: bf16[1,1152,128], index: 1, kind: input, shape index: {}]
  %s2 = inlined_call_operand.vmem [shape: f32[1,128], index: 2, kind: input, shape index: {}]
  %s3 = inlined_call_operand.vmem [shape: f32[1,128], index: 3, kind: input, shape index: {}]
  %s4 = inlined_call_operand.vmem [shape: f32[2,256,128], index: 4, kind: output, shape index: {}]
  %s5 = sld [smem:[#allocation0]]
  $region49: #{aspp_module_forward.1} parent=0
    _
  %s7 = ssub.s32 1, %s5
  %s8 = scalar_select 0, %s7, %s5
  loop: start=0, step=1, limit=4
  $region2: #{aspp_module_forward.1} parent=0 // loop_pre_header
    _
  $region3: #{aspp_module_forward.1} parent=0 // loop_header
    %s10 = sphi 0, %s14
    %p11 = scmp.ge.s32.totalorder %s10, 4
    %s17 = sphi 0, %s36
    %s18 = sphi 0, %s32
    %s19 = sphi 0, %s28
    %s20 = sphi 0, %s17
    %s21 = sphi 0, %s18
    %s22 = sphi 0, %s19
    %s23 = sphi 0, %s20
    %s24 = sphi 0, %s21
    %s25 = sphi 0, %s22
    %s41 = sphi 0, %s43
    %s44 = sphi 0, %s41
    %s45 = sphi 0, %s44
    %s61 = sphi 0, %s45
    %s69 = sphi 0, %s71
    %s72 = sphi 0, %s69
    %s73 = sphi 0, %s72
    %s89 = sphi 0, %s73
    %s95 = sphi 0, %s97
    %s98 = sphi 0, %s95
    %s99 = sphi 0, %s98
    %s115 = sphi 0, %s99
    %s121 = sphi 0, %s123
    %s124 = sphi 0, %s121
    %s125 = sphi 0, %s124
    %s141 = sphi 0, %s125
    %s149 = sphi 0, %s151
    %s152 = sphi 0, %s149
    %s153 = sphi 0, %s152
    %s169 = sphi 0, %s153
  $region4: #{aspp_module_forward.1} parent=0 // loop_header_branch
    %13 = sbr.rel (%p11) target = $region8
  $region5: #{aspp_module_forward.1} parent=0 // loop_body
    %s15 = ssub.s32 %s10, 1
    %s16 = ssub.s32 %s10, 2
    %s26 = sadd.s32 1, %s19
    %p27 = scmp.ge.s32.totalorder %s26, 1
    %s28 = scalar_select %p27, 0, %s26
    %s29 = sadd.s32 1, %s18
    %s30 = scalar_select %p27, %s29, %s18
    %p31 = scmp.ge.s32.totalorder %s30, 1
    %s32 = scalar_select %p31, 0, %s30
    %s33 = sadd.s32 1, %s17
    %s34 = scalar_select %p31, %s33, %s17
    %p35 = scmp.ge.s32.totalorder %s34, 2
    %s36 = scalar_select %p35, 0, %s34
    %s37 = ssub.s32 %s17, %s36
    %s38 = ssub.s32 %s19, %s28
    %s39 = sor.u32 %s37, %s38
    %p40 = scmp.eq.s32.totalorder %s39, 0
    %s42 = sadd.s32 %s41, 1
    %s43 = scalar_select %p40, %s41, %s42
    %p46 = pneg %p40
    %p47 = scmp.eq.s32.totalorder %s10, 1
    %p48 = por %p46, %p47
    %p49 = scmp.ne.s32.totalorder %s41, %s44
    %p50 = scmp.eq.s32.totalorder %s10, 0
    %p51 = por %p49, %p50
    %p52 = scmp.ne.s32.totalorder %s41, %s44
    %p53 = scmp.eq.s32.totalorder %s15, 1
    %p54 = por %p52, %p53
    %p55 = scmp.ne.s32.totalorder %s44, %s45
    %p56 = scmp.eq.s32.totalorder %s15, 0
    %p57 = por %p55, %p56
    %p58 = scmp.ne.s32.totalorder %s44, %s45
    %p59 = scmp.eq.s32.totalorder %s16, 1
    %p60 = por %p58, %p59
    %p62 = scmp.ne.s32.totalorder %s45, %s61
    %p63 = scmp.eq.s32.totalorder %s16, 0
    %p64 = por %p62, %p63
    %s65 = ssub.s32 %s19, %s28
    %s66 = ssub.s32 %s18, %s32
    %s67 = sor.u32 %s65, %s66
    %p68 = scmp.eq.s32.totalorder %s67, 0
    %s70 = sadd.s32 %s69, 1
    %s71 = scalar_select %p68, %s69, %s70
    %p74 = pneg %p68
    %p75 = scmp.eq.s32.totalorder %s10, 1
    %p76 = por %p74, %p75
    %p77 = scmp.ne.s32.totalorder %s69, %s72
    %p78 = scmp.eq.s32.totalorder %s10, 0
    %p79 = por %p77, %p78
    %p80 = scmp.ne.s32.totalorder %s69, %s72
    %p81 = scmp.eq.s32.totalorder %s15, 1
    %p82 = por %p80, %p81
    %p83 = scmp.ne.s32.totalorder %s72, %s73
    %p84 = scmp.eq.s32.totalorder %s15, 0
    %p85 = por %p83, %p84
    %p86 = scmp.ne.s32.totalorder %s72, %s73
    %p87 = scmp.eq.s32.totalorder %s16, 1
    %p88 = por %p86, %p87
    %p90 = scmp.ne.s32.totalorder %s73, %s89
    %p91 = scmp.eq.s32.totalorder %s16, 0
    %p92 = por %p90, %p91
    %s93 = ssub.s32 %s18, %s32
    %p94 = scmp.eq.s32.totalorder %s93, 0
    %s96 = sadd.s32 %s95, 1
    %s97 = scalar_select %p94, %s95, %s96
    %p100 = pneg %p94
    %p101 = scmp.eq.s32.totalorder %s10, 1
    %p102 = por %p100, %p101
    %p103 = scmp.ne.s32.totalorder %s95, %s98
    %p104 = scmp.eq.s32.totalorder %s10, 0
    %p105 = por %p103, %p104
    %p106 = scmp.ne.s32.totalorder %s95, %s98
    %p107 = scmp.eq.s32.totalorder %s15, 1
    %p108 = por %p106, %p107
    %p109 = scmp.ne.s32.totalorder %s98, %s99
    %p110 = scmp.eq.s32.totalorder %s15, 0
    %p111 = por %p109, %p110
    %p112 = scmp.ne.s32.totalorder %s98, %s99
    %p113 = scmp.eq.s32.totalorder %s16, 1
    %p114 = por %p112, %p113
    %p116 = scmp.ne.s32.totalorder %s99, %s115
    %p117 = scmp.eq.s32.totalorder %s16, 0
    %p118 = por %p116, %p117
    %s119 = ssub.s32 %s18, %s32
    %p120 = scmp.eq.s32.totalorder %s119, 0
    %s122 = sadd.s32 %s121, 1
    %s123 = scalar_select %p120, %s121, %s122
    %p126 = pneg %p120
    %p127 = scmp.eq.s32.totalorder %s10, 1
    %p128 = por %p126, %p127
    %p129 = scmp.ne.s32.totalorder %s121, %s124
    %p130 = scmp.eq.s32.totalorder %s10, 0
    %p131 = por %p129, %p130
    %p132 = scmp.ne.s32.totalorder %s121, %s124
    %p133 = scmp.eq.s32.totalorder %s15, 1
    %p134 = por %p132, %p133
    %p135 = scmp.ne.s32.totalorder %s124, %s125
    %p136 = scmp.eq.s32.totalorder %s15, 0
    %p137 = por %p135, %p136
    %p138 = scmp.ne.s32.totalorder %s124, %s125
    %p139 = scmp.eq.s32.totalorder %s16, 1
    %p140 = por %p138, %p139
    %p142 = scmp.ne.s32.totalorder %s125, %s141
    %p143 = scmp.eq.s32.totalorder %s16, 0
    %p144 = por %p142, %p143
    %s145 = ssub.s32 %s17, %s36
    %s146 = ssub.s32 %s18, %s32
    %s147 = sor.u32 %s145, %s146
    %p148 = scmp.eq.s32.totalorder %s147, 0
    %s150 = sadd.s32 %s149, 1
    %s151 = scalar_select %p148, %s149, %s150
    %p154 = pneg %p148
    %p155 = scmp.eq.s32.totalorder %s10, 1
    %p156 = por %p154, %p155
    %p157 = scmp.ne.s32.totalorder %s149, %s152
    %p158 = scmp.eq.s32.totalorder %s10, 0
    %p159 = por %p157, %p158
    %p160 = scmp.ne.s32.totalorder %s149, %s152
    %p161 = scmp.eq.s32.totalorder %s15, 1
    %p162 = por %p160, %p161
    %p163 = scmp.ne.s32.totalorder %s152, %s153
    %p164 = scmp.eq.s32.totalorder %s15, 0
    %p165 = por %p163, %p164
    %p166 = scmp.ne.s32.totalorder %s152, %s153
    %p167 = scmp.eq.s32.totalorder %s16, 1
    %p168 = por %p166, %p167
    %p170 = scmp.ne.s32.totalorder %s153, %s169
    %p171 = scmp.eq.s32.totalorder %s16, 0
    %p172 = por %p170, %p171
    %p173 = scmp.le.s32.totalorder 1, %s10
    %p174 = scmp.lt.s32.totalorder %s10, 3
    %p175 = pnand %p173, %p174
    %p176 = pneg %p175
    // Predicated region
    $region9: #{aspp_module_forward.1} parent=5 // pred_check
      _
    $region10: #{aspp_module_forward.1} parent=5 // pred_check_branch
      %178 = sbr.rel (%p175) target = $region12
    $region11: #{aspp_module_forward.1} parent=5 // pred_region
      %s179 = ssub.s32 %s10, 1
      // Predicated region
      $region13: #{aspp_module_forward.1} parent=11 // pred_check
        %p180 = pneg %p85
      $region14: #{aspp_module_forward.1} parent=11 // pred_check_branch
        %182 = sbr.rel (%p180) target = $region16
      $region15: #{aspp_module_forward.1} parent=11 // pred_region
        %p183 = scmp.lt.s32.totalorder %s22, 0
        %s184 = scalar_select %p183, %s22, 0
        %p185 = scmp.lt.s32.totalorder %s21, 0
        %s186 = scalar_select %p185, %s21, 0
        %s187 = smul.addr %s184, 144
        %s188 = sadd.s32 %s186, %s187
        %s189 = smul.addr %s188, 4
        %s190 = scalar_lea.vmem %s1, %s189
      $region16: #{aspp_module_forward.1} parent=11 // pred_fallthru
        _
      // Predicated region
      $region17: #{aspp_module_forward.1} parent=11 // pred_check
        %p191 = pneg %p111
      $region18: #{aspp_module_forward.1} parent=11 // pred_check_branch
        %193 = sbr.rel (%p191) target = $region20
      $region19: #{aspp_module_forward.1} parent=11 // pred_region
        %p194 = scmp.lt.s32.totalorder %s21, 0
        %s195 = scalar_select %p194, %s21, 0
        %s196 = scalar_lea.vmem %s2, %s195
      $region20: #{aspp_module_forward.1} parent=11 // pred_fallthru
        _
      // Predicated region
      $region21: #{aspp_module_forward.1} parent=11 // pred_check
        %p197 = pneg %p137
      $region22: #{aspp_module_forward.1} parent=11 // pred_check_branch
        %199 = sbr.rel (%p197) target = $region24
      $region23: #{aspp_module_forward.1} parent=11 // pred_region
        %p200 = scmp.lt.s32.totalorder %s21, 0
        %s201 = scalar_select %p200, %s21, 0
        %s202 = scalar_lea.vmem %s3, %s201
      $region24: #{aspp_module_forward.1} parent=11 // pred_fallthru
        _
    $region12: #{aspp_module_forward.1} parent=5 // pred_fallthru
      _
    %p203 = scmp.lt.s32.totalorder %s10, 2
    // Predicated region
    $region25: #{aspp_module_forward.1} parent=5 // pred_check
      %p204 = pneg %p203
    $region26: #{aspp_module_forward.1} parent=5 // pred_check_branch
      %206 = sbr.rel (%p204) target = $region28
    $region27: #{aspp_module_forward.1} parent=5 // pred_region
      // Predicated region
      $region29: #{aspp_module_forward.1} parent=27 // pred_check
        %p207 = pneg %p51
      $region30: #{aspp_module_forward.1} parent=27 // pred_check_branch
        %209 = sbr.rel (%p207) target = $region32
      $region31: #{aspp_module_forward.1} parent=27 // pred_region
        %p210 = scmp.lt.s32.totalorder %s17, 1
        %s211 = scalar_select %p210, %s17, 1
        %p212 = scmp.lt.s32.totalorder %s19, 0
        %s213 = scalar_select %p212, %s19, 0
        %s214 = smul.addr %s211, 60
        %s215 = sadd.s32 %s213, %s214
        %s216 = smul.addr %s215, 4
        %s217 = scalar_lea.vmem %s0, %s216
      $region32: #{aspp_module_forward.1} parent=27 // pred_fallthru
        _
    $region28: #{aspp_module_forward.1} parent=5 // pred_fallthru
      _
    %p218 = scmp.le.s32.totalorder 1, %s10
    %p219 = scmp.lt.s32.totalorder %s10, 3
    %p220 = pnand %p218, %p219
    %p221 = pneg %p220
    // Predicated region
    $region33: #{aspp_module_forward.1} parent=5 // pred_check
      _
    $region34: #{aspp_module_forward.1} parent=5 // pred_check_branch
      %223 = sbr.rel (%p220) target = $region36
    $region35: #{aspp_module_forward.1} parent=5 // pred_region
      %s224 = ssub.s32 %s10, 1
      %p225 = scmp.lt.s32.totalorder %s20, 1
      %s226 = scalar_select %p225, %s20, 1
      %p227 = scmp.lt.s32.totalorder %s22, 0
      %s228 = scalar_select %p227, %s22, 0
      %s229 = smul.addr %s226, 60
      %s230 = sadd.s32 %s228, %s229
      %s231 = smul.addr %s230, 4
      %s232 = scalar_lea.vmem %s0, %s231
      %p233 = pneg %p57
      %p234 = pneg %p54
      %p235 = scmp.lt.s32.totalorder %s22, 0
      %s236 = scalar_select %p235, %s22, 0
      %p237 = scmp.lt.s32.totalorder %s21, 0
      %s238 = scalar_select %p237, %s21, 0
      %s239 = smul.addr %s236, 144
      %s240 = sadd.s32 %s238, %s239
      %s241 = smul.addr %s240, 4
      %s242 = scalar_lea.vmem %s1, %s241
      %p243 = pneg %p85
      %p244 = pneg %p82
      %p245 = scmp.lt.s32.totalorder %s21, 0
      %s246 = scalar_select %p245, %s21, 0
      %s247 = scalar_lea.vmem %s2, %s246
      %p248 = pneg %p111
      %p249 = pneg %p108
      %p250 = scmp.lt.s32.totalorder %s21, 0
      %s251 = scalar_select %p250, %s21, 0
      %s252 = scalar_lea.vmem %s3, %s251
      %p253 = pneg %p137
      %p254 = pneg %p134
      %p255 = pneg %p165
      %p256 = pneg %p162
      %p257 = scmp.lt.s32.totalorder %s20, 1
      %s258 = scalar_select %p257, %s20, 1
      %p259 = scmp.lt.s32.totalorder %s21, 0
      %s260 = scalar_select %p259, %s21, 0
      %s261 = smul.addr %s258, 32
      %s262 = sadd.s32 %s260, %s261
      %s263 = smul.addr %s262, 8
      %s264 = scalar_lea.vmem %s4, %s263
      %p265 = scmp.lt.s32.totalorder %s20, 1
      %s266 = scalar_select %p265, %s20, 1
      %p267 = scmp.lt.s32.totalorder %s22, 0
      %s268 = scalar_select %p267, %s22, 0
      %s269 = smul.addr %s266, 60
      %s270 = sadd.s32 %s268, %s269
      %s271 = smul.addr %s270, 4
      %s272 = scalar_lea.vmem %s0, %s271
      %p273 = scmp.lt.s32.totalorder %s22, 0
      %s274 = scalar_select %p273, %s22, 0
      %p275 = scmp.lt.s32.totalorder %s21, 0
      %s276 = scalar_select %p275, %s21, 0
      %s277 = smul.addr %s274, 144
      %s278 = sadd.s32 %s276, %s277
      %s279 = smul.addr %s278, 4
      %s280 = scalar_lea.vmem %s1, %s279
      %p281 = scmp.lt.s32.totalorder %s21, 0
      %s282 = scalar_select %p281, %s21, 0
      %s283 = scalar_lea.vmem %s2, %s282
      %p284 = scmp.lt.s32.totalorder %s21, 0
      %s285 = scalar_select %p284, %s21, 0
      %s286 = scalar_lea.vmem %s3, %s285
      %p287 = scmp.lt.s32.totalorder %s20, 1
      %s288 = scalar_select %p287, %s20, 1
      %p289 = scmp.lt.s32.totalorder %s21, 0
      %s290 = scalar_select %p289, %s21, 0
      %s291 = smul.addr %s288, 32
      %s292 = sadd.s32 %s290, %s291
      %s293 = smul.addr %s292, 8
      %s294 = scalar_lea.vmem %s4, %s293
      %v295 = vld [vmem:[%s272] sm:$0xf]
      %v296 = vld [vmem:[%s272 + $0x4] sm:$0xf]
      %v297 = vld [vmem:[%s272 + $0xc] sm:$0xf]
      %v298 = vld [vmem:[%s272 + $0x10] sm:$0xf]
      %v299 = vld [vmem:[%s272 + $0x18] sm:$0xf]
      %v300 = vld [vmem:[%s272 + $0x1c] sm:$0xf]
      %v301 = vld [vmem:[%s272 + $0x24] sm:$0xf]
      %v302 = vld [vmem:[%s272 + $0x28] sm:$0xf]
      %v303 = vld [vmem:[%s272 + $0x30] sm:$0xf]
      %v304 = vld [vmem:[%s272 + $0x34] sm:$0xf]
      %v305 = vld [vmem:[%s272 + $0x3c] sm:$0xf]
      %v306 = vld [vmem:[%s272 + $0x40] sm:$0xf]
      %v307 = vld [vmem:[%s272 + $0x48] sm:$0xf]
      %v308 = vld [vmem:[%s272 + $0x4c] sm:$0xf]
      %v309 = vld [vmem:[%s272 + $0x54] sm:$0xf]
      %v310 = vld [vmem:[%s272 + $0x58] sm:$0xf]
      %v311 = vld [vmem:[%s272 + $0x60] sm:$0xf]
      %v312 = vld [vmem:[%s272 + $0x64] sm:$0xf]
      %v313 = vld [vmem:[%s272 + $0x6c] sm:$0xf]
      %v314 = vld [vmem:[%s272 + $0x70] sm:$0xf]
      %v315 = vld [vmem:[%s272 + $0x78] sm:$0xf]
      %v316 = vld [vmem:[%s272 + $0x7c] sm:$0xf]
      %v317 = vld [vmem:[%s272 + $0x84] sm:$0xf]
      %v318 = vld [vmem:[%s272 + $0x88] sm:$0xf]
      %v319 = vld [vmem:[%s272 + $0x90] sm:$0xf]
      %v320 = vld [vmem:[%s272 + $0x94] sm:$0xf]
      %v321 = vld [vmem:[%s272 + $0x9c] sm:$0xf]
      %v322 = vld [vmem:[%s272 + $0xa0] sm:$0xf]
      %v323 = vld [vmem:[%s272 + $0xa8] sm:$0xf]
      %v324 = vld [vmem:[%s272 + $0xac] sm:$0xf]
      %v325 = vld [vmem:[%s272 + $0xb4] sm:$0xf]
      %v326 = vld [vmem:[%s272 + $0xb8] sm:$0xf]
      %327 = vst [vmem:[#allocation2] sm:$0xf] %v295
      %328 = vst [vmem:[#allocation2 + $0x24] sm:$0xf] %v296
      %329 = vst [vmem:[#allocation2 + $0x48] sm:$0xf] %v297
      %330 = vst [vmem:[#allocation2 + $0x6c] sm:$0xf] %v298
      %331 = vst [vmem:[#allocation2 + $0x90] sm:$0xf] %v299
      %332 = vst [vmem:[#allocation2 + $0xb4] sm:$0xf] %v300
      %333 = vst [vmem:[#allocation2 + $0xd8] sm:$0xf] %v301
      %334 = vst [vmem:[#allocation2 + $0xfc] sm:$0xf] %v302
      %335 = vst [vmem:[#allocation2 + $0x120] sm:$0xf] %v303
      %336 = vst [vmem:[#allocation2 + $0x144] sm:$0xf] %v304
      %337 = vst [vmem:[#allocation2 + $0x168] sm:$0xf] %v305
      %338 = vst [vmem:[#allocation2 + $0x18c] sm:$0xf] %v306
      %339 = vst [vmem:[#allocation2 + $0x1b0] sm:$0xf] %v307
      %340 = vst [vmem:[#allocation2 + $0x1d4] sm:$0xf] %v308
      %341 = vst [vmem:[#allocation2 + $0x1f8] sm:$0xf] %v309
      %342 = vst [vmem:[#allocation2 + $0x21c] sm:$0xf] %v310
      %343 = vst [vmem:[#allocation2 + $0x240] sm:$0xf] %v311
      %344 = vst [vmem:[#allocation2 + $0x264] sm:$0xf] %v312
      %345 = vst [vmem:[#allocation2 + $0x288] sm:$0xf] %v313
      %346 = vst [vmem:[#allocation2 + $0x2ac] sm:$0xf] %v314
      %347 = vst [vmem:[#allocation2 + $0x2d0] sm:$0xf] %v315
      %348 = vst [vmem:[#allocation2 + $0x2f4] sm:$0xf] %v316
      %349 = vst [vmem:[#allocation2 + $0x318] sm:$0xf] %v317
      %350 = vst [vmem:[#allocation2 + $0x33c] sm:$0xf] %v318
      %351 = vst [vmem:[#allocation2 + $0x360] sm:$0xf] %v319
      %352 = vst [vmem:[#allocation2 + $0x384] sm:$0xf] %v320
      %353 = vst [vmem:[#allocation2 + $0x3a8] sm:$0xf] %v321
      %354 = vst [vmem:[#allocation2 + $0x3cc] sm:$0xf] %v322
      %355 = vst [vmem:[#allocation2 + $0x3f0] sm:$0xf] %v323
      %356 = vst [vmem:[#allocation2 + $0x414] sm:$0xf] %v324
      %357 = vst [vmem:[#allocation2 + $0x438] sm:$0xf] %v325
      %358 = vst [vmem:[#allocation2 + $0x45c] sm:$0xf] %v326
      %v359 = vld [vmem:[%s272] sm:$0xe]
      %v360 = vld [vmem:[%s272 + $0x4] sm:$0xf]
      %v361 = vld [vmem:[%s272 + $0x8] sm:$0x1]
      %v362 = vld [vmem:[%s272 + $0xc] sm:$0xe]
      %v363 = vld [vmem:[%s272 + $0x10] sm:$0xf]
      %v364 = vld [vmem:[%s272 + $0x14] sm:$0x1]
      %v365 = vld [vmem:[%s272 + $0x18] sm:$0xe]
      %v366 = vld [vmem:[%s272 + $0x1c] sm:$0xf]
      %v367 = vld [vmem:[%s272 + $0x20] sm:$0x1]
      %v368 = vld [vmem:[%s272 + $0x24] sm:$0xe]
      %v369 = vld [vmem:[%s272 + $0x28] sm:$0xf]
      %v370 = vld [vmem:[%s272 + $0x2c] sm:$0x1]
      %v371 = vld [vmem:[%s272 + $0x30] sm:$0xe]
      %v372 = vld [vmem:[%s272 + $0x34] sm:$0xf]
      %v373 = vld [vmem:[%s272 + $0x38] sm:$0x1]
      %v374 = vld [vmem:[%s272 + $0x3c] sm:$0xe]
      %v375 = vld [vmem:[%s272 + $0x40] sm:$0xf]
      %v376 = vld [vmem:[%s272 + $0x44] sm:$0x1]
      %v377 = vld [vmem:[%s272 + $0x48] sm:$0xe]
      %v378 = vld [vmem:[%s272 + $0x4c] sm:$0xf]
      %v379 = vld [vmem:[%s272 + $0x50] sm:$0x1]
      %v380 = vld [vmem:[%s272 + $0x54] sm:$0xe]
      %v381 = vld [vmem:[%s272 + $0x58] sm:$0xf]
      %v382 = vld [vmem:[%s272 + $0x5c] sm:$0x1]
      %v383 = vld [vmem:[%s272 + $0x60] sm:$0xe]
      %v384 = vld [vmem:[%s272 + $0x64] sm:$0xf]
      %v385 = vld [vmem:[%s272 + $0x68] sm:$0x1]
      %v386 = vld [vmem:[%s272 + $0x6c] sm:$0xe]
      %v387 = vld [vmem:[%s272 + $0x70] sm:$0xf]
      %v388 = vld [vmem:[%s272 + $0x74] sm:$0x1]
      %v389 = vld [vmem:[%s272 + $0x78] sm:$0xe]
      %v390 = vld [vmem:[%s272 + $0x7c] sm:$0xf]
      %v391 = vld [vmem:[%s272 + $0x80] sm:$0x1]
      %v392 = vld [vmem:[%s272 + $0x84] sm:$0xe]
      %v393 = vld [vmem:[%s272 + $0x88] sm:$0xf]
      %v394 = vld [vmem:[%s272 + $0x8c] sm:$0x1]
      %v395 = vld [vmem:[%s272 + $0x90] sm:$0xe]
      %v396 = vld [vmem:[%s272 + $0x94] sm:$0xf]
      %v397 = vld [vmem:[%s272 + $0x98] sm:$0x1]
      %v398 = vld [vmem:[%s272 + $0x9c] sm:$0xe]
      %v399 = vld [vmem:[%s272 + $0xa0] sm:$0xf]
      %v400 = vld [vmem:[%s272 + $0xa4] sm:$0x1]
      %v401 = vld [vmem:[%s272 + $0xa8] sm:$0xe]
      %v402 = vld [vmem:[%s272 + $0xac] sm:$0xf]
      %v403 = vld [vmem:[%s272 + $0xb0] sm:$0x1]
      %v404 = vld [vmem:[%s272 + $0xb4] sm:$0xe]
      %v405 = vld [vmem:[%s272 + $0xb8] sm:$0xf]
      %v406 = vld [vmem:[%s272 + $0xbc] sm:$0x1]
      %vm455 = vcmask 1042432
      %vm456 = vcmask 1046532
      %vm457 = vmor %vm455, %vm456
      %v458 = vrot.slane %v359, 5
      %v459 = vrot.slane %v458, 4
      %v460 = vrot.slane %v360, 5
      %v461 = vsel %vm457, %v459, %v460
      %v462 = vrot.slane %v460, 4
      %v463 = vrot.slane %v361, 5
      %v464 = vsel %vm457, %v462, %v463
      %v465 = vrot.slane %v362, 5
      %v466 = vrot.slane %v465, 4
      %v467 = vrot.slane %v363, 5
      %v468 = vsel %vm457, %v466, %v467
      %v469 = vrot.slane %v467, 4
      %v470 = vrot.slane %v364, 5
      %v471 = vsel %vm457, %v469, %v470
      %v472 = vrot.slane %v365, 5
      %v473 = vrot.slane %v472, 4
      %v474 = vrot.slane %v366, 5
      %v475 = vsel %vm457, %v473, %v474
      %v476 = vrot.slane %v474, 4
      %v477 = vrot.slane %v367, 5
      %v478 = vsel %vm457, %v476, %v477
      %v479 = vrot.slane %v368, 5
      %v480 = vrot.slane %v479, 4
      %v481 = vrot.slane %v369, 5
      %v482 = vsel %vm457, %v480, %v481
      %v483 = vrot.slane %v481, 4
      %v484 = vrot.slane %v370, 5
      %v485 = vsel %vm457, %v483, %v484
      %v486 = vrot.slane %v371, 5
      %v487 = vrot.slane %v486, 4
      %v488 = vrot.slane %v372, 5
      %v489 = vsel %vm457, %v487, %v488
      %v490 = vrot.slane %v488, 4
      %v491 = vrot.slane %v373, 5
      %v492 = vsel %vm457, %v490, %v491
      %v493 = vrot.slane %v374, 5
      %v494 = vrot.slane %v493, 4
      %v495 = vrot.slane %v375, 5
      %v496 = vsel %vm457, %v494, %v495
      %v497 = vrot.slane %v495, 4
      %v498 = vrot.slane %v376, 5
      %v499 = vsel %vm457, %v497, %v498
      %v500 = vrot.slane %v377, 5
      %v501 = vrot.slane %v500, 4
      %v502 = vrot.slane %v378, 5
      %v503 = vsel %vm457, %v501, %v502
      %v504 = vrot.slane %v502, 4
      %v505 = vrot.slane %v379, 5
      %v506 = vsel %vm457, %v504, %v505
      %v507 = vrot.slane %v380, 5
      %v508 = vrot.slane %v507, 4
      %v509 = vrot.slane %v381, 5
      %v510 = vsel %vm457, %v508, %v509
      %v511 = vrot.slane %v509, 4
      %v512 = vrot.slane %v382, 5
      %v513 = vsel %vm457, %v511, %v512
      %v514 = vrot.slane %v383, 5
      %v515 = vrot.slane %v514, 4
      %v516 = vrot.slane %v384, 5
      %v517 = vsel %vm457, %v515, %v516
      %v518 = vrot.slane %v516, 4
      %v519 = vrot.slane %v385, 5
      %v520 = vsel %vm457, %v518, %v519
      %v521 = vrot.slane %v386, 5
      %v522 = vrot.slane %v521, 4
      %v523 = vrot.slane %v387, 5
      %v524 = vsel %vm457, %v522, %v523
      %v525 = vrot.slane %v523, 4
      %v526 = vrot.slane %v388, 5
      %v527 = vsel %vm457, %v525, %v526
      %v528 = vrot.slane %v389, 5
      %v529 = vrot.slane %v528, 4
      %v530 = vrot.slane %v390, 5
      %v531 = vsel %vm457, %v529, %v530
      %v532 = vrot.slane %v530, 4
      %v533 = vrot.slane %v391, 5
      %v534 = vsel %vm457, %v532, %v533
      %v535 = vrot.slane %v392, 5
      %v536 = vrot.slane %v535, 4
      %v537 = vrot.slane %v393, 5
      %v538 = vsel %vm457, %v536, %v537
      %v539 = vrot.slane %v537, 4
      %v540 = vrot.slane %v394, 5
      %v541 = vsel %vm457, %v539, %v540
      %v542 = vrot.slane %v395, 5
      %v543 = vrot.slane %v542, 4
      %v544 = vrot.slane %v396, 5
      %v545 = vsel %vm457, %v543, %v544
      %v546 = vrot.slane %v544, 4
      %v547 = vrot.slane %v397, 5
      %v548 = vsel %vm457, %v546, %v547
      %v549 = vrot.slane %v398, 5
      %v550 = vrot.slane %v549, 4
      %v551 = vrot.slane %v399, 5
      %v552 = vsel %vm457, %v550, %v551
      %v553 = vrot.slane %v551, 4
      %v554 = vrot.slane %v400, 5
      %v555 = vsel %vm457, %v553, %v554
      %v556 = vrot.slane %v401, 5
      %v557 = vrot.slane %v556, 4
      %v558 = vrot.slane %v402, 5
      %v559 = vsel %vm457, %v557, %v558
      %v560 = vrot.slane %v558, 4
      %v561 = vrot.slane %v403, 5
      %v562 = vsel %vm457, %v560, %v561
      %v563 = vrot.slane %v404, 5
      %v564 = vrot.slane %v563, 4
      %v565 = vrot.slane %v405, 5
      %v566 = vsel %vm457, %v564, %v565
      %v567 = vrot.slane %v565, 4
      %v568 = vrot.slane %v406, 5
      %v569 = vsel %vm457, %v567, %v568
      %602 = vst [vmem:[#allocation2 + $0x4] sm:$0xf] %v461
      %603 = vst [vmem:[#allocation2 + $0x28] sm:$0xf] %v464
      %604 = vst [vmem:[#allocation2 + $0x4c] sm:$0xf] %v468
      %605 = vst [vmem:[#allocation2 + $0x70] sm:$0xf] %v471
      %606 = vst [vmem:[#allocation2 + $0x94] sm:$0xf] %v475
      %607 = vst [vmem:[#allocation2 + $0xb8] sm:$0xf] %v478
      %608 = vst [vmem:[#allocation2 + $0xdc] sm:$0xf] %v482
      %609 = vst [vmem:[#allocation2 + $0x100] sm:$0xf] %v485
      %610 = vst [vmem:[#allocation2 + $0x124] sm:$0xf] %v489
      %611 = vst [vmem:[#allocation2 + $0x148] sm:$0xf] %v492
      %612 = vst [vmem:[#allocation2 + $0x16c] sm:$0xf] %v496
      %613 = vst [vmem:[#allocation2 + $0x190] sm:$0xf] %v499
      %614 = vst [vmem:[#allocation2 + $0x1b4] sm:$0xf] %v503
      %615 = vst [vmem:[#allocation2 + $0x1d8] sm:$0xf] %v506
      %616 = vst [vmem:[#allocation2 + $0x1fc] sm:$0xf] %v510
      %617 = vst [vmem:[#allocation2 + $0x220] sm:$0xf] %v513
      %618 = vst [vmem:[#allocation2 + $0x244] sm:$0xf] %v517
      %619 = vst [vmem:[#allocation2 + $0x268] sm:$0xf] %v520
      %620 = vst [vmem:[#allocation2 + $0x28c] sm:$0xf] %v524
      %621 = vst [vmem:[#allocation2 + $0x2b0] sm:$0xf] %v527
      %622 = vst [vmem:[#allocation2 + $0x2d4] sm:$0xf] %v531
      %623 = vst [vmem:[#allocation2 + $0x2f8] sm:$0xf] %v534
      %624 = vst [vmem:[#allocation2 + $0x31c] sm:$0xf] %v538
      %625 = vst [vmem:[#allocation2 + $0x340] sm:$0xf] %v541
      %626 = vst [vmem:[#allocation2 + $0x364] sm:$0xf] %v545
      %627 = vst [vmem:[#allocation2 + $0x388] sm:$0xf] %v548
      %628 = vst [vmem:[#allocation2 + $0x3ac] sm:$0xf] %v552
      %629 = vst [vmem:[#allocation2 + $0x3d0] sm:$0xf] %v555
      %630 = vst [vmem:[#allocation2 + $0x3f4] sm:$0xf] %v559
      %631 = vst [vmem:[#allocation2 + $0x418] sm:$0xf] %v562
      %632 = vst [vmem:[#allocation2 + $0x43c] sm:$0xf] %v566
      %633 = vst [vmem:[#allocation2 + $0x460] sm:$0xf] %v569
      %v634 = vld [vmem:[%s272] sm:$0xc]
      %v635 = vld [vmem:[%s272 + $0x4] sm:$0xf]
      %v636 = vld [vmem:[%s272 + $0x8] sm:$0x3]
      %v637 = vld [vmem:[%s272 + $0xc] sm:$0xc]
      %v638 = vld [vmem:[%s272 + $0x10] sm:$0xf]
      %v639 = vld [vmem:[%s272 + $0x14] sm:$0x3]
      %v640 = vld [vmem:[%s272 + $0x18] sm:$0xc]
      %v641 = vld [vmem:[%s272 + $0x1c] sm:$0xf]
      %v642 = vld [vmem:[%s272 + $0x20] sm:$0x3]
      %v643 = vld [vmem:[%s272 + $0x24] sm:$0xc]
      %v644 = vld [vmem:[%s272 + $0x28] sm:$0xf]
      %v645 = vld [vmem:[%s272 + $0x2c] sm:$0x3]
      %v646 = vld [vmem:[%s272 + $0x30] sm:$0xc]
      %v647 = vld [vmem:[%s272 + $0x34] sm:$0xf]
      %v648 = vld [vmem:[%s272 + $0x38] sm:$0x3]
      %v649 = vld [vmem:[%s272 + $0x3c] sm:$0xc]
      %v650 = vld [vmem:[%s272 + $0x40] sm:$0xf]
      %v651 = vld [vmem:[%s272 + $0x44] sm:$0x3]
      %v652 = vld [vmem:[%s272 + $0x48] sm:$0xc]
      %v653 = vld [vmem:[%s272 + $0x4c] sm:$0xf]
      %v654 = vld [vmem:[%s272 + $0x50] sm:$0x3]
      %v655 = vld [vmem:[%s272 + $0x54] sm:$0xc]
      %v656 = vld [vmem:[%s272 + $0x58] sm:$0xf]
      %v657 = vld [vmem:[%s272 + $0x5c] sm:$0x3]
      %v658 = vld [vmem:[%s272 + $0x60] sm:$0xc]
      %v659 = vld [vmem:[%s272 + $0x64] sm:$0xf]
      %v660 = vld [vmem:[%s272 + $0x68] sm:$0x3]
      %v661 = vld [vmem:[%s272 + $0x6c] sm:$0xc]
      %v662 = vld [vmem:[%s272 + $0x70] sm:$0xf]
      %v663 = vld [vmem:[%s272 + $0x74] sm:$0x3]
      %v664 = vld [vmem:[%s272 + $0x78] sm:$0xc]
      %v665 = vld [vmem:[%s272 + $0x7c] sm:$0xf]
      %v666 = vld [vmem:[%s272 + $0x80] sm:$0x3]
      %v667 = vld [vmem:[%s272 + $0x84] sm:$0xc]
      %v668 = vld [vmem:[%s272 + $0x88] sm:$0xf]
      %v669 = vld [vmem:[%s272 + $0x8c] sm:$0x3]
      %v670 = vld [vmem:[%s272 + $0x90] sm:$0xc]
      %v671 = vld [vmem:[%s272 + $0x94] sm:$0xf]
      %v672 = vld [vmem:[%s272 + $0x98] sm:$0x3]
      %v673 = vld [vmem:[%s272 + $0x9c] sm:$0xc]
      %v674 = vld [vmem:[%s272 + $0xa0] sm:$0xf]
      %v675 = vld [vmem:[%s272 + $0xa4] sm:$0x3]
      %v676 = vld [vmem:[%s272 + $0xa8] sm:$0xc]
      %v677 = vld [vmem:[%s272 + $0xac] sm:$0xf]
      %v678 = vld [vmem:[%s272 + $0xb0] sm:$0x3]
      %v679 = vld [vmem:[%s272 + $0xb4] sm:$0xc]
      %v680 = vld [vmem:[%s272 + $0xb8] sm:$0xf]
      %v681 = vld [vmem:[%s272 + $0xbc] sm:$0x3]
      %vm730 = vcmask 1041408
      %vm731 = vcmask 1045508
      %vm732 = vmor %vm730, %vm731
      %v733 = vrot.slane %v634, 6
      %v734 = vrot.slane %v733, 4
      %v735 = vrot.slane %v635, 6
      %v736 = vsel %vm732, %v734, %v735
      %v737 = vrot.slane %v735, 4
      %v738 = vrot.slane %v636, 6
      %v739 = vsel %vm732, %v737, %v738
      %v740 = vrot.slane %v637, 6
      %v741 = vrot.slane %v740, 4
      %v742 = vrot.slane %v638, 6
      %v743 = vsel %vm732, %v741, %v742
      %v744 = vrot.slane %v742, 4
      %v745 = vrot.slane %v639, 6
      %v746 = vsel %vm732, %v744, %v745
      %v747 = vrot.slane %v640, 6
      %v748 = vrot.slane %v747, 4
      %v749 = vrot.slane %v641, 6
      %v750 = vsel %vm732, %v748, %v749
      %v751 = vrot.slane %v749, 4
      %v752 = vrot.slane %v642, 6
      %v753 = vsel %vm732, %v751, %v752
      %v754 = vrot.slane %v643, 6
      %v755 = vrot.slane %v754, 4
      %v756 = vrot.slane %v644, 6
      %v757 = vsel %vm732, %v755, %v756
      %v758 = vrot.slane %v756, 4
      %v759 = vrot.slane %v645, 6
      %v760 = vsel %vm732, %v758, %v759
      %v761 = vrot.slane %v646, 6
      %v762 = vrot.slane %v761, 4
      %v763 = vrot.slane %v647, 6
      %v764 = vsel %vm732, %v762, %v763
      %v765 = vrot.slane %v763, 4
      %v766 = vrot.slane %v648, 6
      %v767 = vsel %vm732, %v765, %v766
      %v768 = vrot.slane %v649, 6
      %v769 = vrot.slane %v768, 4
      %v770 = vrot.slane %v650, 6
      %v771 = vsel %vm732, %v769, %v770
      %v772 = vrot.slane %v770, 4
      %v773 = vrot.slane %v651, 6
      %v774 = vsel %vm732, %v772, %v773
      %v775 = vrot.slane %v652, 6
      %v776 = vrot.slane %v775, 4
      %v777 = vrot.slane %v653, 6
      %v778 = vsel %vm732, %v776, %v777
      %v779 = vrot.slane %v777, 4
      %v780 = vrot.slane %v654, 6
      %v781 = vsel %vm732, %v779, %v780
      %v782 = vrot.slane %v655, 6
      %v783 = vrot.slane %v782, 4
      %v784 = vrot.slane %v656, 6
      %v785 = vsel %vm732, %v783, %v784
      %v786 = vrot.slane %v784, 4
      %v787 = vrot.slane %v657, 6
      %v788 = vsel %vm732, %v786, %v787
      %v789 = vrot.slane %v658, 6
      %v790 = vrot.slane %v789, 4
      %v791 = vrot.slane %v659, 6
      %v792 = vsel %vm732, %v790, %v791
      %v793 = vrot.slane %v791, 4
      %v794 = vrot.slane %v660, 6
      %v795 = vsel %vm732, %v793, %v794
      %v796 = vrot.slane %v661, 6
      %v797 = vrot.slane %v796, 4
      %v798 = vrot.slane %v662, 6
      %v799 = vsel %vm732, %v797, %v798
      %v800 = vrot.slane %v798, 4
      %v801 = vrot.slane %v663, 6
      %v802 = vsel %vm732, %v800, %v801
      %v803 = vrot.slane %v664, 6
      %v804 = vrot.slane %v803, 4
      %v805 = vrot.slane %v665, 6
      %v806 = vsel %vm732, %v804, %v805
      %v807 = vrot.slane %v805, 4
      %v808 = vrot.slane %v666, 6
      %v809 = vsel %vm732, %v807, %v808
      %v810 = vrot.slane %v667, 6
      %v811 = vrot.slane %v810, 4
      %v812 = vrot.slane %v668, 6
      %v813 = vsel %vm732, %v811, %v812
      %v814 = vrot.slane %v812, 4
      %v815 = vrot.slane %v669, 6
      %v816 = vsel %vm732, %v814, %v815
      %v817 = vrot.slane %v670, 6
      %v818 = vrot.slane %v817, 4
      %v819 = vrot.slane %v671, 6
      %v820 = vsel %vm732, %v818, %v819
      %v821 = vrot.slane %v819, 4
      %v822 = vrot.slane %v672, 6
      %v823 = vsel %vm732, %v821, %v822
      %v824 = vrot.slane %v673, 6
      %v825 = vrot.slane %v824, 4
      %v826 = vrot.slane %v674, 6
      %v827 = vsel %vm732, %v825, %v826
      %v828 = vrot.slane %v826, 4
      %v829 = vrot.slane %v675, 6
      %v830 = vsel %vm732, %v828, %v829
      %v831 = vrot.slane %v676, 6
      %v832 = vrot.slane %v831, 4
      %v833 = vrot.slane %v677, 6
      %v834 = vsel %vm732, %v832, %v833
      %v835 = vrot.slane %v833, 4
      %v836 = vrot.slane %v678, 6
      %v837 = vsel %vm732, %v835, %v836
      %v838 = vrot.slane %v679, 6
      %v839 = vrot.slane %v838, 4
      %v840 = vrot.slane %v680, 6
      %v841 = vsel %vm732, %v839, %v840
      %v842 = vrot.slane %v840, 4
      %v843 = vrot.slane %v681, 6
      %v844 = vsel %vm732, %v842, %v843
      %877 = vst [vmem:[#allocation2 + $0x8] sm:$0xf] %v736
      %878 = vst [vmem:[#allocation2 + $0x2c] sm:$0xf] %v739
      %879 = vst [vmem:[#allocation2 + $0x50] sm:$0xf] %v743
      %880 = vst [vmem:[#allocation2 + $0x74] sm:$0xf] %v746
      %881 = vst [vmem:[#allocation2 + $0x98] sm:$0xf] %v750
      %882 = vst [vmem:[#allocation2 + $0xbc] sm:$0xf] %v753
      %883 = vst [vmem:[#allocation2 + $0xe0] sm:$0xf] %v757
      %884 = vst [vmem:[#allocation2 + $0x104] sm:$0xf] %v760
      %885 = vst [vmem:[#allocation2 + $0x128] sm:$0xf] %v764
      %886 = vst [vmem:[#allocation2 + $0x14c] sm:$0xf] %v767
      %887 = vst [vmem:[#allocation2 + $0x170] sm:$0xf] %v771
      %888 = vst [vmem:[#allocation2 + $0x194] sm:$0xf] %v774
      %889 = vst [vmem:[#allocation2 + $0x1b8] sm:$0xf] %v778
      %890 = vst [vmem:[#allocation2 + $0x1dc] sm:$0xf] %v781
      %891 = vst [vmem:[#allocation2 + $0x200] sm:$0xf] %v785
      %892 = vst [vmem:[#allocation2 + $0x224] sm:$0xf] %v788
      %893 = vst [vmem:[#allocation2 + $0x248] sm:$0xf] %v792
      %894 = vst [vmem:[#allocation2 + $0x26c] sm:$0xf] %v795
      %895 = vst [vmem:[#allocation2 + $0x290] sm:$0xf] %v799
      %896 = vst [vmem:[#allocation2 + $0x2b4] sm:$0xf] %v802
      %897 = vst [vmem:[#allocation2 + $0x2d8] sm:$0xf] %v806
      %898 = vst [vmem:[#allocation2 + $0x2fc] sm:$0xf] %v809
      %899 = vst [vmem:[#allocation2 + $0x320] sm:$0xf] %v813
      %900 = vst [vmem:[#allocation2 + $0x344] sm:$0xf] %v816
      %901 = vst [vmem:[#allocation2 + $0x368] sm:$0xf] %v820
      %902 = vst [vmem:[#allocation2 + $0x38c] sm:$0xf] %v823
      %903 = vst [vmem:[#allocation2 + $0x3b0] sm:$0xf] %v827
      %904 = vst [vmem:[#allocation2 + $0x3d4] sm:$0xf] %v830
      %905 = vst [vmem:[#allocation2 + $0x3f8] sm:$0xf] %v834
      %906 = vst [vmem:[#allocation2 + $0x41c] sm:$0xf] %v837
      %907 = vst [vmem:[#allocation2 + $0x440] sm:$0xf] %v841
      %908 = vst [vmem:[#allocation2 + $0x464] sm:$0xf] %v844
      %s909 = scalar_lea.vmem %s272, 24
      %v910 = vld [vmem:[%s909] sm:$0xf]
      %v911 = vld [vmem:[%s909 + $0x4] sm:$0xf]
      %v912 = vld [vmem:[%s909 + $0xc] sm:$0xf]
      %v913 = vld [vmem:[%s909 + $0x10] sm:$0xf]
      %v914 = vld [vmem:[%s909 + $0x18] sm:$0xf]
      %v915 = vld [vmem:[%s909 + $0x1c] sm:$0xf]
      %v916 = vld [vmem:[%s909 + $0x24] sm:$0xf]
      %v917 = vld [vmem:[%s909 + $0x28] sm:$0xf]
      %v918 = vld [vmem:[%s909 + $0x30] sm:$0xf]
      %v919 = vld [vmem:[%s909 + $0x34] sm:$0xf]
      %v920 = vld [vmem:[%s909 + $0x3c] sm:$0xf]
      %v921 = vld [vmem:[%s909 + $0x40] sm:$0xf]
      %v922 = vld [vmem:[%s909 + $0x48] sm:$0xf]
      %v923 = vld [vmem:[%s909 + $0x4c] sm:$0xf]
      %v924 = vld [vmem:[%s909 + $0x54] sm:$0xf]
      %v925 = vld [vmem:[%s909 + $0x58] sm:$0xf]
      %v926 = vld [vmem:[%s909 + $0x60] sm:$0xf]
      %v927 = vld [vmem:[%s909 + $0x64] sm:$0xf]
      %v928 = vld [vmem:[%s909 + $0x6c] sm:$0xf]
      %v929 = vld [vmem:[%s909 + $0x70] sm:$0xf]
      %v930 = vld [vmem:[%s909 + $0x78] sm:$0xf]
      %v931 = vld [vmem:[%s909 + $0x7c] sm:$0xf]
      %v932 = vld [vmem:[%s909 + $0x84] sm:$0xf]
      %v933 = vld [vmem:[%s909 + $0x88] sm:$0xf]
      %v934 = vld [vmem:[%s909 + $0x90] sm:$0xf]
      %v935 = vld [vmem:[%s909 + $0x94] sm:$0xf]
      %v936 = vld [vmem:[%s909 + $0x9c] sm:$0xf]
      %v937 = vld [vmem:[%s909 + $0xa0] sm:$0xf]
      %v938 = vld [vmem:[%s909 + $0xa8] sm:$0xf]
      %v939 = vld [vmem:[%s909 + $0xac] sm:$0xf]
      %v940 = vld [vmem:[%s909 + $0xb4] sm:$0xf]
      %v941 = vld [vmem:[%s909 + $0xb8] sm:$0xf]
      %942 = vst [vmem:[#allocation2 + $0xc] sm:$0xf] %v910
      %943 = vst [vmem:[#allocation2 + $0x30] sm:$0xf] %v911
      %944 = vst [vmem:[#allocation2 + $0x54] sm:$0xf] %v912
      %945 = vst [vmem:[#allocation2 + $0x78] sm:$0xf] %v913
      %946 = vst [vmem:[#allocation2 + $0x9c] sm:$0xf] %v914
      %947 = vst [vmem:[#allocation2 + $0xc0] sm:$0xf] %v915
      %948 = vst [vmem:[#allocation2 + $0xe4] sm:$0xf] %v916
      %949 = vst [vmem:[#allocation2 + $0x108] sm:$0xf] %v917
      %950 = vst [vmem:[#allocation2 + $0x12c] sm:$0xf] %v918
      %951 = vst [vmem:[#allocation2 + $0x150] sm:$0xf] %v919
      %952 = vst [vmem:[#allocation2 + $0x174] sm:$0xf] %v920
      %953 = vst [vmem:[#allocation2 + $0x198] sm:$0xf] %v921
      %954 = vst [vmem:[#allocation2 + $0x1bc] sm:$0xf] %v922
      %955 = vst [vmem:[#allocation2 + $0x1e0] sm:$0xf] %v923
      %956 = vst [vmem:[#allocation2 + $0x204] sm:$0xf] %v924
      %957 = vst [vmem:[#allocation2 + $0x228] sm:$0xf] %v925
      %958 = vst [vmem:[#allocation2 + $0x24c] sm:$0xf] %v926
      %959 = vst [vmem:[#allocation2 + $0x270] sm:$0xf] %v927
      %960 = vst [vmem:[#allocation2 + $0x294] sm:$0xf] %v928
      %961 = vst [vmem:[#allocation2 + $0x2b8] sm:$0xf] %v929
      %962 = vst [vmem:[#allocation2 + $0x2dc] sm:$0xf] %v930
      %963 = vst [vmem:[#allocation2 + $0x300] sm:$0xf] %v931
      %964 = vst [vmem:[#allocation2 + $0x324] sm:$0xf] %v932
      %965 = vst [vmem:[#allocation2 + $0x348] sm:$0xf] %v933
      %966 = vst [vmem:[#allocation2 + $0x36c] sm:$0xf] %v934
      %967 = vst [vmem:[#allocation2 + $0x390] sm:$0xf] %v935
      %968 = vst [vmem:[#allocation2 + $0x3b4] sm:$0xf] %v936
      %969 = vst [vmem:[#allocation2 + $0x3d8] sm:$0xf] %v937
      %970 = vst [vmem:[#allocation2 + $0x3fc] sm:$0xf] %v938
      %971 = vst [vmem:[#allocation2 + $0x420] sm:$0xf] %v939
      %972 = vst [vmem:[#allocation2 + $0x444] sm:$0xf] %v940
      %973 = vst [vmem:[#allocation2 + $0x468] sm:$0xf] %v941
      %v974 = vld [vmem:[%s909] sm:$0xe]
      %v975 = vld [vmem:[%s909 + $0x4] sm:$0xf]
      %v976 = vld [vmem:[%s909 + $0x8] sm:$0x1]
      %v977 = vld [vmem:[%s909 + $0xc] sm:$0xe]
      %v978 = vld [vmem:[%s909 + $0x10] sm:$0xf]
      %v979 = vld [vmem:[%s909 + $0x14] sm:$0x1]
      %v980 = vld [vmem:[%s909 + $0x18] sm:$0xe]
      %v981 = vld [vmem:[%s909 + $0x1c] sm:$0xf]
      %v982 = vld [vmem:[%s909 + $0x20] sm:$0x1]
      %v983 = vld [vmem:[%s909 + $0x24] sm:$0xe]
      %v984 = vld [vmem:[%s909 + $0x28] sm:$0xf]
      %v985 = vld [vmem:[%s909 + $0x2c] sm:$0x1]
      %v986 = vld [vmem:[%s909 + $0x30] sm:$0xe]
      %v987 = vld [vmem:[%s909 + $0x34] sm:$0xf]
      %v988 = vld [vmem:[%s909 + $0x38] sm:$0x1]
      %v989 = vld [vmem:[%s909 + $0x3c] sm:$0xe]
      %v990 = vld [vmem:[%s909 + $0x40] sm:$0xf]
      %v991 = vld [vmem:[%s909 + $0x44] sm:$0x1]
      %v992 = vld [vmem:[%s909 + $0x48] sm:$0xe]
      %v993 = vld [vmem:[%s909 + $0x4c] sm:$0xf]
      %v994 = vld [vmem:[%s909 + $0x50] sm:$0x1]
      %v995 = vld [vmem:[%s909 + $0x54] sm:$0xe]
      %v996 = vld [vmem:[%s909 + $0x58] sm:$0xf]
      %v997 = vld [vmem:[%s909 + $0x5c] sm:$0x1]
      %v998 = vld [vmem:[%s909 + $0x60] sm:$0xe]
      %v999 = vld [vmem:[%s909 + $0x64] sm:$0xf]
      %v1000 = vld [vmem:[%s909 + $0x68] sm:$0x1]
      %v1001 = vld [vmem:[%s909 + $0x6c] sm:$0xe]
      %v1002 = vld [vmem:[%s909 + $0x70] sm:$0xf]
      %v1003 = vld [vmem:[%s909 + $0x74] sm:$0x1]
      %v1004 = vld [vmem:[%s909 + $0x78] sm:$0xe]
      %v1005 = vld [vmem:[%s909 + $0x7c] sm:$0xf]
      %v1006 = vld [vmem:[%s909 + $0x80] sm:$0x1]
      %v1007 = vld [vmem:[%s909 + $0x84] sm:$0xe]
      %v1008 = vld [vmem:[%s909 + $0x88] sm:$0xf]
      %v1009 = vld [vmem:[%s909 + $0x8c] sm:$0x1]
      %v1010 = vld [vmem:[%s909 + $0x90] sm:$0xe]
      %v1011 = vld [vmem:[%s909 + $0x94] sm:$0xf]
      %v1012 = vld [vmem:[%s909 + $0x98] sm:$0x1]
      %v1013 = vld [vmem:[%s909 + $0x9c] sm:$0xe]
      %v1014 = vld [vmem:[%s909 + $0xa0] sm:$0xf]
      %v1015 = vld [vmem:[%s909 + $0xa4] sm:$0x1]
      %v1016 = vld [vmem:[%s909 + $0xa8] sm:$0xe]
      %v1017 = vld [vmem:[%s909 + $0xac] sm:$0xf]
      %v1018 = vld [vmem:[%s909 + $0xb0] sm:$0x1]
      %v1019 = vld [vmem:[%s909 + $0xb4] sm:$0xe]
      %v1020 = vld [vmem:[%s909 + $0xb8] sm:$0xf]
      %v1021 = vld [vmem:[%s909 + $0xbc] sm:$0x1]
      %v1070 = vrot.slane %v974, 5
      %v1071 = vrot.slane %v1070, 4
      %v1072 = vrot.slane %v975, 5
      %v1073 = vsel %vm457, %v1071, %v1072
      %v1074 = vrot.slane %v1072, 4
      %v1075 = vrot.slane %v976, 5
      %v1076 = vsel %vm457, %v1074, %v1075
      %v1077 = vrot.slane %v977, 5
      %v1078 = vrot.slane %v1077, 4
      %v1079 = vrot.slane %v978, 5
      %v1080 = vsel %vm457, %v1078, %v1079
      %v1081 = vrot.slane %v1079, 4
      %v1082 = vrot.slane %v979, 5
      %v1083 = vsel %vm457, %v1081, %v1082
      %v1084 = vrot.slane %v980, 5
      %v1085 = vrot.slane %v1084, 4
      %v1086 = vrot.slane %v981, 5
      %v1087 = vsel %vm457, %v1085, %v1086
      %v1088 = vrot.slane %v1086, 4
      %v1089 = vrot.slane %v982, 5
      %v1090 = vsel %vm457, %v1088, %v1089
      %v1091 = vrot.slane %v983, 5
      %v1092 = vrot.slane %v1091, 4
      %v1093 = vrot.slane %v984, 5
      %v1094 = vsel %vm457, %v1092, %v1093
      %v1095 = vrot.slane %v1093, 4
      %v1096 = vrot.slane %v985, 5
      %v1097 = vsel %vm457, %v1095, %v1096
      %v1098 = vrot.slane %v986, 5
      %v1099 = vrot.slane %v1098, 4
      %v1100 = vrot.slane %v987, 5
      %v1101 = vsel %vm457, %v1099, %v1100
      %v1102 = vrot.slane %v1100, 4
      %v1103 = vrot.slane %v988, 5
      %v1104 = vsel %vm457, %v1102, %v1103
      %v1105 = vrot.slane %v989, 5
      %v1106 = vrot.slane %v1105, 4
      %v1107 = vrot.slane %v990, 5
      %v1108 = vsel %vm457, %v1106, %v1107
      %v1109 = vrot.slane %v1107, 4
      %v1110 = vrot.slane %v991, 5
      %v1111 = vsel %vm457, %v1109, %v1110
      %v1112 = vrot.slane %v992, 5
      %v1113 = vrot.slane %v1112, 4
      %v1114 = vrot.slane %v993, 5
      %v1115 = vsel %vm457, %v1113, %v1114
      %v1116 = vrot.slane %v1114, 4
      %v1117 = vrot.slane %v994, 5
      %v1118 = vsel %vm457, %v1116, %v1117
      %v1119 = vrot.slane %v995, 5
      %v1120 = vrot.slane %v1119, 4
      %v1121 = vrot.slane %v996, 5
      %v1122 = vsel %vm457, %v1120, %v1121
      %v1123 = vrot.slane %v1121, 4
      %v1124 = vrot.slane %v997, 5
      %v1125 = vsel %vm457, %v1123, %v1124
      %v1126 = vrot.slane %v998, 5
      %v1127 = vrot.slane %v1126, 4
      %v1128 = vrot.slane %v999, 5
      %v1129 = vsel %vm457, %v1127, %v1128
      %v1130 = vrot.slane %v1128, 4
      %v1131 = vrot.slane %v1000, 5
      %v1132 = vsel %vm457, %v1130, %v1131
      %v1133 = vrot.slane %v1001, 5
      %v1134 = vrot.slane %v1133, 4
      %v1135 = vrot.slane %v1002, 5
      %v1136 = vsel %vm457, %v1134, %v1135
      %v1137 = vrot.slane %v1135, 4
      %v1138 = vrot.slane %v1003, 5
      %v1139 = vsel %vm457, %v1137, %v1138
      %v1140 = vrot.slane %v1004, 5
      %v1141 = vrot.slane %v1140, 4
      %v1142 = vrot.slane %v1005, 5
      %v1143 = vsel %vm457, %v1141, %v1142
      %v1144 = vrot.slane %v1142, 4
      %v1145 = vrot.slane %v1006, 5
      %v1146 = vsel %vm457, %v1144, %v1145
      %v1147 = vrot.slane %v1007, 5
      %v1148 = vrot.slane %v1147, 4
      %v1149 = vrot.slane %v1008, 5
      %v1150 = vsel %vm457, %v1148, %v1149
      %v1151 = vrot.slane %v1149, 4
      %v1152 = vrot.slane %v1009, 5
      %v1153 = vsel %vm457, %v1151, %v1152
      %v1154 = vrot.slane %v1010, 5
      %v1155 = vrot.slane %v1154, 4
      %v1156 = vrot.slane %v1011, 5
      %v1157 = vsel %vm457, %v1155, %v1156
      %v1158 = vrot.slane %v1156, 4
      %v1159 = vrot.slane %v1012, 5
      %v1160 = vsel %vm457, %v1158, %v1159
      %v1161 = vrot.slane %v1013, 5
      %v1162 = vrot.slane %v1161, 4
      %v1163 = vrot.slane %v1014, 5
      %v1164 = vsel %vm457, %v1162, %v1163
      %v1165 = vrot.slane %v1163, 4
      %v1166 = vrot.slane %v1015, 5
      %v1167 = vsel %vm457, %v1165, %v1166
      %v1168 = vrot.slane %v1016, 5
      %v1169 = vrot.slane %v1168, 4
      %v1170 = vrot.slane %v1017, 5
      %v1171 = vsel %vm457, %v1169, %v1170
      %v1172 = vrot.slane %v1170, 4
      %v1173 = vrot.slane %v1018, 5
      %v1174 = vsel %vm457, %v1172, %v1173
      %v1175 = vrot.slane %v1019, 5
      %v1176 = vrot.slane %v1175, 4
      %v1177 = vrot.slane %v1020, 5
      %v1178 = vsel %vm457, %v1176, %v1177
      %v1179 = vrot.slane %v1177, 4
      %v1180 = vrot.slane %v1021, 5
      %v1181 = vsel %vm457, %v1179, %v1180
      %1214 = vst [vmem:[#allocation2 + $0x10] sm:$0xf] %v1073
      %1215 = vst [vmem:[#allocation2 + $0x34] sm:$0xf] %v1076
      %1216 = vst [vmem:[#allocation2 + $0x58] sm:$0xf] %v1080
      %1217 = vst [vmem:[#allocation2 + $0x7c] sm:$0xf] %v1083
      %1218 = vst [vmem:[#allocation2 + $0xa0] sm:$0xf] %v1087
      %1219 = vst [vmem:[#allocation2 + $0xc4] sm:$0xf] %v1090
      %1220 = vst [vmem:[#allocation2 + $0xe8] sm:$0xf] %v1094
      %1221 = vst [vmem:[#allocation2 + $0x10c] sm:$0xf] %v1097
      %1222 = vst [vmem:[#allocation2 + $0x130] sm:$0xf] %v1101
      %1223 = vst [vmem:[#allocation2 + $0x154] sm:$0xf] %v1104
      %1224 = vst [vmem:[#allocation2 + $0x178] sm:$0xf] %v1108
      %1225 = vst [vmem:[#allocation2 + $0x19c] sm:$0xf] %v1111
      %1226 = vst [vmem:[#allocation2 + $0x1c0] sm:$0xf] %v1115
      %1227 = vst [vmem:[#allocation2 + $0x1e4] sm:$0xf] %v1118
      %1228 = vst [vmem:[#allocation2 + $0x208] sm:$0xf] %v1122
      %1229 = vst [vmem:[#allocation2 + $0x22c] sm:$0xf] %v1125
      %1230 = vst [vmem:[#allocation2 + $0x250] sm:$0xf] %v1129
      %1231 = vst [vmem:[#allocation2 + $0x274] sm:$0xf] %v1132
      %1232 = vst [vmem:[#allocation2 + $0x298] sm:$0xf] %v1136
      %1233 = vst [vmem:[#allocation2 + $0x2bc] sm:$0xf] %v1139
      %1234 = vst [vmem:[#allocation2 + $0x2e0] sm:$0xf] %v1143
      %1235 = vst [vmem:[#allocation2 + $0x304] sm:$0xf] %v1146
      %1236 = vst [vmem:[#allocation2 + $0x328] sm:$0xf] %v1150
      %1237 = vst [vmem:[#allocation2 + $0x34c] sm:$0xf] %v1153
      %1238 = vst [vmem:[#allocation2 + $0x370] sm:$0xf] %v1157
      %1239 = vst [vmem:[#allocation2 + $0x394] sm:$0xf] %v1160
      %1240 = vst [vmem:[#allocation2 + $0x3b8] sm:$0xf] %v1164
      %1241 = vst [vmem:[#allocation2 + $0x3dc] sm:$0xf] %v1167
      %1242 = vst [vmem:[#allocation2 + $0x400] sm:$0xf] %v1171
      %1243 = vst [vmem:[#allocation2 + $0x424] sm:$0xf] %v1174
      %1244 = vst [vmem:[#allocation2 + $0x448] sm:$0xf] %v1178
      %1245 = vst [vmem:[#allocation2 + $0x46c] sm:$0xf] %v1181
      %v1246 = vld [vmem:[%s909] sm:$0xc]
      %v1247 = vld [vmem:[%s909 + $0x4] sm:$0xf]
      %v1248 = vld [vmem:[%s909 + $0x8] sm:$0x3]
      %v1249 = vld [vmem:[%s909 + $0xc] sm:$0xc]
      %v1250 = vld [vmem:[%s909 + $0x10] sm:$0xf]
      %v1251 = vld [vmem:[%s909 + $0x14] sm:$0x3]
      %v1252 = vld [vmem:[%s909 + $0x18] sm:$0xc]
      %v1253 = vld [vmem:[%s909 + $0x1c] sm:$0xf]
      %v1254 = vld [vmem:[%s909 + $0x20] sm:$0x3]
      %v1255 = vld [vmem:[%s909 + $0x24] sm:$0xc]
      %v1256 = vld [vmem:[%s909 + $0x28] sm:$0xf]
      %v1257 = vld [vmem:[%s909 + $0x2c] sm:$0x3]
      %v1258 = vld [vmem:[%s909 + $0x30] sm:$0xc]
      %v1259 = vld [vmem:[%s909 + $0x34] sm:$0xf]
      %v1260 = vld [vmem:[%s909 + $0x38] sm:$0x3]
      %v1261 = vld [vmem:[%s909 + $0x3c] sm:$0xc]
      %v1262 = vld [vmem:[%s909 + $0x40] sm:$0xf]
      %v1263 = vld [vmem:[%s909 + $0x44] sm:$0x3]
      %v1264 = vld [vmem:[%s909 + $0x48] sm:$0xc]
      %v1265 = vld [vmem:[%s909 + $0x4c] sm:$0xf]
      %v1266 = vld [vmem:[%s909 + $0x50] sm:$0x3]
      %v1267 = vld [vmem:[%s909 + $0x54] sm:$0xc]
      %v1268 = vld [vmem:[%s909 + $0x58] sm:$0xf]
      %v1269 = vld [vmem:[%s909 + $0x5c] sm:$0x3]
      %v1270 = vld [vmem:[%s909 + $0x60] sm:$0xc]
      %v1271 = vld [vmem:[%s909 + $0x64] sm:$0xf]
      %v1272 = vld [vmem:[%s909 + $0x68] sm:$0x3]
      %v1273 = vld [vmem:[%s909 + $0x6c] sm:$0xc]
      %v1274 = vld [vmem:[%s909 + $0x70] sm:$0xf]
      %v1275 = vld [vmem:[%s909 + $0x74] sm:$0x3]
      %v1276 = vld [vmem:[%s909 + $0x78] sm:$0xc]
      %v1277 = vld [vmem:[%s909 + $0x7c] sm:$0xf]
      %v1278 = vld [vmem:[%s909 + $0x80] sm:$0x3]
      %v1279 = vld [vmem:[%s909 + $0x84] sm:$0xc]
      %v1280 = vld [vmem:[%s909 + $0x88] sm:$0xf]
      %v1281 = vld [vmem:[%s909 + $0x8c] sm:$0x3]
      %v1282 = vld [vmem:[%s909 + $0x90] sm:$0xc]
      %v1283 = vld [vmem:[%s909 + $0x94] sm:$0xf]
      %v1284 = vld [vmem:[%s909 + $0x98] sm:$0x3]
      %v1285 = vld [vmem:[%s909 + $0x9c] sm:$0xc]
      %v1286 = vld [vmem:[%s909 + $0xa0] sm:$0xf]
      %v1287 = vld [vmem:[%s909 + $0xa4] sm:$0x3]
      %v1288 = vld [vmem:[%s909 + $0xa8] sm:$0xc]
      %v1289 = vld [vmem:[%s909 + $0xac] sm:$0xf]
      %v1290 = vld [vmem:[%s909 + $0xb0] sm:$0x3]
      %v1291 = vld [vmem:[%s909 + $0xb4] sm:$0xc]
      %v1292 = vld [vmem:[%s909 + $0xb8] sm:$0xf]
      %v1293 = vld [vmem:[%s909 + $0xbc] sm:$0x3]
      %v1342 = vrot.slane %v1246, 6
      %v1343 = vrot.slane %v1342, 4
      %v1344 = vrot.slane %v1247, 6
      %v1345 = vsel %vm732, %v1343, %v1344
      %v1346 = vrot.slane %v1344, 4
      %v1347 = vrot.slane %v1248, 6
      %v1348 = vsel %vm732, %v1346, %v1347
      %v1349 = vrot.slane %v1249, 6
      %v1350 = vrot.slane %v1349, 4
      %v1351 = vrot.slane %v1250, 6
      %v1352 = vsel %vm732, %v1350, %v1351
      %v1353 = vrot.slane %v1351, 4
      %v1354 = vrot.slane %v1251, 6
      %v1355 = vsel %vm732, %v1353, %v1354
      %v1356 = vrot.slane %v1252, 6
      %v1357 = vrot.slane %v1356, 4
      %v1358 = vrot.slane %v1253, 6
      %v1359 = vsel %vm732, %v1357, %v1358
      %v1360 = vrot.slane %v1358, 4
      %v1361 = vrot.slane %v1254, 6
      %v1362 = vsel %vm732, %v1360, %v1361
      %v1363 = vrot.slane %v1255, 6
      %v1364 = vrot.slane %v1363, 4
      %v1365 = vrot.slane %v1256, 6
      %v1366 = vsel %vm732, %v1364, %v1365
      %v1367 = vrot.slane %v1365, 4
      %v1368 = vrot.slane %v1257, 6
      %v1369 = vsel %vm732, %v1367, %v1368
      %v1370 = vrot.slane %v1258, 6
      %v1371 = vrot.slane %v1370, 4
      %v1372 = vrot.slane %v1259, 6
      %v1373 = vsel %vm732, %v1371, %v1372
      %v1374 = vrot.slane %v1372, 4
      %v1375 = vrot.slane %v1260, 6
      %v1376 = vsel %vm732, %v1374, %v1375
      %v1377 = vrot.slane %v1261, 6
      %v1378 = vrot.slane %v1377, 4
      %v1379 = vrot.slane %v1262, 6
      %v1380 = vsel %vm732, %v1378, %v1379
      %v1381 = vrot.slane %v1379, 4
      %v1382 = vrot.slane %v1263, 6
      %v1383 = vsel %vm732, %v1381, %v1382
      %v1384 = vrot.slane %v1264, 6
      %v1385 = vrot.slane %v1384, 4
      %v1386 = vrot.slane %v1265, 6
      %v1387 = vsel %vm732, %v1385, %v1386
      %v1388 = vrot.slane %v1386, 4
      %v1389 = vrot.slane %v1266, 6
      %v1390 = vsel %vm732, %v1388, %v1389
      %v1391 = vrot.slane %v1267, 6
      %v1392 = vrot.slane %v1391, 4
      %v1393 = vrot.slane %v1268, 6
      %v1394 = vsel %vm732, %v1392, %v1393
      %v1395 = vrot.slane %v1393, 4
      %v1396 = vrot.slane %v1269, 6
      %v1397 = vsel %vm732, %v1395, %v1396
      %v1398 = vrot.slane %v1270, 6
      %v1399 = vrot.slane %v1398, 4
      %v1400 = vrot.slane %v1271, 6
      %v1401 = vsel %vm732, %v1399, %v1400
      %v1402 = vrot.slane %v1400, 4
      %v1403 = vrot.slane %v1272, 6
      %v1404 = vsel %vm732, %v1402, %v1403
      %v1405 = vrot.slane %v1273, 6
      %v1406 = vrot.slane %v1405, 4
      %v1407 = vrot.slane %v1274, 6
      %v1408 = vsel %vm732, %v1406, %v1407
      %v1409 = vrot.slane %v1407, 4
      %v1410 = vrot.slane %v1275, 6
      %v1411 = vsel %vm732, %v1409, %v1410
      %v1412 = vrot.slane %v1276, 6
      %v1413 = vrot.slane %v1412, 4
      %v1414 = vrot.slane %v1277, 6
      %v1415 = vsel %vm732, %v1413, %v1414
      %v1416 = vrot.slane %v1414, 4
      %v1417 = vrot.slane %v1278, 6
      %v1418 = vsel %vm732, %v1416, %v1417
      %v1419 = vrot.slane %v1279, 6
      %v1420 = vrot.slane %v1419, 4
      %v1421 = vrot.slane %v1280, 6
      %v1422 = vsel %vm732, %v1420, %v1421
      %v1423 = vrot.slane %v1421, 4
      %v1424 = vrot.slane %v1281, 6
      %v1425 = vsel %vm732, %v1423, %v1424
      %v1426 = vrot.slane %v1282, 6
      %v1427 = vrot.slane %v1426, 4
      %v1428 = vrot.slane %v1283, 6
      %v1429 = vsel %vm732, %v1427, %v1428
      %v1430 = vrot.slane %v1428, 4
      %v1431 = vrot.slane %v1284, 6
      %v1432 = vsel %vm732, %v1430, %v1431
      %v1433 = vrot.slane %v1285, 6
      %v1434 = vrot.slane %v1433, 4
      %v1435 = vrot.slane %v1286, 6
      %v1436 = vsel %vm732, %v1434, %v1435
      %v1437 = vrot.slane %v1435, 4
      %v1438 = vrot.slane %v1287, 6
      %v1439 = vsel %vm732, %v1437, %v1438
      %v1440 = vrot.slane %v1288, 6
      %v1441 = vrot.slane %v1440, 4
      %v1442 = vrot.slane %v1289, 6
      %v1443 = vsel %vm732, %v1441, %v1442
      %v1444 = vrot.slane %v1442, 4
      %v1445 = vrot.slane %v1290, 6
      %v1446 = vsel %vm732, %v1444, %v1445
      %v1447 = vrot.slane %v1291, 6
      %v1448 = vrot.slane %v1447, 4
      %v1449 = vrot.slane %v1292, 6
      %v1450 = vsel %vm732, %v1448, %v1449
      %v1451 = vrot.slane %v1449, 4
      %v1452 = vrot.slane %v1293, 6
      %v1453 = vsel %vm732, %v1451, %v1452
      %1486 = vst [vmem:[#allocation2 + $0x14] sm:$0xf] %v1345
      %1487 = vst [vmem:[#allocation2 + $0x38] sm:$0xf] %v1348
      %1488 = vst [vmem:[#allocation2 + $0x5c] sm:$0xf] %v1352
      %1489 = vst [vmem:[#allocation2 + $0x80] sm:$0xf] %v1355
      %1490 = vst [vmem:[#allocation2 + $0xa4] sm:$0xf] %v1359
      %1491 = vst [vmem:[#allocation2 + $0xc8] sm:$0xf] %v1362
      %1492 = vst [vmem:[#allocation2 + $0xec] sm:$0xf] %v1366
      %1493 = vst [vmem:[#allocation2 + $0x110] sm:$0xf] %v1369
      %1494 = vst [vmem:[#allocation2 + $0x134] sm:$0xf] %v1373
      %1495 = vst [vmem:[#allocation2 + $0x158] sm:$0xf] %v1376
      %1496 = vst [vmem:[#allocation2 + $0x17c] sm:$0xf] %v1380
      %1497 = vst [vmem:[#allocation2 + $0x1a0] sm:$0xf] %v1383
      %1498 = vst [vmem:[#allocation2 + $0x1c4] sm:$0xf] %v1387
      %1499 = vst [vmem:[#allocation2 + $0x1e8] sm:$0xf] %v1390
      %1500 = vst [vmem:[#allocation2 + $0x20c] sm:$0xf] %v1394
      %1501 = vst [vmem:[#allocation2 + $0x230] sm:$0xf] %v1397
      %1502 = vst [vmem:[#allocation2 + $0x254] sm:$0xf] %v1401
      %1503 = vst [vmem:[#allocation2 + $0x278] sm:$0xf] %v1404
      %1504 = vst [vmem:[#allocation2 + $0x29c] sm:$0xf] %v1408
      %1505 = vst [vmem:[#allocation2 + $0x2c0] sm:$0xf] %v1411
      %1506 = vst [vmem:[#allocation2 + $0x2e4] sm:$0xf] %v1415
      %1507 = vst [vmem:[#allocation2 + $0x308] sm:$0xf] %v1418
      %1508 = vst [vmem:[#allocation2 + $0x32c] sm:$0xf] %v1422
      %1509 = vst [vmem:[#allocation2 + $0x350] sm:$0xf] %v1425
      %1510 = vst [vmem:[#allocation2 + $0x374] sm:$0xf] %v1429
      %1511 = vst [vmem:[#allocation2 + $0x398] sm:$0xf] %v1432
      %1512 = vst [vmem:[#allocation2 + $0x3bc] sm:$0xf] %v1436
      %1513 = vst [vmem:[#allocation2 + $0x3e0] sm:$0xf] %v1439
      %1514 = vst [vmem:[#allocation2 + $0x404] sm:$0xf] %v1443
      %1515 = vst [vmem:[#allocation2 + $0x428] sm:$0xf] %v1446
      %1516 = vst [vmem:[#allocation2 + $0x44c] sm:$0xf] %v1450
      %1517 = vst [vmem:[#allocation2 + $0x470] sm:$0xf] %v1453
      %s1518 = scalar_lea.vmem %s272, 48
      %v1519 = vld [vmem:[%s1518] sm:$0xf]
      %v1520 = vld [vmem:[%s1518 + $0x4] sm:$0xf]
      %v1521 = vld [vmem:[%s1518 + $0xc] sm:$0xf]
      %v1522 = vld [vmem:[%s1518 + $0x10] sm:$0xf]
      %v1523 = vld [vmem:[%s1518 + $0x18] sm:$0xf]
      %v1524 = vld [vmem:[%s1518 + $0x1c] sm:$0xf]
      %v1525 = vld [vmem:[%s1518 + $0x24] sm:$0xf]
      %v1526 = vld [vmem:[%s1518 + $0x28] sm:$0xf]
      %v1527 = vld [vmem:[%s1518 + $0x30] sm:$0xf]
      %v1528 = vld [vmem:[%s1518 + $0x34] sm:$0xf]
      %v1529 = vld [vmem:[%s1518 + $0x3c] sm:$0xf]
      %v1530 = vld [vmem:[%s1518 + $0x40] sm:$0xf]
      %v1531 = vld [vmem:[%s1518 + $0x48] sm:$0xf]
      %v1532 = vld [vmem:[%s1518 + $0x4c] sm:$0xf]
      %v1533 = vld [vmem:[%s1518 + $0x54] sm:$0xf]
      %v1534 = vld [vmem:[%s1518 + $0x58] sm:$0xf]
      %v1535 = vld [vmem:[%s1518 + $0x60] sm:$0xf]
      %v1536 = vld [vmem:[%s1518 + $0x64] sm:$0xf]
      %v1537 = vld [vmem:[%s1518 + $0x6c] sm:$0xf]
      %v1538 = vld [vmem:[%s1518 + $0x70] sm:$0xf]
      %v1539 = vld [vmem:[%s1518 + $0x78] sm:$0xf]
      %v1540 = vld [vmem:[%s1518 + $0x7c] sm:$0xf]
      %v1541 = vld [vmem:[%s1518 + $0x84] sm:$0xf]
      %v1542 = vld [vmem:[%s1518 + $0x88] sm:$0xf]
      %v1543 = vld [vmem:[%s1518 + $0x90] sm:$0xf]
      %v1544 = vld [vmem:[%s1518 + $0x94] sm:$0xf]
      %v1545 = vld [vmem:[%s1518 + $0x9c] sm:$0xf]
      %v1546 = vld [vmem:[%s1518 + $0xa0] sm:$0xf]
      %v1547 = vld [vmem:[%s1518 + $0xa8] sm:$0xf]
      %v1548 = vld [vmem:[%s1518 + $0xac] sm:$0xf]
      %v1549 = vld [vmem:[%s1518 + $0xb4] sm:$0xf]
      %v1550 = vld [vmem:[%s1518 + $0xb8] sm:$0xf]
      %1551 = vst [vmem:[#allocation2 + $0x18] sm:$0xf] %v1519
      %1552 = vst [vmem:[#allocation2 + $0x3c] sm:$0xf] %v1520
      %1553 = vst [vmem:[#allocation2 + $0x60] sm:$0xf] %v1521
      %1554 = vst [vmem:[#allocation2 + $0x84] sm:$0xf] %v1522
      %1555 = vst [vmem:[#allocation2 + $0xa8] sm:$0xf] %v1523
      %1556 = vst [vmem:[#allocation2 + $0xcc] sm:$0xf] %v1524
      %1557 = vst [vmem:[#allocation2 + $0xf0] sm:$0xf] %v1525
      %1558 = vst [vmem:[#allocation2 + $0x114] sm:$0xf] %v1526
      %1559 = vst [vmem:[#allocation2 + $0x138] sm:$0xf] %v1527
      %1560 = vst [vmem:[#allocation2 + $0x15c] sm:$0xf] %v1528
      %1561 = vst [vmem:[#allocation2 + $0x180] sm:$0xf] %v1529
      %1562 = vst [vmem:[#allocation2 + $0x1a4] sm:$0xf] %v1530
      %1563 = vst [vmem:[#allocation2 + $0x1c8] sm:$0xf] %v1531
      %1564 = vst [vmem:[#allocation2 + $0x1ec] sm:$0xf] %v1532
      %1565 = vst [vmem:[#allocation2 + $0x210] sm:$0xf] %v1533
      %1566 = vst [vmem:[#allocation2 + $0x234] sm:$0xf] %v1534
      %1567 = vst [vmem:[#allocation2 + $0x258] sm:$0xf] %v1535
      %1568 = vst [vmem:[#allocation2 + $0x27c] sm:$0xf] %v1536
      %1569 = vst [vmem:[#allocation2 + $0x2a0] sm:$0xf] %v1537
      %1570 = vst [vmem:[#allocation2 + $0x2c4] sm:$0xf] %v1538
      %1571 = vst [vmem:[#allocation2 + $0x2e8] sm:$0xf] %v1539
      %1572 = vst [vmem:[#allocation2 + $0x30c] sm:$0xf] %v1540
      %1573 = vst [vmem:[#allocation2 + $0x330] sm:$0xf] %v1541
      %1574 = vst [vmem:[#allocation2 + $0x354] sm:$0xf] %v1542
      %1575 = vst [vmem:[#allocation2 + $0x378] sm:$0xf] %v1543
      %1576 = vst [vmem:[#allocation2 + $0x39c] sm:$0xf] %v1544
      %1577 = vst [vmem:[#allocation2 + $0x3c0] sm:$0xf] %v1545
      %1578 = vst [vmem:[#allocation2 + $0x3e4] sm:$0xf] %v1546
      %1579 = vst [vmem:[#allocation2 + $0x408] sm:$0xf] %v1547
      %1580 = vst [vmem:[#allocation2 + $0x42c] sm:$0xf] %v1548
      %1581 = vst [vmem:[#allocation2 + $0x450] sm:$0xf] %v1549
      %1582 = vst [vmem:[#allocation2 + $0x474] sm:$0xf] %v1550
      %v1583 = vld [vmem:[%s1518] sm:$0xe]
      %v1584 = vld [vmem:[%s1518 + $0x4] sm:$0xf]
      %v1585 = vld [vmem:[%s1518 + $0x8] sm:$0x1]
      %v1586 = vld [vmem:[%s1518 + $0xc] sm:$0xe]
      %v1587 = vld [vmem:[%s1518 + $0x10] sm:$0xf]
      %v1588 = vld [vmem:[%s1518 + $0x14] sm:$0x1]
      %v1589 = vld [vmem:[%s1518 + $0x18] sm:$0xe]
      %v1590 = vld [vmem:[%s1518 + $0x1c] sm:$0xf]
      %v1591 = vld [vmem:[%s1518 + $0x20] sm:$0x1]
      %v1592 = vld [vmem:[%s1518 + $0x24] sm:$0xe]
      %v1593 = vld [vmem:[%s1518 + $0x28] sm:$0xf]
      %v1594 = vld [vmem:[%s1518 + $0x2c] sm:$0x1]
      %v1595 = vld [vmem:[%s1518 + $0x30] sm:$0xe]
      %v1596 = vld [vmem:[%s1518 + $0x34] sm:$0xf]
      %v1597 = vld [vmem:[%s1518 + $0x38] sm:$0x1]
      %v1598 = vld [vmem:[%s1518 + $0x3c] sm:$0xe]
      %v1599 = vld [vmem:[%s1518 + $0x40] sm:$0xf]
      %v1600 = vld [vmem:[%s1518 + $0x44] sm:$0x1]
      %v1601 = vld [vmem:[%s1518 + $0x48] sm:$0xe]
      %v1602 = vld [vmem:[%s1518 + $0x4c] sm:$0xf]
      %v1603 = vld [vmem:[%s1518 + $0x50] sm:$0x1]
      %v1604 = vld [vmem:[%s1518 + $0x54] sm:$0xe]
      %v1605 = vld [vmem:[%s1518 + $0x58] sm:$0xf]
      %v1606 = vld [vmem:[%s1518 + $0x5c] sm:$0x1]
      %v1607 = vld [vmem:[%s1518 + $0x60] sm:$0xe]
      %v1608 = vld [vmem:[%s1518 + $0x64] sm:$0xf]
      %v1609 = vld [vmem:[%s1518 + $0x68] sm:$0x1]
      %v1610 = vld [vmem:[%s1518 + $0x6c] sm:$0xe]
      %v1611 = vld [vmem:[%s1518 + $0x70] sm:$0xf]
      %v1612 = vld [vmem:[%s1518 + $0x74] sm:$0x1]
      %v1613 = vld [vmem:[%s1518 + $0x78] sm:$0xe]
      %v1614 = vld [vmem:[%s1518 + $0x7c] sm:$0xf]
      %v1615 = vld [vmem:[%s1518 + $0x80] sm:$0x1]
      %v1616 = vld [vmem:[%s1518 + $0x84] sm:$0xe]
      %v1617 = vld [vmem:[%s1518 + $0x88] sm:$0xf]
      %v1618 = vld [vmem:[%s1518 + $0x8c] sm:$0x1]
      %v1619 = vld [vmem:[%s1518 + $0x90] sm:$0xe]
      %v1620 = vld [vmem:[%s1518 + $0x94] sm:$0xf]
      %v1621 = vld [vmem:[%s1518 + $0x98] sm:$0x1]
      %v1622 = vld [vmem:[%s1518 + $0x9c] sm:$0xe]
      %v1623 = vld [vmem:[%s1518 + $0xa0] sm:$0xf]
      %v1624 = vld [vmem:[%s1518 + $0xa4] sm:$0x1]
      %v1625 = vld [vmem:[%s1518 + $0xa8] sm:$0xe]
      %v1626 = vld [vmem:[%s1518 + $0xac] sm:$0xf]
      %v1627 = vld [vmem:[%s1518 + $0xb0] sm:$0x1]
      %v1628 = vld [vmem:[%s1518 + $0xb4] sm:$0xe]
      %v1629 = vld [vmem:[%s1518 + $0xb8] sm:$0xf]
      %v1630 = vld [vmem:[%s1518 + $0xbc] sm:$0x1]
      %v1679 = vrot.slane %v1583, 5
      %v1680 = vrot.slane %v1679, 4
      %v1681 = vrot.slane %v1584, 5
      %v1682 = vsel %vm457, %v1680, %v1681
      %v1683 = vrot.slane %v1681, 4
      %v1684 = vrot.slane %v1585, 5
      %v1685 = vsel %vm457, %v1683, %v1684
      %v1686 = vrot.slane %v1586, 5
      %v1687 = vrot.slane %v1686, 4
      %v1688 = vrot.slane %v1587, 5
      %v1689 = vsel %vm457, %v1687, %v1688
      %v1690 = vrot.slane %v1688, 4
      %v1691 = vrot.slane %v1588, 5
      %v1692 = vsel %vm457, %v1690, %v1691
      %v1693 = vrot.slane %v1589, 5
      %v1694 = vrot.slane %v1693, 4
      %v1695 = vrot.slane %v1590, 5
      %v1696 = vsel %vm457, %v1694, %v1695
      %v1697 = vrot.slane %v1695, 4
      %v1698 = vrot.slane %v1591, 5
      %v1699 = vsel %vm457, %v1697, %v1698
      %v1700 = vrot.slane %v1592, 5
      %v1701 = vrot.slane %v1700, 4
      %v1702 = vrot.slane %v1593, 5
      %v1703 = vsel %vm457, %v1701, %v1702
      %v1704 = vrot.slane %v1702, 4
      %v1705 = vrot.slane %v1594, 5
      %v1706 = vsel %vm457, %v1704, %v1705
      %v1707 = vrot.slane %v1595, 5
      %v1708 = vrot.slane %v1707, 4
      %v1709 = vrot.slane %v1596, 5
      %v1710 = vsel %vm457, %v1708, %v1709
      %v1711 = vrot.slane %v1709, 4
      %v1712 = vrot.slane %v1597, 5
      %v1713 = vsel %vm457, %v1711, %v1712
      %v1714 = vrot.slane %v1598, 5
      %v1715 = vrot.slane %v1714, 4
      %v1716 = vrot.slane %v1599, 5
      %v1717 = vsel %vm457, %v1715, %v1716
      %v1718 = vrot.slane %v1716, 4
      %v1719 = vrot.slane %v1600, 5
      %v1720 = vsel %vm457, %v1718, %v1719
      %v1721 = vrot.slane %v1601, 5
      %v1722 = vrot.slane %v1721, 4
      %v1723 = vrot.slane %v1602, 5
      %v1724 = vsel %vm457, %v1722, %v1723
      %v1725 = vrot.slane %v1723, 4
      %v1726 = vrot.slane %v1603, 5
      %v1727 = vsel %vm457, %v1725, %v1726
      %v1728 = vrot.slane %v1604, 5
      %v1729 = vrot.slane %v1728, 4
      %v1730 = vrot.slane %v1605, 5
      %v1731 = vsel %vm457, %v1729, %v1730
      %v1732 = vrot.slane %v1730, 4
      %v1733 = vrot.slane %v1606, 5
      %v1734 = vsel %vm457, %v1732, %v1733
      %v1735 = vrot.slane %v1607, 5
      %v1736 = vrot.slane %v1735, 4
      %v1737 = vrot.slane %v1608, 5
      %v1738 = vsel %vm457, %v1736, %v1737
      %v1739 = vrot.slane %v1737, 4
      %v1740 = vrot.slane %v1609, 5
      %v1741 = vsel %vm457, %v1739, %v1740
      %v1742 = vrot.slane %v1610, 5
      %v1743 = vrot.slane %v1742, 4
      %v1744 = vrot.slane %v1611, 5
      %v1745 = vsel %vm457, %v1743, %v1744
      %v1746 = vrot.slane %v1744, 4
      %v1747 = vrot.slane %v1612, 5
      %v1748 = vsel %vm457, %v1746, %v1747
      %v1749 = vrot.slane %v1613, 5
      %v1750 = vrot.slane %v1749, 4
      %v1751 = vrot.slane %v1614, 5
      %v1752 = vsel %vm457, %v1750, %v1751
      %v1753 = vrot.slane %v1751, 4
      %v1754 = vrot.slane %v1615, 5
      %v1755 = vsel %vm457, %v1753, %v1754
      %v1756 = vrot.slane %v1616, 5
      %v1757 = vrot.slane %v1756, 4
      %v1758 = vrot.slane %v1617, 5
      %v1759 = vsel %vm457, %v1757, %v1758
      %v1760 = vrot.slane %v1758, 4
      %v1761 = vrot.slane %v1618, 5
      %v1762 = vsel %vm457, %v1760, %v1761
      %v1763 = vrot.slane %v1619, 5
      %v1764 = vrot.slane %v1763, 4
      %v1765 = vrot.slane %v1620, 5
      %v1766 = vsel %vm457, %v1764, %v1765
      %v1767 = vrot.slane %v1765, 4
      %v1768 = vrot.slane %v1621, 5
      %v1769 = vsel %vm457, %v1767, %v1768
      %v1770 = vrot.slane %v1622, 5
      %v1771 = vrot.slane %v1770, 4
      %v1772 = vrot.slane %v1623, 5
      %v1773 = vsel %vm457, %v1771, %v1772
      %v1774 = vrot.slane %v1772, 4
      %v1775 = vrot.slane %v1624, 5
      %v1776 = vsel %vm457, %v1774, %v1775
      %v1777 = vrot.slane %v1625, 5
      %v1778 = vrot.slane %v1777, 4
      %v1779 = vrot.slane %v1626, 5
      %v1780 = vsel %vm457, %v1778, %v1779
      %v1781 = vrot.slane %v1779, 4
      %v1782 = vrot.slane %v1627, 5
      %v1783 = vsel %vm457, %v1781, %v1782
      %v1784 = vrot.slane %v1628, 5
      %v1785 = vrot.slane %v1784, 4
      %v1786 = vrot.slane %v1629, 5
      %v1787 = vsel %vm457, %v1785, %v1786
      %v1788 = vrot.slane %v1786, 4
      %v1789 = vrot.slane %v1630, 5
      %v1790 = vsel %vm457, %v1788, %v1789
      %1823 = vst [vmem:[#allocation2 + $0x1c] sm:$0xf] %v1682
      %1824 = vst [vmem:[#allocation2 + $0x40] sm:$0xf] %v1685
      %1825 = vst [vmem:[#allocation2 + $0x64] sm:$0xf] %v1689
      %1826 = vst [vmem:[#allocation2 + $0x88] sm:$0xf] %v1692
      %1827 = vst [vmem:[#allocation2 + $0xac] sm:$0xf] %v1696
      %1828 = vst [vmem:[#allocation2 + $0xd0] sm:$0xf] %v1699
      %1829 = vst [vmem:[#allocation2 + $0xf4] sm:$0xf] %v1703
      %1830 = vst [vmem:[#allocation2 + $0x118] sm:$0xf] %v1706
      %1831 = vst [vmem:[#allocation2 + $0x13c] sm:$0xf] %v1710
      %1832 = vst [vmem:[#allocation2 + $0x160] sm:$0xf] %v1713
      %1833 = vst [vmem:[#allocation2 + $0x184] sm:$0xf] %v1717
      %1834 = vst [vmem:[#allocation2 + $0x1a8] sm:$0xf] %v1720
      %1835 = vst [vmem:[#allocation2 + $0x1cc] sm:$0xf] %v1724
      %1836 = vst [vmem:[#allocation2 + $0x1f0] sm:$0xf] %v1727
      %1837 = vst [vmem:[#allocation2 + $0x214] sm:$0xf] %v1731
      %1838 = vst [vmem:[#allocation2 + $0x238] sm:$0xf] %v1734
      %1839 = vst [vmem:[#allocation2 + $0x25c] sm:$0xf] %v1738
      %1840 = vst [vmem:[#allocation2 + $0x280] sm:$0xf] %v1741
      %1841 = vst [vmem:[#allocation2 + $0x2a4] sm:$0xf] %v1745
      %1842 = vst [vmem:[#allocation2 + $0x2c8] sm:$0xf] %v1748
      %1843 = vst [vmem:[#allocation2 + $0x2ec] sm:$0xf] %v1752
      %1844 = vst [vmem:[#allocation2 + $0x310] sm:$0xf] %v1755
      %1845 = vst [vmem:[#allocation2 + $0x334] sm:$0xf] %v1759
      %1846 = vst [vmem:[#allocation2 + $0x358] sm:$0xf] %v1762
      %1847 = vst [vmem:[#allocation2 + $0x37c] sm:$0xf] %v1766
      %1848 = vst [vmem:[#allocation2 + $0x3a0] sm:$0xf] %v1769
      %1849 = vst [vmem:[#allocation2 + $0x3c4] sm:$0xf] %v1773
      %1850 = vst [vmem:[#allocation2 + $0x3e8] sm:$0xf] %v1776
      %1851 = vst [vmem:[#allocation2 + $0x40c] sm:$0xf] %v1780
      %1852 = vst [vmem:[#allocation2 + $0x430] sm:$0xf] %v1783
      %1853 = vst [vmem:[#allocation2 + $0x454] sm:$0xf] %v1787
      %1854 = vst [vmem:[#allocation2 + $0x478] sm:$0xf] %v1790
      %v1855 = vld [vmem:[%s1518] sm:$0xc]
      %v1856 = vld [vmem:[%s1518 + $0x4] sm:$0xf]
      %v1857 = vld [vmem:[%s1518 + $0x8] sm:$0x3]
      %v1858 = vld [vmem:[%s1518 + $0xc] sm:$0xc]
      %v1859 = vld [vmem:[%s1518 + $0x10] sm:$0xf]
      %v1860 = vld [vmem:[%s1518 + $0x14] sm:$0x3]
      %v1861 = vld [vmem:[%s1518 + $0x18] sm:$0xc]
      %v1862 = vld [vmem:[%s1518 + $0x1c] sm:$0xf]
      %v1863 = vld [vmem:[%s1518 + $0x20] sm:$0x3]
      %v1864 = vld [vmem:[%s1518 + $0x24] sm:$0xc]
      %v1865 = vld [vmem:[%s1518 + $0x28] sm:$0xf]
      %v1866 = vld [vmem:[%s1518 + $0x2c] sm:$0x3]
      %v1867 = vld [vmem:[%s1518 + $0x30] sm:$0xc]
      %v1868 = vld [vmem:[%s1518 + $0x34] sm:$0xf]
      %v1869 = vld [vmem:[%s1518 + $0x38] sm:$0x3]
      %v1870 = vld [vmem:[%s1518 + $0x3c] sm:$0xc]
      %v1871 = vld [vmem:[%s1518 + $0x40] sm:$0xf]
      %v1872 = vld [vmem:[%s1518 + $0x44] sm:$0x3]
      %v1873 = vld [vmem:[%s1518 + $0x48] sm:$0xc]
      %v1874 = vld [vmem:[%s1518 + $0x4c] sm:$0xf]
      %v1875 = vld [vmem:[%s1518 + $0x50] sm:$0x3]
      %v1876 = vld [vmem:[%s1518 + $0x54] sm:$0xc]
      %v1877 = vld [vmem:[%s1518 + $0x58] sm:$0xf]
      %v1878 = vld [vmem:[%s1518 + $0x5c] sm:$0x3]
      %v1879 = vld [vmem:[%s1518 + $0x60] sm:$0xc]
      %v1880 = vld [vmem:[%s1518 + $0x64] sm:$0xf]
      %v1881 = vld [vmem:[%s1518 + $0x68] sm:$0x3]
      %v1882 = vld [vmem:[%s1518 + $0x6c] sm:$0xc]
      %v1883 = vld [vmem:[%s1518 + $0x70] sm:$0xf]
      %v1884 = vld [vmem:[%s1518 + $0x74] sm:$0x3]
      %v1885 = vld [vmem:[%s1518 + $0x78] sm:$0xc]
      %v1886 = vld [vmem:[%s1518 + $0x7c] sm:$0xf]
      %v1887 = vld [vmem:[%s1518 + $0x80] sm:$0x3]
      %v1888 = vld [vmem:[%s1518 + $0x84] sm:$0xc]
      %v1889 = vld [vmem:[%s1518 + $0x88] sm:$0xf]
      %v1890 = vld [vmem:[%s1518 + $0x8c] sm:$0x3]
      %v1891 = vld [vmem:[%s1518 + $0x90] sm:$0xc]
      %v1892 = vld [vmem:[%s1518 + $0x94] sm:$0xf]
      %v1893 = vld [vmem:[%s1518 + $0x98] sm:$0x3]
      %v1894 = vld [vmem:[%s1518 + $0x9c] sm:$0xc]
      %v1895 = vld [vmem:[%s1518 + $0xa0] sm:$0xf]
      %v1896 = vld [vmem:[%s1518 + $0xa4] sm:$0x3]
      %v1897 = vld [vmem:[%s1518 + $0xa8] sm:$0xc]
      %v1898 = vld [vmem:[%s1518 + $0xac] sm:$0xf]
      %v1899 = vld [vmem:[%s1518 + $0xb0] sm:$0x3]
      %v1900 = vld [vmem:[%s1518 + $0xb4] sm:$0xc]
      %v1901 = vld [vmem:[%s1518 + $0xb8] sm:$0xf]
      %v1902 = vld [vmem:[%s1518 + $0xbc] sm:$0x3]
      %v1951 = vrot.slane %v1855, 6
      %v1952 = vrot.slane %v1951, 4
      %v1953 = vrot.slane %v1856, 6
      %v1954 = vsel %vm732, %v1952, %v1953
      %v1955 = vrot.slane %v1953, 4
      %v1956 = vrot.slane %v1857, 6
      %v1957 = vsel %vm732, %v1955, %v1956
      %v1958 = vrot.slane %v1858, 6
      %v1959 = vrot.slane %v1958, 4
      %v1960 = vrot.slane %v1859, 6
      %v1961 = vsel %vm732, %v1959, %v1960
      %v1962 = vrot.slane %v1960, 4
      %v1963 = vrot.slane %v1860, 6
      %v1964 = vsel %vm732, %v1962, %v1963
      %v1965 = vrot.slane %v1861, 6
      %v1966 = vrot.slane %v1965, 4
      %v1967 = vrot.slane %v1862, 6
      %v1968 = vsel %vm732, %v1966, %v1967
      %v1969 = vrot.slane %v1967, 4
      %v1970 = vrot.slane %v1863, 6
      %v1971 = vsel %vm732, %v1969, %v1970
      %v1972 = vrot.slane %v1864, 6
      %v1973 = vrot.slane %v1972, 4
      %v1974 = vrot.slane %v1865, 6
      %v1975 = vsel %vm732, %v1973, %v1974
      %v1976 = vrot.slane %v1974, 4
      %v1977 = vrot.slane %v1866, 6
      %v1978 = vsel %vm732, %v1976, %v1977
      %v1979 = vrot.slane %v1867, 6
      %v1980 = vrot.slane %v1979, 4
      %v1981 = vrot.slane %v1868, 6
      %v1982 = vsel %vm732, %v1980, %v1981
      %v1983 = vrot.slane %v1981, 4
      %v1984 = vrot.slane %v1869, 6
      %v1985 = vsel %vm732, %v1983, %v1984
      %v1986 = vrot.slane %v1870, 6
      %v1987 = vrot.slane %v1986, 4
      %v1988 = vrot.slane %v1871, 6
      %v1989 = vsel %vm732, %v1987, %v1988
      %v1990 = vrot.slane %v1988, 4
      %v1991 = vrot.slane %v1872, 6
      %v1992 = vsel %vm732, %v1990, %v1991
      %v1993 = vrot.slane %v1873, 6
      %v1994 = vrot.slane %v1993, 4
      %v1995 = vrot.slane %v1874, 6
      %v1996 = vsel %vm732, %v1994, %v1995
      %v1997 = vrot.slane %v1995, 4
      %v1998 = vrot.slane %v1875, 6
      %v1999 = vsel %vm732, %v1997, %v1998
      %v2000 = vrot.slane %v1876, 6
      %v2001 = vrot.slane %v2000, 4
      %v2002 = vrot.slane %v1877, 6
      %v2003 = vsel %vm732, %v2001, %v2002
      %v2004 = vrot.slane %v2002, 4
      %v2005 = vrot.slane %v1878, 6
      %v2006 = vsel %vm732, %v2004, %v2005
      %v2007 = vrot.slane %v1879, 6
      %v2008 = vrot.slane %v2007, 4
      %v2009 = vrot.slane %v1880, 6
      %v2010 = vsel %vm732, %v2008, %v2009
      %v2011 = vrot.slane %v2009, 4
      %v2012 = vrot.slane %v1881, 6
      %v2013 = vsel %vm732, %v2011, %v2012
      %v2014 = vrot.slane %v1882, 6
      %v2015 = vrot.slane %v2014, 4
      %v2016 = vrot.slane %v1883, 6
      %v2017 = vsel %vm732, %v2015, %v2016
      %v2018 = vrot.slane %v2016, 4
      %v2019 = vrot.slane %v1884, 6
      %v2020 = vsel %vm732, %v2018, %v2019
      %v2021 = vrot.slane %v1885, 6
      %v2022 = vrot.slane %v2021, 4
      %v2023 = vrot.slane %v1886, 6
      %v2024 = vsel %vm732, %v2022, %v2023
      %v2025 = vrot.slane %v2023, 4
      %v2026 = vrot.slane %v1887, 6
      %v2027 = vsel %vm732, %v2025, %v2026
      %v2028 = vrot.slane %v1888, 6
      %v2029 = vrot.slane %v2028, 4
      %v2030 = vrot.slane %v1889, 6
      %v2031 = vsel %vm732, %v2029, %v2030
      %v2032 = vrot.slane %v2030, 4
      %v2033 = vrot.slane %v1890, 6
      %v2034 = vsel %vm732, %v2032, %v2033
      %v2035 = vrot.slane %v1891, 6
      %v2036 = vrot.slane %v2035, 4
      %v2037 = vrot.slane %v1892, 6
      %v2038 = vsel %vm732, %v2036, %v2037
      %v2039 = vrot.slane %v2037, 4
      %v2040 = vrot.slane %v1893, 6
      %v2041 = vsel %vm732, %v2039, %v2040
      %v2042 = vrot.slane %v1894, 6
      %v2043 = vrot.slane %v2042, 4
      %v2044 = vrot.slane %v1895, 6
      %v2045 = vsel %vm732, %v2043, %v2044
      %v2046 = vrot.slane %v2044, 4
      %v2047 = vrot.slane %v1896, 6
      %v2048 = vsel %vm732, %v2046, %v2047
      %v2049 = vrot.slane %v1897, 6
      %v2050 = vrot.slane %v2049, 4
      %v2051 = vrot.slane %v1898, 6
      %v2052 = vsel %vm732, %v2050, %v2051
      %v2053 = vrot.slane %v2051, 4
      %v2054 = vrot.slane %v1899, 6
      %v2055 = vsel %vm732, %v2053, %v2054
      %v2056 = vrot.slane %v1900, 6
      %v2057 = vrot.slane %v2056, 4
      %v2058 = vrot.slane %v1901, 6
      %v2059 = vsel %vm732, %v2057, %v2058
      %v2060 = vrot.slane %v2058, 4
      %v2061 = vrot.slane %v1902, 6
      %v2062 = vsel %vm732, %v2060, %v2061
      %2095 = vst [vmem:[#allocation2 + $0x20] sm:$0xf] %v1954
      %2096 = vst [vmem:[#allocation2 + $0x44] sm:$0xf] %v1957
      %2097 = vst [vmem:[#allocation2 + $0x68] sm:$0xf] %v1961
      %2098 = vst [vmem:[#allocation2 + $0x8c] sm:$0xf] %v1964
      %2099 = vst [vmem:[#allocation2 + $0xb0] sm:$0xf] %v1968
      %2100 = vst [vmem:[#allocation2 + $0xd4] sm:$0xf] %v1971
      %2101 = vst [vmem:[#allocation2 + $0xf8] sm:$0xf] %v1975
      %2102 = vst [vmem:[#allocation2 + $0x11c] sm:$0xf] %v1978
      %2103 = vst [vmem:[#allocation2 + $0x140] sm:$0xf] %v1982
      %2104 = vst [vmem:[#allocation2 + $0x164] sm:$0xf] %v1985
      %2105 = vst [vmem:[#allocation2 + $0x188] sm:$0xf] %v1989
      %2106 = vst [vmem:[#allocation2 + $0x1ac] sm:$0xf] %v1992
      %2107 = vst [vmem:[#allocation2 + $0x1d0] sm:$0xf] %v1996
      %2108 = vst [vmem:[#allocation2 + $0x1f4] sm:$0xf] %v1999
      %2109 = vst [vmem:[#allocation2 + $0x218] sm:$0xf] %v2003
      %2110 = vst [vmem:[#allocation2 + $0x23c] sm:$0xf] %v2006
      %2111 = vst [vmem:[#allocation2 + $0x260] sm:$0xf] %v2010
      %2112 = vst [vmem:[#allocation2 + $0x284] sm:$0xf] %v2013
      %2113 = vst [vmem:[#allocation2 + $0x2a8] sm:$0xf] %v2017
      %2114 = vst [vmem:[#allocation2 + $0x2cc] sm:$0xf] %v2020
      %2115 = vst [vmem:[#allocation2 + $0x2f0] sm:$0xf] %v2024
      %2116 = vst [vmem:[#allocation2 + $0x314] sm:$0xf] %v2027
      %2117 = vst [vmem:[#allocation2 + $0x338] sm:$0xf] %v2031
      %2118 = vst [vmem:[#allocation2 + $0x35c] sm:$0xf] %v2034
      %2119 = vst [vmem:[#allocation2 + $0x380] sm:$0xf] %v2038
      %2120 = vst [vmem:[#allocation2 + $0x3a4] sm:$0xf] %v2041
      %2121 = vst [vmem:[#allocation2 + $0x3c8] sm:$0xf] %v2045
      %2122 = vst [vmem:[#allocation2 + $0x3ec] sm:$0xf] %v2048
      %2123 = vst [vmem:[#allocation2 + $0x410] sm:$0xf] %v2052
      %2124 = vst [vmem:[#allocation2 + $0x434] sm:$0xf] %v2055
      %2125 = vst [vmem:[#allocation2 + $0x458] sm:$0xf] %v2059
      %2126 = vst [vmem:[#allocation2 + $0x47c] sm:$0xf] %v2062
      %v2127 = vld [vmem:[#allocation2] sm:$0xff]
      %v2128 = vld [vmem:[#allocation2 + $0x8] sm:$0xff]
      %v2129 = vld [vmem:[#allocation2 + $0x10] sm:$0xff]
      %v2130 = vld [vmem:[#allocation2 + $0x18] sm:$0xff]
      %v2131 = vld [vmem:[#allocation2 + $0x20] sm:$0xf]
      %v2132 = vld [vmem:[#allocation2 + $0x24] sm:$0xff]
      %v2133 = vld [vmem:[#allocation2 + $0x2c] sm:$0xff]
      %v2134 = vld [vmem:[#allocation2 + $0x34] sm:$0xff]
      %v2135 = vld [vmem:[#allocation2 + $0x3c] sm:$0xff]
      %v2136 = vld [vmem:[#allocation2 + $0x44] sm:$0xf]
      %v2137 = vld [vmem:[#allocation2 + $0x48] sm:$0xff]
      %v2138 = vld [vmem:[#allocation2 + $0x50] sm:$0xff]
      %v2139 = vld [vmem:[#allocation2 + $0x58] sm:$0xff]
      %v2140 = vld [vmem:[#allocation2 + $0x60] sm:$0xff]
      %v2141 = vld [vmem:[#allocation2 + $0x68] sm:$0xf]
      %v2142 = vld [vmem:[#allocation2 + $0x6c] sm:$0xff]
      %v2143 = vld [vmem:[#allocation2 + $0x74] sm:$0xff]
      %v2144 = vld [vmem:[#allocation2 + $0x7c] sm:$0xff]
      %v2145 = vld [vmem:[#allocation2 + $0x84] sm:$0xff]
      %v2146 = vld [vmem:[#allocation2 + $0x8c] sm:$0xf]
      %v2147 = vld [vmem:[#allocation2 + $0x90] sm:$0xff]
      %v2148 = vld [vmem:[#allocation2 + $0x98] sm:$0xff]
      %v2149 = vld [vmem:[#allocation2 + $0xa0] sm:$0xff]
      %v2150 = vld [vmem:[#allocation2 + $0xa8] sm:$0xff]
      %v2151 = vld [vmem:[#allocation2 + $0xb0] sm:$0xf]
      %v2152 = vld [vmem:[#allocation2 + $0xb4] sm:$0xff]
      %v2153 = vld [vmem:[#allocation2 + $0xbc] sm:$0xff]
      %v2154 = vld [vmem:[#allocation2 + $0xc4] sm:$0xff]
      %v2155 = vld [vmem:[#allocation2 + $0xcc] sm:$0xff]
      %v2156 = vld [vmem:[#allocation2 + $0xd4] sm:$0xf]
      %v2157 = vld [vmem:[#allocation2 + $0xd8] sm:$0xff]
      %v2158 = vld [vmem:[#allocation2 + $0xe0] sm:$0xff]
      %v2159 = vld [vmem:[#allocation2 + $0xe8] sm:$0xff]
      %v2160 = vld [vmem:[#allocation2 + $0xf0] sm:$0xff]
      %v2161 = vld [vmem:[#allocation2 + $0xf8] sm:$0xf]
      %v2162 = vld [vmem:[#allocation2 + $0xfc] sm:$0xff]
      %v2163 = vld [vmem:[#allocation2 + $0x104] sm:$0xff]
      %v2164 = vld [vmem:[#allocation2 + $0x10c] sm:$0xff]
      %v2165 = vld [vmem:[#allocation2 + $0x114] sm:$0xff]
      %v2166 = vld [vmem:[#allocation2 + $0x11c] sm:$0xf]
      %v2167 = vld [vmem:[#allocation2 + $0x120] sm:$0xff]
      %v2168 = vld [vmem:[#allocation2 + $0x128] sm:$0xff]
      %v2169 = vld [vmem:[#allocation2 + $0x130] sm:$0xff]
      %v2170 = vld [vmem:[#allocation2 + $0x138] sm:$0xff]
      %v2171 = vld [vmem:[#allocation2 + $0x140] sm:$0xf]
      %v2172 = vld [vmem:[#allocation2 + $0x144] sm:$0xff]
      %v2173 = vld [vmem:[#allocation2 + $0x14c] sm:$0xff]
      %v2174 = vld [vmem:[#allocation2 + $0x154] sm:$0xff]
      %v2175 = vld [vmem:[#allocation2 + $0x15c] sm:$0xff]
      %v2176 = vld [vmem:[#allocation2 + $0x164] sm:$0xf]
      %v2177 = vld [vmem:[#allocation2 + $0x168] sm:$0xff]
      %v2178 = vld [vmem:[#allocation2 + $0x170] sm:$0xff]
      %v2179 = vld [vmem:[#allocation2 + $0x178] sm:$0xff]
      %v2180 = vld [vmem:[#allocation2 + $0x180] sm:$0xff]
      %v2181 = vld [vmem:[#allocation2 + $0x188] sm:$0xf]
      %v2182 = vld [vmem:[#allocation2 + $0x18c] sm:$0xff]
      %v2183 = vld [vmem:[#allocation2 + $0x194] sm:$0xff]
      %v2184 = vld [vmem:[#allocation2 + $0x19c] sm:$0xff]
      %v2185 = vld [vmem:[#allocation2 + $0x1a4] sm:$0xff]
      %v2186 = vld [vmem:[#allocation2 + $0x1ac] sm:$0xf]
      %v2187 = vld [vmem:[#allocation2 + $0x1b0] sm:$0xff]
      %v2188 = vld [vmem:[#allocation2 + $0x1b8] sm:$0xff]
      %v2189 = vld [vmem:[#allocation2 + $0x1c0] sm:$0xff]
      %v2190 = vld [vmem:[#allocation2 + $0x1c8] sm:$0xff]
      %v2191 = vld [vmem:[#allocation2 + $0x1d0] sm:$0xf]
      %v2192 = vld [vmem:[#allocation2 + $0x1d4] sm:$0xff]
      %v2193 = vld [vmem:[#allocation2 + $0x1dc] sm:$0xff]
      %v2194 = vld [vmem:[#allocation2 + $0x1e4] sm:$0xff]
      %v2195 = vld [vmem:[#allocation2 + $0x1ec] sm:$0xff]
      %v2196 = vld [vmem:[#allocation2 + $0x1f4] sm:$0xf]
      %v2197 = vld [vmem:[#allocation2 + $0x1f8] sm:$0xff]
      %v2198 = vld [vmem:[#allocation2 + $0x200] sm:$0xff]
      %v2199 = vld [vmem:[#allocation2 + $0x208] sm:$0xff]
      %v2200 = vld [vmem:[#allocation2 + $0x210] sm:$0xff]
      %v2201 = vld [vmem:[#allocation2 + $0x218] sm:$0xf]
      %v2202 = vld [vmem:[#allocation2 + $0x21c] sm:$0xff]
      %v2203 = vld [vmem:[#allocation2 + $0x224] sm:$0xff]
      %v2204 = vld [vmem:[#allocation2 + $0x22c] sm:$0xff]
      %v2205 = vld [vmem:[#allocation2 + $0x234] sm:$0xff]
      %v2206 = vld [vmem:[#allocation2 + $0x23c] sm:$0xf]
      %v2207 = vld [vmem:[#allocation2 + $0x240] sm:$0xff]
      %v2208 = vld [vmem:[#allocation2 + $0x248] sm:$0xff]
      %v2209 = vld [vmem:[#allocation2 + $0x250] sm:$0xff]
      %v2210 = vld [vmem:[#allocation2 + $0x258] sm:$0xff]
      %v2211 = vld [vmem:[#allocation2 + $0x260] sm:$0xf]
      %v2212 = vld [vmem:[#allocation2 + $0x264] sm:$0xff]
      %v2213 = vld [vmem:[#allocation2 + $0x26c] sm:$0xff]
      %v2214 = vld [vmem:[#allocation2 + $0x274] sm:$0xff]
      %v2215 = vld [vmem:[#allocation2 + $0x27c] sm:$0xff]
      %v2216 = vld [vmem:[#allocation2 + $0x284] sm:$0xf]
      %v2217 = vld [vmem:[#allocation2 + $0x288] sm:$0xff]
      %v2218 = vld [vmem:[#allocation2 + $0x290] sm:$0xff]
      %v2219 = vld [vmem:[#allocation2 + $0x298] sm:$0xff]
      %v2220 = vld [vmem:[#allocation2 + $0x2a0] sm:$0xff]
      %v2221 = vld [vmem:[#allocation2 + $0x2a8] sm:$0xf]
      %v2222 = vld [vmem:[#allocation2 + $0x2ac] sm:$0xff]
      %v2223 = vld [vmem:[#allocation2 + $0x2b4] sm:$0xff]
      %v2224 = vld [vmem:[#allocation2 + $0x2bc] sm:$0xff]
      %v2225 = vld [vmem:[#allocation2 + $0x2c4] sm:$0xff]
      %v2226 = vld [vmem:[#allocation2 + $0x2cc] sm:$0xf]
      %v2227 = vld [vmem:[#allocation2 + $0x2d0] sm:$0xff]
      %v2228 = vld [vmem:[#allocation2 + $0x2d8] sm:$0xff]
      %v2229 = vld [vmem:[#allocation2 + $0x2e0] sm:$0xff]
      %v2230 = vld [vmem:[#allocation2 + $0x2e8] sm:$0xff]
      %v2231 = vld [vmem:[#allocation2 + $0x2f0] sm:$0xf]
      %v2232 = vld [vmem:[#allocation2 + $0x2f4] sm:$0xff]
      %v2233 = vld [vmem:[#allocation2 + $0x2fc] sm:$0xff]
      %v2234 = vld [vmem:[#allocation2 + $0x304] sm:$0xff]
      %v2235 = vld [vmem:[#allocation2 + $0x30c] sm:$0xff]
      %v2236 = vld [vmem:[#allocation2 + $0x314] sm:$0xf]
      %v2237 = vld [vmem:[#allocation2 + $0x318] sm:$0xff]
      %v2238 = vld [vmem:[#allocation2 + $0x320] sm:$0xff]
      %v2239 = vld [vmem:[#allocation2 + $0x328] sm:$0xff]
      %v2240 = vld [vmem:[#allocation2 + $0x330] sm:$0xff]
      %v2241 = vld [vmem:[#allocation2 + $0x338] sm:$0xf]
      %v2242 = vld [vmem:[#allocation2 + $0x33c] sm:$0xff]
      %v2243 = vld [vmem:[#allocation2 + $0x344] sm:$0xff]
      %v2244 = vld [vmem:[#allocation2 + $0x34c] sm:$0xff]
      %v2245 = vld [vmem:[#allocation2 + $0x354] sm:$0xff]
      %v2246 = vld [vmem:[#allocation2 + $0x35c] sm:$0xf]
      %v2247 = vld [vmem:[#allocation2 + $0x360] sm:$0xff]
      %v2248 = vld [vmem:[#allocation2 + $0x368] sm:$0xff]
      %v2249 = vld [vmem:[#allocation2 + $0x370] sm:$0xff]
      %v2250 = vld [vmem:[#allocation2 + $0x378] sm:$0xff]
      %v2251 = vld [vmem:[#allocation2 + $0x380] sm:$0xf]
      %v2252 = vld [vmem:[#allocation2 + $0x384] sm:$0xff]
      %v2253 = vld [vmem:[#allocation2 + $0x38c] sm:$0xff]
      %v2254 = vld [vmem:[#allocation2 + $0x394] sm:$0xff]
      %v2255 = vld [vmem:[#allocation2 + $0x39c] sm:$0xff]
      %v2256 = vld [vmem:[#allocation2 + $0x3a4] sm:$0xf]
      %v2257 = vld [vmem:[#allocation2 + $0x3a8] sm:$0xff]
      %v2258 = vld [vmem:[#allocation2 + $0x3b0] sm:$0xff]
      %v2259 = vld [vmem:[#allocation2 + $0x3b8] sm:$0xff]
      %v2260 = vld [vmem:[#allocation2 + $0x3c0] sm:$0xff]
      %v2261 = vld [vmem:[#allocation2 + $0x3c8] sm:$0xf]
      %v2262 = vld [vmem:[#allocation2 + $0x3cc] sm:$0xff]
      %v2263 = vld [vmem:[#allocation2 + $0x3d4] sm:$0xff]
      %v2264 = vld [vmem:[#allocation2 + $0x3dc] sm:$0xff]
      %v2265 = vld [vmem:[#allocation2 + $0x3e4] sm:$0xff]
      %v2266 = vld [vmem:[#allocation2 + $0x3ec] sm:$0xf]
      %v2267 = vld [vmem:[#allocation2 + $0x3f0] sm:$0xff]
      %v2268 = vld [vmem:[#allocation2 + $0x3f8] sm:$0xff]
      %v2269 = vld [vmem:[#allocation2 + $0x400] sm:$0xff]
      %v2270 = vld [vmem:[#allocation2 + $0x408] sm:$0xff]
      %v2271 = vld [vmem:[#allocation2 + $0x410] sm:$0xf]
      %v2272 = vld [vmem:[#allocation2 + $0x414] sm:$0xff]
      %v2273 = vld [vmem:[#allocation2 + $0x41c] sm:$0xff]
      %v2274 = vld [vmem:[#allocation2 + $0x424] sm:$0xff]
      %v2275 = vld [vmem:[#allocation2 + $0x42c] sm:$0xff]
      %v2276 = vld [vmem:[#allocation2 + $0x434] sm:$0xf]
      %v2277 = vld [vmem:[#allocation2 + $0x438] sm:$0xff]
      %v2278 = vld [vmem:[#allocation2 + $0x440] sm:$0xff]
      %v2279 = vld [vmem:[#allocation2 + $0x448] sm:$0xff]
      %v2280 = vld [vmem:[#allocation2 + $0x450] sm:$0xff]
      %v2281 = vld [vmem:[#allocation2 + $0x458] sm:$0xf]
      %v2282 = vld [vmem:[#allocation2 + $0x45c] sm:$0xff]
      %v2283 = vld [vmem:[#allocation2 + $0x464] sm:$0xff]
      %v2284 = vld [vmem:[#allocation2 + $0x46c] sm:$0xff]
      %v2285 = vld [vmem:[#allocation2 + $0x474] sm:$0xff]
      %v2286 = vld [vmem:[#allocation2 + $0x47c] sm:$0xf]
      %v2287 = vld [vmem:[%s280] sm:$0xf]
      %v2288 = vld [vmem:[%s280 + $0x4] sm:$0xf]
      %v2289 = vld [vmem:[%s280 + $0x8] sm:$0xf]
      %v2290 = vld [vmem:[%s280 + $0xc] sm:$0xf]
      %v2291 = vld [vmem:[%s280 + $0x10] sm:$0xf]
      %v2292 = vld [vmem:[%s280 + $0x14] sm:$0xf]
      %v2293 = vld [vmem:[%s280 + $0x18] sm:$0xf]
      %v2294 = vld [vmem:[%s280 + $0x1c] sm:$0xf]
      %v2295 = vld [vmem:[%s280 + $0x20] sm:$0xf]
      %v2296 = vld [vmem:[%s280 + $0x24] sm:$0xf]
      %v2297 = vld [vmem:[%s280 + $0x28] sm:$0xf]
      %v2298 = vld [vmem:[%s280 + $0x2c] sm:$0xf]
      %v2299 = vld [vmem:[%s280 + $0x30] sm:$0xf]
      %v2300 = vld [vmem:[%s280 + $0x34] sm:$0xf]
      %v2301 = vld [vmem:[%s280 + $0x38] sm:$0xf]
      %v2302 = vld [vmem:[%s280 + $0x3c] sm:$0xf]
      %v2303 = vld [vmem:[%s280 + $0x40] sm:$0xf]
      %v2304 = vld [vmem:[%s280 + $0x44] sm:$0xf]
      %v2305 = vld [vmem:[%s280 + $0x48] sm:$0xf]
      %v2306 = vld [vmem:[%s280 + $0x4c] sm:$0xf]
      %v2307 = vld [vmem:[%s280 + $0x50] sm:$0xf]
      %v2308 = vld [vmem:[%s280 + $0x54] sm:$0xf]
      %v2309 = vld [vmem:[%s280 + $0x58] sm:$0xf]
      %v2310 = vld [vmem:[%s280 + $0x5c] sm:$0xf]
      %v2311 = vld [vmem:[%s280 + $0x60] sm:$0xf]
      %v2312 = vld [vmem:[%s280 + $0x64] sm:$0xf]
      %v2313 = vld [vmem:[%s280 + $0x68] sm:$0xf]
      %v2314 = vld [vmem:[%s280 + $0x6c] sm:$0xf]
      %v2315 = vld [vmem:[%s280 + $0x70] sm:$0xf]
      %v2316 = vld [vmem:[%s280 + $0x74] sm:$0xf]
      %v2317 = vld [vmem:[%s280 + $0x78] sm:$0xf]
      %v2318 = vld [vmem:[%s280 + $0x7c] sm:$0xf]
      %v2319 = vld [vmem:[%s280 + $0x80] sm:$0xf]
      %v2320 = vld [vmem:[%s280 + $0x84] sm:$0xf]
      %v2321 = vld [vmem:[%s280 + $0x88] sm:$0xf]
      %v2322 = vld [vmem:[%s280 + $0x8c] sm:$0xf]
      %v2323 = vld [vmem:[%s280 + $0x90] sm:$0xf]
      %v2324 = vld [vmem:[%s280 + $0x94] sm:$0xf]
      %v2325 = vld [vmem:[%s280 + $0x98] sm:$0xf]
      %v2326 = vld [vmem:[%s280 + $0x9c] sm:$0xf]
      %v2327 = vld [vmem:[%s280 + $0xa0] sm:$0xf]
      %v2328 = vld [vmem:[%s280 + $0xa4] sm:$0xf]
      %v2329 = vld [vmem:[%s280 + $0xa8] sm:$0xf]
      %v2330 = vld [vmem:[%s280 + $0xac] sm:$0xf]
      %v2331 = vld [vmem:[%s280 + $0xb0] sm:$0xf]
      %v2332 = vld [vmem:[%s280 + $0xb4] sm:$0xf]
      %v2333 = vld [vmem:[%s280 + $0xb8] sm:$0xf]
      %v2334 = vld [vmem:[%s280 + $0xbc] sm:$0xf]
      %v2335 = vld [vmem:[%s280 + $0xc0] sm:$0xf]
      %v2336 = vld [vmem:[%s280 + $0xc4] sm:$0xf]
      %v2337 = vld [vmem:[%s280 + $0xc8] sm:$0xf]
      %v2338 = vld [vmem:[%s280 + $0xcc] sm:$0xf]
      %v2339 = vld [vmem:[%s280 + $0xd0] sm:$0xf]
      %v2340 = vld [vmem:[%s280 + $0xd4] sm:$0xf]
      %v2341 = vld [vmem:[%s280 + $0xd8] sm:$0xf]
      %v2342 = vld [vmem:[%s280 + $0xdc] sm:$0xf]
      %v2343 = vld [vmem:[%s280 + $0xe0] sm:$0xf]
      %v2344 = vld [vmem:[%s280 + $0xe4] sm:$0xf]
      %v2345 = vld [vmem:[%s280 + $0xe8] sm:$0xf]
      %v2346 = vld [vmem:[%s280 + $0xec] sm:$0xf]
      %v2347 = vld [vmem:[%s280 + $0xf0] sm:$0xf]
      %v2348 = vld [vmem:[%s280 + $0xf4] sm:$0xf]
      %v2349 = vld [vmem:[%s280 + $0xf8] sm:$0xf]
      %v2350 = vld [vmem:[%s280 + $0xfc] sm:$0xf]
      %v2351 = vld [vmem:[%s280 + $0x100] sm:$0xf]
      %v2352 = vld [vmem:[%s280 + $0x104] sm:$0xf]
      %v2353 = vld [vmem:[%s280 + $0x108] sm:$0xf]
      %v2354 = vld [vmem:[%s280 + $0x10c] sm:$0xf]
      %v2355 = vld [vmem:[%s280 + $0x110] sm:$0xf]
      %v2356 = vld [vmem:[%s280 + $0x114] sm:$0xf]
      %v2357 = vld [vmem:[%s280 + $0x118] sm:$0xf]
      %v2358 = vld [vmem:[%s280 + $0x11c] sm:$0xf]
      %v2359 = vld [vmem:[%s280 + $0x120] sm:$0xf]
      %v2360 = vld [vmem:[%s280 + $0x124] sm:$0xf]
      %v2361 = vld [vmem:[%s280 + $0x128] sm:$0xf]
      %v2362 = vld [vmem:[%s280 + $0x12c] sm:$0xf]
      %v2363 = vld [vmem:[%s280 + $0x130] sm:$0xf]
      %v2364 = vld [vmem:[%s280 + $0x134] sm:$0xf]
      %v2365 = vld [vmem:[%s280 + $0x138] sm:$0xf]
      %v2366 = vld [vmem:[%s280 + $0x13c] sm:$0xf]
      %v2367 = vld [vmem:[%s280 + $0x140] sm:$0xf]
      %v2368 = vld [vmem:[%s280 + $0x144] sm:$0xf]
      %v2369 = vld [vmem:[%s280 + $0x148] sm:$0xf]
      %v2370 = vld [vmem:[%s280 + $0x14c] sm:$0xf]
      %v2371 = vld [vmem:[%s280 + $0x150] sm:$0xf]
      %v2372 = vld [vmem:[%s280 + $0x154] sm:$0xf]
      %v2373 = vld [vmem:[%s280 + $0x158] sm:$0xf]
      %v2374 = vld [vmem:[%s280 + $0x15c] sm:$0xf]
      %v2375 = vld [vmem:[%s280 + $0x160] sm:$0xf]
      %v2376 = vld [vmem:[%s280 + $0x164] sm:$0xf]
      %v2377 = vld [vmem:[%s280 + $0x168] sm:$0xf]
      %v2378 = vld [vmem:[%s280 + $0x16c] sm:$0xf]
      %v2379 = vld [vmem:[%s280 + $0x170] sm:$0xf]
      %v2380 = vld [vmem:[%s280 + $0x174] sm:$0xf]
      %v2381 = vld [vmem:[%s280 + $0x178] sm:$0xf]
      %v2382 = vld [vmem:[%s280 + $0x17c] sm:$0xf]
      %v2383 = vld [vmem:[%s280 + $0x180] sm:$0xf]
      %v2384 = vld [vmem:[%s280 + $0x184] sm:$0xf]
      %v2385 = vld [vmem:[%s280 + $0x188] sm:$0xf]
      %v2386 = vld [vmem:[%s280 + $0x18c] sm:$0xf]
      %v2387 = vld [vmem:[%s280 + $0x190] sm:$0xf]
      %v2388 = vld [vmem:[%s280 + $0x194] sm:$0xf]
      %v2389 = vld [vmem:[%s280 + $0x198] sm:$0xf]
      %v2390 = vld [vmem:[%s280 + $0x19c] sm:$0xf]
      %v2391 = vld [vmem:[%s280 + $0x1a0] sm:$0xf]
      %v2392 = vld [vmem:[%s280 + $0x1a4] sm:$0xf]
      %v2393 = vld [vmem:[%s280 + $0x1a8] sm:$0xf]
      %v2394 = vld [vmem:[%s280 + $0x1ac] sm:$0xf]
      %v2395 = vld [vmem:[%s280 + $0x1b0] sm:$0xf]
      %v2396 = vld [vmem:[%s280 + $0x1b4] sm:$0xf]
      %v2397 = vld [vmem:[%s280 + $0x1b8] sm:$0xf]
      %v2398 = vld [vmem:[%s280 + $0x1bc] sm:$0xf]
      %v2399 = vld [vmem:[%s280 + $0x1c0] sm:$0xf]
      %v2400 = vld [vmem:[%s280 + $0x1c4] sm:$0xf]
      %v2401 = vld [vmem:[%s280 + $0x1c8] sm:$0xf]
      %v2402 = vld [vmem:[%s280 + $0x1cc] sm:$0xf]
      %v2403 = vld [vmem:[%s280 + $0x1d0] sm:$0xf]
      %v2404 = vld [vmem:[%s280 + $0x1d4] sm:$0xf]
      %v2405 = vld [vmem:[%s280 + $0x1d8] sm:$0xf]
      %v2406 = vld [vmem:[%s280 + $0x1dc] sm:$0xf]
      %v2407 = vld [vmem:[%s280 + $0x1e0] sm:$0xf]
      %v2408 = vld [vmem:[%s280 + $0x1e4] sm:$0xf]
      %v2409 = vld [vmem:[%s280 + $0x1e8] sm:$0xf]
      %v2410 = vld [vmem:[%s280 + $0x1ec] sm:$0xf]
      %v2411 = vld [vmem:[%s280 + $0x1f0] sm:$0xf]
      %v2412 = vld [vmem:[%s280 + $0x1f4] sm:$0xf]
      %v2413 = vld [vmem:[%s280 + $0x1f8] sm:$0xf]
      %v2414 = vld [vmem:[%s280 + $0x1fc] sm:$0xf]
      %v2415 = vld [vmem:[%s280 + $0x200] sm:$0xf]
      %v2416 = vld [vmem:[%s280 + $0x204] sm:$0xf]
      %v2417 = vld [vmem:[%s280 + $0x208] sm:$0xf]
      %v2418 = vld [vmem:[%s280 + $0x20c] sm:$0xf]
      %v2419 = vld [vmem:[%s280 + $0x210] sm:$0xf]
      %v2420 = vld [vmem:[%s280 + $0x214] sm:$0xf]
      %v2421 = vld [vmem:[%s280 + $0x218] sm:$0xf]
      %v2422 = vld [vmem:[%s280 + $0x21c] sm:$0xf]
      %v2423 = vld [vmem:[%s280 + $0x220] sm:$0xf]
      %v2424 = vld [vmem:[%s280 + $0x224] sm:$0xf]
      %v2425 = vld [vmem:[%s280 + $0x228] sm:$0xf]
      %v2426 = vld [vmem:[%s280 + $0x22c] sm:$0xf]
      %v2427 = vld [vmem:[%s280 + $0x230] sm:$0xf]
      %v2428 = vld [vmem:[%s280 + $0x234] sm:$0xf]
      %v2429 = vld [vmem:[%s280 + $0x238] sm:$0xf]
      %v2430 = vld [vmem:[%s280 + $0x23c] sm:$0xf]
      %v2591 = vunpack.c.l.b16 %v2127
      %v2592 = vunpack.c.h.b16 %v2127
      %v2593 = vunpack.c.l.b16 %v2128
      %v2594 = vunpack.c.h.b16 %v2128
      %v2595 = vunpack.c.l.b16 %v2129
      %v2596 = vunpack.c.h.b16 %v2129
      %v2597 = vunpack.c.l.b16 %v2130
      %v2598 = vunpack.c.h.b16 %v2130
      %v2599 = vunpack.c.l.b16 %v2131
      %v2600 = vunpack.c.l.b16 %v2132
      %v2601 = vunpack.c.h.b16 %v2132
      %v2602 = vunpack.c.l.b16 %v2133
      %v2603 = vunpack.c.h.b16 %v2133
      %v2604 = vunpack.c.l.b16 %v2134
      %v2605 = vunpack.c.h.b16 %v2134
      %v2606 = vunpack.c.l.b16 %v2135
      %v2607 = vunpack.c.h.b16 %v2135
      %v2608 = vunpack.c.l.b16 %v2136
      %v2609 = vunpack.c.l.b16 %v2137
      %v2610 = vunpack.c.h.b16 %v2137
      %v2611 = vunpack.c.l.b16 %v2138
      %v2612 = vunpack.c.h.b16 %v2138
      %v2613 = vunpack.c.l.b16 %v2139
      %v2614 = vunpack.c.h.b16 %v2139
      %v2615 = vunpack.c.l.b16 %v2140
      %v2616 = vunpack.c.h.b16 %v2140
      %v2617 = vunpack.c.l.b16 %v2141
      %v2618 = vunpack.c.l.b16 %v2142
      %v2619 = vunpack.c.h.b16 %v2142
      %v2620 = vunpack.c.l.b16 %v2143
      %v2621 = vunpack.c.h.b16 %v2143
      %v2622 = vunpack.c.l.b16 %v2144
      %v2623 = vunpack.c.h.b16 %v2144
      %v2624 = vunpack.c.l.b16 %v2145
      %v2625 = vunpack.c.h.b16 %v2145
      %v2626 = vunpack.c.l.b16 %v2146
      %v2627 = vunpack.c.l.b16 %v2147
      %v2628 = vunpack.c.h.b16 %v2147
      %v2629 = vunpack.c.l.b16 %v2148
      %v2630 = vunpack.c.h.b16 %v2148
      %v2631 = vunpack.c.l.b16 %v2149
      %v2632 = vunpack.c.h.b16 %v2149
      %v2633 = vunpack.c.l.b16 %v2150
      %v2634 = vunpack.c.h.b16 %v2150
      %v2635 = vunpack.c.l.b16 %v2151
      %v2636 = vunpack.c.l.b16 %v2152
      %v2637 = vunpack.c.h.b16 %v2152
      %v2638 = vunpack.c.l.b16 %v2153
      %v2639 = vunpack.c.h.b16 %v2153
      %v2640 = vunpack.c.l.b16 %v2154
      %v2641 = vunpack.c.h.b16 %v2154
      %v2642 = vunpack.c.l.b16 %v2155
      %v2643 = vunpack.c.h.b16 %v2155
      %v2644 = vunpack.c.l.b16 %v2156
      %v2645 = vunpack.c.l.b16 %v2157
      %v2646 = vunpack.c.h.b16 %v2157
      %v2647 = vunpack.c.l.b16 %v2158
      %v2648 = vunpack.c.h.b16 %v2158
      %v2649 = vunpack.c.l.b16 %v2159
      %v2650 = vunpack.c.h.b16 %v2159
      %v2651 = vunpack.c.l.b16 %v2160
      %v2652 = vunpack.c.h.b16 %v2160
      %v2653 = vunpack.c.l.b16 %v2161
      %v2654 = vunpack.c.l.b16 %v2162
      %v2655 = vunpack.c.h.b16 %v2162
      %v2656 = vunpack.c.l.b16 %v2163
      %v2657 = vunpack.c.h.b16 %v2163
      %v2658 = vunpack.c.l.b16 %v2164
      %v2659 = vunpack.c.h.b16 %v2164
      %v2660 = vunpack.c.l.b16 %v2165
      %v2661 = vunpack.c.h.b16 %v2165
      %v2662 = vunpack.c.l.b16 %v2166
      %v2663 = vunpack.c.l.b16 %v2167
      %v2664 = vunpack.c.h.b16 %v2167
      %v2665 = vunpack.c.l.b16 %v2168
      %v2666 = vunpack.c.h.b16 %v2168
      %v2667 = vunpack.c.l.b16 %v2169
      %v2668 = vunpack.c.h.b16 %v2169
      %v2669 = vunpack.c.l.b16 %v2170
      %v2670 = vunpack.c.h.b16 %v2170
      %v2671 = vunpack.c.l.b16 %v2171
      %v2672 = vunpack.c.l.b16 %v2172
      %v2673 = vunpack.c.h.b16 %v2172
      %v2674 = vunpack.c.l.b16 %v2173
      %v2675 = vunpack.c.h.b16 %v2173
      %v2676 = vunpack.c.l.b16 %v2174
      %v2677 = vunpack.c.h.b16 %v2174
      %v2678 = vunpack.c.l.b16 %v2175
      %v2679 = vunpack.c.h.b16 %v2175
      %v2680 = vunpack.c.l.b16 %v2176
      %v2681 = vunpack.c.l.b16 %v2177
      %v2682 = vunpack.c.h.b16 %v2177
      %v2683 = vunpack.c.l.b16 %v2178
      %v2684 = vunpack.c.h.b16 %v2178
      %v2685 = vunpack.c.l.b16 %v2179
      %v2686 = vunpack.c.h.b16 %v2179
      %v2687 = vunpack.c.l.b16 %v2180
      %v2688 = vunpack.c.h.b16 %v2180
      %v2689 = vunpack.c.l.b16 %v2181
      %v2690 = vunpack.c.l.b16 %v2182
      %v2691 = vunpack.c.h.b16 %v2182
      %v2692 = vunpack.c.l.b16 %v2183
      %v2693 = vunpack.c.h.b16 %v2183
      %v2694 = vunpack.c.l.b16 %v2184
      %v2695 = vunpack.c.h.b16 %v2184
      %v2696 = vunpack.c.l.b16 %v2185
      %v2697 = vunpack.c.h.b16 %v2185
      %v2698 = vunpack.c.l.b16 %v2186
      %v2699 = vunpack.c.l.b16 %v2187
      %v2700 = vunpack.c.h.b16 %v2187
      %v2701 = vunpack.c.l.b16 %v2188
      %v2702 = vunpack.c.h.b16 %v2188
      %v2703 = vunpack.c.l.b16 %v2189
      %v2704 = vunpack.c.h.b16 %v2189
      %v2705 = vunpack.c.l.b16 %v2190
      %v2706 = vunpack.c.h.b16 %v2190
      %v2707 = vunpack.c.l.b16 %v2191
      %v2708 = vunpack.c.l.b16 %v2192
      %v2709 = vunpack.c.h.b16 %v2192
      %v2710 = vunpack.c.l.b16 %v2193
      %v2711 = vunpack.c.h.b16 %v2193
      %v2712 = vunpack.c.l.b16 %v2194
      %v2713 = vunpack.c.h.b16 %v2194
      %v2714 = vunpack.c.l.b16 %v2195
      %v2715 = vunpack.c.h.b16 %v2195
      %v2716 = vunpack.c.l.b16 %v2196
      %v2717 = vunpack.c.l.b16 %v2197
      %v2718 = vunpack.c.h.b16 %v2197
      %v2719 = vunpack.c.l.b16 %v2198
      %v2720 = vunpack.c.h.b16 %v2198
      %v2721 = vunpack.c.l.b16 %v2199
      %v2722 = vunpack.c.h.b16 %v2199
      %v2723 = vunpack.c.l.b16 %v2200
      %v2724 = vunpack.c.h.b16 %v2200
      %v2725 = vunpack.c.l.b16 %v2201
      %v2726 = vunpack.c.l.b16 %v2202
      %v2727 = vunpack.c.h.b16 %v2202
      %v2728 = vunpack.c.l.b16 %v2203
      %v2729 = vunpack.c.h.b16 %v2203
      %v2730 = vunpack.c.l.b16 %v2204
      %v2731 = vunpack.c.h.b16 %v2204
      %v2732 = vunpack.c.l.b16 %v2205
      %v2733 = vunpack.c.h.b16 %v2205
      %v2734 = vunpack.c.l.b16 %v2206
      %v2735 = vunpack.c.l.b16 %v2207
      %v2736 = vunpack.c.h.b16 %v2207
      %v2737 = vunpack.c.l.b16 %v2208
      %v2738 = vunpack.c.h.b16 %v2208
      %v2739 = vunpack.c.l.b16 %v2209
      %v2740 = vunpack.c.h.b16 %v2209
      %v2741 = vunpack.c.l.b16 %v2210
      %v2742 = vunpack.c.h.b16 %v2210
      %v2743 = vunpack.c.l.b16 %v2211
      %v2744 = vunpack.c.l.b16 %v2212
      %v2745 = vunpack.c.h.b16 %v2212
      %v2746 = vunpack.c.l.b16 %v2213
      %v2747 = vunpack.c.h.b16 %v2213
      %v2748 = vunpack.c.l.b16 %v2214
      %v2749 = vunpack.c.h.b16 %v2214
      %v2750 = vunpack.c.l.b16 %v2215
      %v2751 = vunpack.c.h.b16 %v2215
      %v2752 = vunpack.c.l.b16 %v2216
      %v2753 = vunpack.c.l.b16 %v2217
      %v2754 = vunpack.c.h.b16 %v2217
      %v2755 = vunpack.c.l.b16 %v2218
      %v2756 = vunpack.c.h.b16 %v2218
      %v2757 = vunpack.c.l.b16 %v2219
      %v2758 = vunpack.c.h.b16 %v2219
      %v2759 = vunpack.c.l.b16 %v2220
      %v2760 = vunpack.c.h.b16 %v2220
      %v2761 = vunpack.c.l.b16 %v2221
      %v2762 = vunpack.c.l.b16 %v2222
      %v2763 = vunpack.c.h.b16 %v2222
      %v2764 = vunpack.c.l.b16 %v2223
      %v2765 = vunpack.c.h.b16 %v2223
      %v2766 = vunpack.c.l.b16 %v2224
      %v2767 = vunpack.c.h.b16 %v2224
      %v2768 = vunpack.c.l.b16 %v2225
      %v2769 = vunpack.c.h.b16 %v2225
      %v2770 = vunpack.c.l.b16 %v2226
      %v2771 = vunpack.c.l.b16 %v2227
      %v2772 = vunpack.c.h.b16 %v2227
      %v2773 = vunpack.c.l.b16 %v2228
      %v2774 = vunpack.c.h.b16 %v2228
      %v2775 = vunpack.c.l.b16 %v2229
      %v2776 = vunpack.c.h.b16 %v2229
      %v2777 = vunpack.c.l.b16 %v2230
      %v2778 = vunpack.c.h.b16 %v2230
      %v2779 = vunpack.c.l.b16 %v2231
      %v2780 = vunpack.c.l.b16 %v2232
      %v2781 = vunpack.c.h.b16 %v2232
      %v2782 = vunpack.c.l.b16 %v2233
      %v2783 = vunpack.c.h.b16 %v2233
      %v2784 = vunpack.c.l.b16 %v2234
      %v2785 = vunpack.c.h.b16 %v2234
      %v2786 = vunpack.c.l.b16 %v2235
      %v2787 = vunpack.c.h.b16 %v2235
      %v2788 = vunpack.c.l.b16 %v2236
      %v2789 = vunpack.c.l.b16 %v2237
      %v2790 = vunpack.c.h.b16 %v2237
      %v2791 = vunpack.c.l.b16 %v2238
      %v2792 = vunpack.c.h.b16 %v2238
      %v2793 = vunpack.c.l.b16 %v2239
      %v2794 = vunpack.c.h.b16 %v2239
      %v2795 = vunpack.c.l.b16 %v2240
      %v2796 = vunpack.c.h.b16 %v2240
      %v2797 = vunpack.c.l.b16 %v2241
      %v2798 = vunpack.c.l.b16 %v2242
      %v2799 = vunpack.c.h.b16 %v2242
      %v2800 = vunpack.c.l.b16 %v2243
      %v2801 = vunpack.c.h.b16 %v2243
      %v2802 = vunpack.c.l.b16 %v2244
      %v2803 = vunpack.c.h.b16 %v2244
      %v2804 = vunpack.c.l.b16 %v2245
      %v2805 = vunpack.c.h.b16 %v2245
      %v2806 = vunpack.c.l.b16 %v2246
      %v2807 = vunpack.c.l.b16 %v2247
      %v2808 = vunpack.c.h.b16 %v2247
      %v2809 = vunpack.c.l.b16 %v2248
      %v2810 = vunpack.c.h.b16 %v2248
      %v2811 = vunpack.c.l.b16 %v2249
      %v2812 = vunpack.c.h.b16 %v2249
      %v2813 = vunpack.c.l.b16 %v2250
      %v2814 = vunpack.c.h.b16 %v2250
      %v2815 = vunpack.c.l.b16 %v2251
      %v2816 = vunpack.c.l.b16 %v2252
      %v2817 = vunpack.c.h.b16 %v2252
      %v2818 = vunpack.c.l.b16 %v2253
      %v2819 = vunpack.c.h.b16 %v2253
      %v2820 = vunpack.c.l.b16 %v2254
      %v2821 = vunpack.c.h.b16 %v2254
      %v2822 = vunpack.c.l.b16 %v2255
      %v2823 = vunpack.c.h.b16 %v2255
      %v2824 = vunpack.c.l.b16 %v2256
      %v2825 = vunpack.c.l.b16 %v2257
      %v2826 = vunpack.c.h.b16 %v2257
      %v2827 = vunpack.c.l.b16 %v2258
      %v2828 = vunpack.c.h.b16 %v2258
      %v2829 = vunpack.c.l.b16 %v2259
      %v2830 = vunpack.c.h.b16 %v2259
      %v2831 = vunpack.c.l.b16 %v2260
      %v2832 = vunpack.c.h.b16 %v2260
      %v2833 = vunpack.c.l.b16 %v2261
      %v2834 = vunpack.c.l.b16 %v2262
      %v2835 = vunpack.c.h.b16 %v2262
      %v2836 = vunpack.c.l.b16 %v2263
      %v2837 = vunpack.c.h.b16 %v2263
      %v2838 = vunpack.c.l.b16 %v2264
      %v2839 = vunpack.c.h.b16 %v2264
      %v2840 = vunpack.c.l.b16 %v2265
      %v2841 = vunpack.c.h.b16 %v2265
      %v2842 = vunpack.c.l.b16 %v2266
      %v2843 = vunpack.c.l.b16 %v2267
      %v2844 = vunpack.c.h.b16 %v2267
      %v2845 = vunpack.c.l.b16 %v2268
      %v2846 = vunpack.c.h.b16 %v2268
      %v2847 = vunpack.c.l.b16 %v2269
      %v2848 = vunpack.c.h.b16 %v2269
      %v2849 = vunpack.c.l.b16 %v2270
      %v2850 = vunpack.c.h.b16 %v2270
      %v2851 = vunpack.c.l.b16 %v2271
      %v2852 = vunpack.c.l.b16 %v2272
      %v2853 = vunpack.c.h.b16 %v2272
      %v2854 = vunpack.c.l.b16 %v2273
      %v2855 = vunpack.c.h.b16 %v2273
      %v2856 = vunpack.c.l.b16 %v2274
      %v2857 = vunpack.c.h.b16 %v2274
      %v2858 = vunpack.c.l.b16 %v2275
      %v2859 = vunpack.c.h.b16 %v2275
      %v2860 = vunpack.c.l.b16 %v2276
      %v2861 = vunpack.c.l.b16 %v2277
      %v2862 = vunpack.c.h.b16 %v2277
      %v2863 = vunpack.c.l.b16 %v2278
      %v2864 = vunpack.c.h.b16 %v2278
      %v2865 = vunpack.c.l.b16 %v2279
      %v2866 = vunpack.c.h.b16 %v2279
      %v2867 = vunpack.c.l.b16 %v2280
      %v2868 = vunpack.c.h.b16 %v2280
      %v2869 = vunpack.c.l.b16 %v2281
      %v2870 = vunpack.c.l.b16 %v2282
      %v2871 = vunpack.c.h.b16 %v2282
      %v2872 = vunpack.c.l.b16 %v2283
      %v2873 = vunpack.c.h.b16 %v2283
      %v2874 = vunpack.c.l.b16 %v2284
      %v2875 = vunpack.c.h.b16 %v2284
      %v2876 = vunpack.c.l.b16 %v2285
      %v2877 = vunpack.c.h.b16 %v2285
      %v2878 = vunpack.c.l.b16 %v2286
      %v2879 = vpack.c.b16 %v2600, %v2591
      %v2880 = vpack.c.b16 %v2601, %v2592
      %v2881 = vpack.c.b16 %v2602, %v2593
      %v2882 = vpack.c.b16 %v2603, %v2594
      %v2883 = vpack.c.b16 %v2604, %v2595
      %v2884 = vpack.c.b16 %v2605, %v2596
      %v2885 = vpack.c.b16 %v2606, %v2597
      %v2886 = vpack.c.b16 %v2607, %v2598
      %v2887 = vpack.c.b16 %v2608, %v2599
      %v2888 = vpack.c.b16 %v2618, %v2609
      %v2889 = vpack.c.b16 %v2619, %v2610
      %v2890 = vpack.c.b16 %v2620, %v2611
      %v2891 = vpack.c.b16 %v2621, %v2612
      %v2892 = vpack.c.b16 %v2622, %v2613
      %v2893 = vpack.c.b16 %v2623, %v2614
      %v2894 = vpack.c.b16 %v2624, %v2615
      %v2895 = vpack.c.b16 %v2625, %v2616
      %v2896 = vpack.c.b16 %v2626, %v2617
      %v2897 = vpack.c.b16 %v2636, %v2627
      %v2898 = vpack.c.b16 %v2637, %v2628
      %v2899 = vpack.c.b16 %v2638, %v2629
      %v2900 = vpack.c.b16 %v2639, %v2630
      %v2901 = vpack.c.b16 %v2640, %v2631
      %v2902 = vpack.c.b16 %v2641, %v2632
      %v2903 = vpack.c.b16 %v2642, %v2633
      %v2904 = vpack.c.b16 %v2643, %v2634
      %v2905 = vpack.c.b16 %v2644, %v2635
      %v2906 = vpack.c.b16 %v2654, %v2645
      %v2907 = vpack.c.b16 %v2655, %v2646
      %v2908 = vpack.c.b16 %v2656, %v2647
      %v2909 = vpack.c.b16 %v2657, %v2648
      %v2910 = vpack.c.b16 %v2658, %v2649
      %v2911 = vpack.c.b16 %v2659, %v2650
      %v2912 = vpack.c.b16 %v2660, %v2651
      %v2913 = vpack.c.b16 %v2661, %v2652
      %v2914 = vpack.c.b16 %v2662, %v2653
      %v2915 = vpack.c.b16 %v2672, %v2663
      %v2916 = vpack.c.b16 %v2673, %v2664
      %v2917 = vpack.c.b16 %v2674, %v2665
      %v2918 = vpack.c.b16 %v2675, %v2666
      %v2919 = vpack.c.b16 %v2676, %v2667
      %v2920 = vpack.c.b16 %v2677, %v2668
      %v2921 = vpack.c.b16 %v2678, %v2669
      %v2922 = vpack.c.b16 %v2679, %v2670
      %v2923 = vpack.c.b16 %v2680, %v2671
      %v2924 = vpack.c.b16 %v2690, %v2681
      %v2925 = vpack.c.b16 %v2691, %v2682
      %v2926 = vpack.c.b16 %v2692, %v2683
      %v2927 = vpack.c.b16 %v2693, %v2684
      %v2928 = vpack.c.b16 %v2694, %v2685
      %v2929 = vpack.c.b16 %v2695, %v2686
      %v2930 = vpack.c.b16 %v2696, %v2687
      %v2931 = vpack.c.b16 %v2697, %v2688
      %v2932 = vpack.c.b16 %v2698, %v2689
      %v2933 = vpack.c.b16 %v2708, %v2699
      %v2934 = vpack.c.b16 %v2709, %v2700
      %v2935 = vpack.c.b16 %v2710, %v2701
      %v2936 = vpack.c.b16 %v2711, %v2702
      %v2937 = vpack.c.b16 %v2712, %v2703
      %v2938 = vpack.c.b16 %v2713, %v2704
      %v2939 = vpack.c.b16 %v2714, %v2705
      %v2940 = vpack.c.b16 %v2715, %v2706
      %v2941 = vpack.c.b16 %v2716, %v2707
      %v2942 = vpack.c.b16 %v2726, %v2717
      %v2943 = vpack.c.b16 %v2727, %v2718
      %v2944 = vpack.c.b16 %v2728, %v2719
      %v2945 = vpack.c.b16 %v2729, %v2720
      %v2946 = vpack.c.b16 %v2730, %v2721
      %v2947 = vpack.c.b16 %v2731, %v2722
      %v2948 = vpack.c.b16 %v2732, %v2723
      %v2949 = vpack.c.b16 %v2733, %v2724
      %v2950 = vpack.c.b16 %v2734, %v2725
      %v2951 = vpack.c.b16 %v2744, %v2735
      %v2952 = vpack.c.b16 %v2745, %v2736
      %v2953 = vpack.c.b16 %v2746, %v2737
      %v2954 = vpack.c.b16 %v2747, %v2738
      %v2955 = vpack.c.b16 %v2748, %v2739
      %v2956 = vpack.c.b16 %v2749, %v2740
      %v2957 = vpack.c.b16 %v2750, %v2741
      %v2958 = vpack.c.b16 %v2751, %v2742
      %v2959 = vpack.c.b16 %v2752, %v2743
      %v2960 = vpack.c.b16 %v2762, %v2753
      %v2961 = vpack.c.b16 %v2763, %v2754
      %v2962 = vpack.c.b16 %v2764, %v2755
      %v2963 = vpack.c.b16 %v2765, %v2756
      %v2964 = vpack.c.b16 %v2766, %v2757
      %v2965 = vpack.c.b16 %v2767, %v2758
      %v2966 = vpack.c.b16 %v2768, %v2759
      %v2967 = vpack.c.b16 %v2769, %v2760
      %v2968 = vpack.c.b16 %v2770, %v2761
      %v2969 = vpack.c.b16 %v2780, %v2771
      %v2970 = vpack.c.b16 %v2781, %v2772
      %v2971 = vpack.c.b16 %v2782, %v2773
      %v2972 = vpack.c.b16 %v2783, %v2774
      %v2973 = vpack.c.b16 %v2784, %v2775
      %v2974 = vpack.c.b16 %v2785, %v2776
      %v2975 = vpack.c.b16 %v2786, %v2777
      %v2976 = vpack.c.b16 %v2787, %v2778
      %v2977 = vpack.c.b16 %v2788, %v2779
      %v2978 = vpack.c.b16 %v2798, %v2789
      %v2979 = vpack.c.b16 %v2799, %v2790
      %v2980 = vpack.c.b16 %v2800, %v2791
      %v2981 = vpack.c.b16 %v2801, %v2792
      %v2982 = vpack.c.b16 %v2802, %v2793
      %v2983 = vpack.c.b16 %v2803, %v2794
      %v2984 = vpack.c.b16 %v2804, %v2795
      %v2985 = vpack.c.b16 %v2805, %v2796
      %v2986 = vpack.c.b16 %v2806, %v2797
      %v2987 = vpack.c.b16 %v2816, %v2807
      %v2988 = vpack.c.b16 %v2817, %v2808
      %v2989 = vpack.c.b16 %v2818, %v2809
      %v2990 = vpack.c.b16 %v2819, %v2810
      %v2991 = vpack.c.b16 %v2820, %v2811
      %v2992 = vpack.c.b16 %v2821, %v2812
      %v2993 = vpack.c.b16 %v2822, %v2813
      %v2994 = vpack.c.b16 %v2823, %v2814
      %v2995 = vpack.c.b16 %v2824, %v2815
      %v2996 = vpack.c.b16 %v2834, %v2825
      %v2997 = vpack.c.b16 %v2835, %v2826
      %v2998 = vpack.c.b16 %v2836, %v2827
      %v2999 = vpack.c.b16 %v2837, %v2828
      %v3000 = vpack.c.b16 %v2838, %v2829
      %v3001 = vpack.c.b16 %v2839, %v2830
      %v3002 = vpack.c.b16 %v2840, %v2831
      %v3003 = vpack.c.b16 %v2841, %v2832
      %v3004 = vpack.c.b16 %v2842, %v2833
      %v3005 = vpack.c.b16 %v2852, %v2843
      %v3006 = vpack.c.b16 %v2853, %v2844
      %v3007 = vpack.c.b16 %v2854, %v2845
      %v3008 = vpack.c.b16 %v2855, %v2846
      %v3009 = vpack.c.b16 %v2856, %v2847
      %v3010 = vpack.c.b16 %v2857, %v2848
      %v3011 = vpack.c.b16 %v2858, %v2849
      %v3012 = vpack.c.b16 %v2859, %v2850
      %v3013 = vpack.c.b16 %v2860, %v2851
      %v3014 = vpack.c.b16 %v2870, %v2861
      %v3015 = vpack.c.b16 %v2871, %v2862
      %v3016 = vpack.c.b16 %v2872, %v2863
      %v3017 = vpack.c.b16 %v2873, %v2864
      %v3018 = vpack.c.b16 %v2874, %v2865
      %v3019 = vpack.c.b16 %v2875, %v2866
      %v3020 = vpack.c.b16 %v2876, %v2867
      %v3021 = vpack.c.b16 %v2877, %v2868
      %v3022 = vpack.c.b16 %v2878, %v2869
      %v3311 = vunpack.c.l.b16 %v2287
      %v3312 = vunpack.c.l.b16 %v2288
      %v3313 = vunpack.c.l.b16 %v2289
      %v3314 = vunpack.c.l.b16 %v2290
      %v3315 = vunpack.c.l.b16 %v2291
      %v3316 = vunpack.c.l.b16 %v2292
      %v3317 = vunpack.c.l.b16 %v2293
      %v3318 = vunpack.c.l.b16 %v2294
      %v3319 = vunpack.c.l.b16 %v2295
      %v3320 = vunpack.c.l.b16 %v2296
      %v3321 = vunpack.c.l.b16 %v2297
      %v3322 = vunpack.c.l.b16 %v2298
      %v3323 = vunpack.c.l.b16 %v2299
      %v3324 = vunpack.c.l.b16 %v2300
      %v3325 = vunpack.c.l.b16 %v2301
      %v3326 = vunpack.c.l.b16 %v2302
      %v3327 = vunpack.c.l.b16 %v2303
      %v3328 = vunpack.c.l.b16 %v2304
      %v3329 = vunpack.c.l.b16 %v2305
      %v3330 = vunpack.c.l.b16 %v2306
      %v3331 = vunpack.c.l.b16 %v2307
      %v3332 = vunpack.c.l.b16 %v2308
      %v3333 = vunpack.c.l.b16 %v2309
      %v3334 = vunpack.c.l.b16 %v2310
      %v3335 = vunpack.c.l.b16 %v2311
      %v3336 = vunpack.c.l.b16 %v2312
      %v3337 = vunpack.c.l.b16 %v2313
      %v3338 = vunpack.c.l.b16 %v2314
      %v3339 = vunpack.c.l.b16 %v2315
      %v3340 = vunpack.c.l.b16 %v2316
      %v3341 = vunpack.c.l.b16 %v2317
      %v3342 = vunpack.c.l.b16 %v2318
      %v3343 = vunpack.c.l.b16 %v2319
      %v3344 = vunpack.c.l.b16 %v2320
      %v3345 = vunpack.c.l.b16 %v2321
      %v3346 = vunpack.c.l.b16 %v2322
      %v3347 = vunpack.c.l.b16 %v2323
      %v3348 = vunpack.c.l.b16 %v2324
      %v3349 = vunpack.c.l.b16 %v2325
      %v3350 = vunpack.c.l.b16 %v2326
      %v3351 = vunpack.c.l.b16 %v2327
      %v3352 = vunpack.c.l.b16 %v2328
      %v3353 = vunpack.c.l.b16 %v2329
      %v3354 = vunpack.c.l.b16 %v2330
      %v3355 = vunpack.c.l.b16 %v2331
      %v3356 = vunpack.c.l.b16 %v2332
      %v3357 = vunpack.c.l.b16 %v2333
      %v3358 = vunpack.c.l.b16 %v2334
      %v3359 = vunpack.c.l.b16 %v2335
      %v3360 = vunpack.c.l.b16 %v2336
      %v3361 = vunpack.c.l.b16 %v2337
      %v3362 = vunpack.c.l.b16 %v2338
      %v3363 = vunpack.c.l.b16 %v2339
      %v3364 = vunpack.c.l.b16 %v2340
      %v3365 = vunpack.c.l.b16 %v2341
      %v3366 = vunpack.c.l.b16 %v2342
      %v3367 = vunpack.c.l.b16 %v2343
      %v3368 = vunpack.c.l.b16 %v2344
      %v3369 = vunpack.c.l.b16 %v2345
      %v3370 = vunpack.c.l.b16 %v2346
      %v3371 = vunpack.c.l.b16 %v2347
      %v3372 = vunpack.c.l.b16 %v2348
      %v3373 = vunpack.c.l.b16 %v2349
      %v3374 = vunpack.c.l.b16 %v2350
      %v3375 = vunpack.c.l.b16 %v2351
      %v3376 = vunpack.c.l.b16 %v2352
      %v3377 = vunpack.c.l.b16 %v2353
      %v3378 = vunpack.c.l.b16 %v2354
      %v3379 = vunpack.c.l.b16 %v2355
      %v3380 = vunpack.c.l.b16 %v2356
      %v3381 = vunpack.c.l.b16 %v2357
      %v3382 = vunpack.c.l.b16 %v2358
      %v3383 = vunpack.c.l.b16 %v2359
      %v3384 = vunpack.c.l.b16 %v2360
      %v3385 = vunpack.c.l.b16 %v2361
      %v3386 = vunpack.c.l.b16 %v2362
      %v3387 = vunpack.c.l.b16 %v2363
      %v3388 = vunpack.c.l.b16 %v2364
      %v3389 = vunpack.c.l.b16 %v2365
      %v3390 = vunpack.c.l.b16 %v2366
      %v3391 = vunpack.c.l.b16 %v2367
      %v3392 = vunpack.c.l.b16 %v2368
      %v3393 = vunpack.c.l.b16 %v2369
      %v3394 = vunpack.c.l.b16 %v2370
      %v3395 = vunpack.c.l.b16 %v2371
      %v3396 = vunpack.c.l.b16 %v2372
      %v3397 = vunpack.c.l.b16 %v2373
      %v3398 = vunpack.c.l.b16 %v2374
      %v3399 = vunpack.c.l.b16 %v2375
      %v3400 = vunpack.c.l.b16 %v2376
      %v3401 = vunpack.c.l.b16 %v2377
      %v3402 = vunpack.c.l.b16 %v2378
      %v3403 = vunpack.c.l.b16 %v2379
      %v3404 = vunpack.c.l.b16 %v2380
      %v3405 = vunpack.c.l.b16 %v2381
      %v3406 = vunpack.c.l.b16 %v2382
      %v3407 = vunpack.c.l.b16 %v2383
      %v3408 = vunpack.c.l.b16 %v2384
      %v3409 = vunpack.c.l.b16 %v2385
      %v3410 = vunpack.c.l.b16 %v2386
      %v3411 = vunpack.c.l.b16 %v2387
      %v3412 = vunpack.c.l.b16 %v2388
      %v3413 = vunpack.c.l.b16 %v2389
      %v3414 = vunpack.c.l.b16 %v2390
      %v3415 = vunpack.c.l.b16 %v2391
      %v3416 = vunpack.c.l.b16 %v2392
      %v3417 = vunpack.c.l.b16 %v2393
      %v3418 = vunpack.c.l.b16 %v2394
      %v3419 = vunpack.c.l.b16 %v2395
      %v3420 = vunpack.c.l.b16 %v2396
      %v3421 = vunpack.c.l.b16 %v2397
      %v3422 = vunpack.c.l.b16 %v2398
      %v3423 = vunpack.c.l.b16 %v2399
      %v3424 = vunpack.c.l.b16 %v2400
      %v3425 = vunpack.c.l.b16 %v2401
      %v3426 = vunpack.c.l.b16 %v2402
      %v3427 = vunpack.c.l.b16 %v2403
      %v3428 = vunpack.c.l.b16 %v2404
      %v3429 = vunpack.c.l.b16 %v2405
      %v3430 = vunpack.c.l.b16 %v2406
      %v3431 = vunpack.c.l.b16 %v2407
      %v3432 = vunpack.c.l.b16 %v2408
      %v3433 = vunpack.c.l.b16 %v2409
      %v3434 = vunpack.c.l.b16 %v2410
      %v3435 = vunpack.c.l.b16 %v2411
      %v3436 = vunpack.c.l.b16 %v2412
      %v3437 = vunpack.c.l.b16 %v2413
      %v3438 = vunpack.c.l.b16 %v2414
      %v3439 = vunpack.c.l.b16 %v2415
      %v3440 = vunpack.c.l.b16 %v2416
      %v3441 = vunpack.c.l.b16 %v2417
      %v3442 = vunpack.c.l.b16 %v2418
      %v3443 = vunpack.c.l.b16 %v2419
      %v3444 = vunpack.c.l.b16 %v2420
      %v3445 = vunpack.c.l.b16 %v2421
      %v3446 = vunpack.c.l.b16 %v2422
      %v3447 = vunpack.c.l.b16 %v2423
      %v3448 = vunpack.c.l.b16 %v2424
      %v3449 = vunpack.c.l.b16 %v2425
      %v3450 = vunpack.c.l.b16 %v2426
      %v3451 = vunpack.c.l.b16 %v2427
      %v3452 = vunpack.c.l.b16 %v2428
      %v3453 = vunpack.c.l.b16 %v2429
      %v3454 = vunpack.c.l.b16 %v2430
      %v3455 = vpack.c.b16 %v3312, %v3311
      %v3456 = vpack.c.b16 %v3314, %v3313
      %v3457 = vpack.c.b16 %v3316, %v3315
      %v3458 = vpack.c.b16 %v3318, %v3317
      %v3459 = vpack.c.b16 %v3320, %v3319
      %v3460 = vpack.c.b16 %v3322, %v3321
      %v3461 = vpack.c.b16 %v3324, %v3323
      %v3462 = vpack.c.b16 %v3326, %v3325
      %v3463 = vpack.c.b16 %v3328, %v3327
      %v3464 = vpack.c.b16 %v3330, %v3329
      %v3465 = vpack.c.b16 %v3332, %v3331
      %v3466 = vpack.c.b16 %v3334, %v3333
      %v3467 = vpack.c.b16 %v3336, %v3335
      %v3468 = vpack.c.b16 %v3338, %v3337
      %v3469 = vpack.c.b16 %v3340, %v3339
      %v3470 = vpack.c.b16 %v3342, %v3341
      %v3471 = vpack.c.b16 %v3344, %v3343
      %v3472 = vpack.c.b16 %v3346, %v3345
      %v3473 = vpack.c.b16 %v3348, %v3347
      %v3474 = vpack.c.b16 %v3350, %v3349
      %v3475 = vpack.c.b16 %v3352, %v3351
      %v3476 = vpack.c.b16 %v3354, %v3353
      %v3477 = vpack.c.b16 %v3356, %v3355
      %v3478 = vpack.c.b16 %v3358, %v3357
      %v3479 = vpack.c.b16 %v3360, %v3359
      %v3480 = vpack.c.b16 %v3362, %v3361
      %v3481 = vpack.c.b16 %v3364, %v3363
      %v3482 = vpack.c.b16 %v3366, %v3365
      %v3483 = vpack.c.b16 %v3368, %v3367
      %v3484 = vpack.c.b16 %v3370, %v3369
      %v3485 = vpack.c.b16 %v3372, %v3371
      %v3486 = vpack.c.b16 %v3374, %v3373
      %v3487 = vpack.c.b16 %v3376, %v3375
      %v3488 = vpack.c.b16 %v3378, %v3377
      %v3489 = vpack.c.b16 %v3380, %v3379
      %v3490 = vpack.c.b16 %v3382, %v3381
      %v3491 = vpack.c.b16 %v3384, %v3383
      %v3492 = vpack.c.b16 %v3386, %v3385
      %v3493 = vpack.c.b16 %v3388, %v3387
      %v3494 = vpack.c.b16 %v3390, %v3389
      %v3495 = vpack.c.b16 %v3392, %v3391
      %v3496 = vpack.c.b16 %v3394, %v3393
      %v3497 = vpack.c.b16 %v3396, %v3395
      %v3498 = vpack.c.b16 %v3398, %v3397
      %v3499 = vpack.c.b16 %v3400, %v3399
      %v3500 = vpack.c.b16 %v3402, %v3401
      %v3501 = vpack.c.b16 %v3404, %v3403
      %v3502 = vpack.c.b16 %v3406, %v3405
      %v3503 = vpack.c.b16 %v3408, %v3407
      %v3504 = vpack.c.b16 %v3410, %v3409
      %v3505 = vpack.c.b16 %v3412, %v3411
      %v3506 = vpack.c.b16 %v3414, %v3413
      %v3507 = vpack.c.b16 %v3416, %v3415
      %v3508 = vpack.c.b16 %v3418, %v3417
      %v3509 = vpack.c.b16 %v3420, %v3419
      %v3510 = vpack.c.b16 %v3422, %v3421
      %v3511 = vpack.c.b16 %v3424, %v3423
      %v3512 = vpack.c.b16 %v3426, %v3425
      %v3513 = vpack.c.b16 %v3428, %v3427
      %v3514 = vpack.c.b16 %v3430, %v3429
      %v3515 = vpack.c.b16 %v3432, %v3431
      %v3516 = vpack.c.b16 %v3434, %v3433
      %v3517 = vpack.c.b16 %v3436, %v3435
      %v3518 = vpack.c.b16 %v3438, %v3437
      %v3519 = vpack.c.b16 %v3440, %v3439
      %v3520 = vpack.c.b16 %v3442, %v3441
      %v3521 = vpack.c.b16 %v3444, %v3443
      %v3522 = vpack.c.b16 %v3446, %v3445
      %v3523 = vpack.c.b16 %v3448, %v3447
      %v3524 = vpack.c.b16 %v3450, %v3449
      %v3525 = vpack.c.b16 %v3452, %v3451
      %v3526 = vpack.c.b16 %v3454, %v3453
      %3599 = vmatpush.bf16.msra.mxu0 %v3462
      %3600 = vmatpush.bf16.msra.mxu0 %v3461
      %3601 = vmatpush.bf16.msra.mxu0 %v3460
      %3602 = vmatpush.bf16.msra.mxu0 %v3459
      %3603 = vmatpush.bf16.msra.mxu0 %v3458
      %3604 = vmatpush.bf16.msra.mxu0 %v3457
      %3605 = vmatpush.bf16.msra.mxu0 %v3456
      %3606 = vmatpush.bf16.msra.mxu0 %v3455
      %3607 = vmatmul.bf16.gmra.mxu0 %v2879
      %v3608 = vpop.f32.mrf.mxu0
      %v3609 = vadd.f32 0.0, %v3608
      %v3610 = vpop.f32.mrf.mxu0
      %v3611 = vadd.f32 0.0, %v3610
      %3612 = vmatmul.bf16.gmra.mxu0 %v2888
      %v3613 = vpop.f32.mrf.mxu0
      %v3614 = vadd.f32 0.0, %v3613
      %v3615 = vpop.f32.mrf.mxu0
      %v3616 = vadd.f32 0.0, %v3615
      %3617 = vmatmul.bf16.gmra.mxu0 %v2897
      %v3618 = vpop.f32.mrf.mxu0
      %v3619 = vadd.f32 0.0, %v3618
      %v3620 = vpop.f32.mrf.mxu0
      %v3621 = vadd.f32 0.0, %v3620
      %3622 = vmatmul.bf16.gmra.mxu0 %v2906
      %v3623 = vpop.f32.mrf.mxu0
      %v3624 = vadd.f32 0.0, %v3623
      %v3625 = vpop.f32.mrf.mxu0
      %v3626 = vadd.f32 0.0, %v3625
      %3627 = vmatmul.bf16.gmra.mxu0 %v2915
      %v3628 = vpop.f32.mrf.mxu0
      %v3629 = vadd.f32 0.0, %v3628
      %v3630 = vpop.f32.mrf.mxu0
      %v3631 = vadd.f32 0.0, %v3630
      %3632 = vmatmul.bf16.gmra.mxu0 %v2924
      %v3633 = vpop.f32.mrf.mxu0
      %v3634 = vadd.f32 0.0, %v3633
      %v3635 = vpop.f32.mrf.mxu0
      %v3636 = vadd.f32 0.0, %v3635
      %3637 = vmatmul.bf16.gmra.mxu0 %v2933
      %v3638 = vpop.f32.mrf.mxu0
      %v3639 = vadd.f32 0.0, %v3638
      %v3640 = vpop.f32.mrf.mxu0
      %v3641 = vadd.f32 0.0, %v3640
      %3642 = vmatmul.bf16.gmra.mxu0 %v2942
      %v3643 = vpop.f32.mrf.mxu0
      %v3644 = vadd.f32 0.0, %v3643
      %v3645 = vpop.f32.mrf.mxu0
      %v3646 = vadd.f32 0.0, %v3645
      %3647 = vmatmul.bf16.gmra.mxu0 %v2951
      %v3648 = vpop.f32.mrf.mxu0
      %v3649 = vadd.f32 0.0, %v3648
      %v3650 = vpop.f32.mrf.mxu0
      %v3651 = vadd.f32 0.0, %v3650
      %3652 = vmatmul.bf16.gmra.mxu0 %v2960
      %v3653 = vpop.f32.mrf.mxu0
      %v3654 = vadd.f32 0.0, %v3653
      %v3655 = vpop.f32.mrf.mxu0
      %v3656 = vadd.f32 0.0, %v3655
      %3657 = vmatmul.bf16.gmra.mxu0 %v2969
      %v3658 = vpop.f32.mrf.mxu0
      %v3659 = vadd.f32 0.0, %v3658
      %v3660 = vpop.f32.mrf.mxu0
      %v3661 = vadd.f32 0.0, %v3660
      %3662 = vmatmul.bf16.gmra.mxu0 %v2978
      %v3663 = vpop.f32.mrf.mxu0
      %v3664 = vadd.f32 0.0, %v3663
      %v3665 = vpop.f32.mrf.mxu0
      %v3666 = vadd.f32 0.0, %v3665
      %3667 = vmatmul.bf16.gmra.mxu0 %v2987
      %v3668 = vpop.f32.mrf.mxu0
      %v3669 = vadd.f32 0.0, %v3668
      %v3670 = vpop.f32.mrf.mxu0
      %v3671 = vadd.f32 0.0, %v3670
      %3672 = vmatmul.bf16.gmra.mxu0 %v2996
      %v3673 = vpop.f32.mrf.mxu0
      %v3674 = vadd.f32 0.0, %v3673
      %v3675 = vpop.f32.mrf.mxu0
      %v3676 = vadd.f32 0.0, %v3675
      %3677 = vmatmul.bf16.gmra.mxu0 %v3005
      %v3678 = vpop.f32.mrf.mxu0
      %v3679 = vadd.f32 0.0, %v3678
      %v3680 = vpop.f32.mrf.mxu0
      %v3681 = vadd.f32 0.0, %v3680
      %3682 = vmatmul.bf16.gmra.mxu0 %v3014
      %v3683 = vpop.f32.mrf.mxu0
      %v3684 = vadd.f32 0.0, %v3683
      %v3685 = vpop.f32.mrf.mxu0
      %v3686 = vadd.f32 0.0, %v3685
      %3687 = vdwg.mxu0
      %3688 = vmatpush.bf16.msra.mxu0 %v3470
      %3689 = vmatpush.bf16.msra.mxu0 %v3469
      %3690 = vmatpush.bf16.msra.mxu0 %v3468
      %3691 = vmatpush.bf16.msra.mxu0 %v3467
      %3692 = vmatpush.bf16.msra.mxu0 %v3466
      %3693 = vmatpush.bf16.msra.mxu0 %v3465
      %3694 = vmatpush.bf16.msra.mxu0 %v3464
      %3695 = vmatpush.bf16.msra.mxu0 %v3463
      %3696 = vmatmul.bf16.gmra.mxu0 %v2880
      %v3697 = vpop.f32.mrf.mxu0
      %v3698 = vadd.f32 %v3609, %v3697
      %v3699 = vpop.f32.mrf.mxu0
      %v3700 = vadd.f32 %v3611, %v3699
      %3701 = vmatmul.bf16.gmra.mxu0 %v2889
      %v3702 = vpop.f32.mrf.mxu0
      %v3703 = vadd.f32 %v3614, %v3702
      %v3704 = vpop.f32.mrf.mxu0
      %v3705 = vadd.f32 %v3616, %v3704
      %3706 = vmatmul.bf16.gmra.mxu0 %v2898
      %v3707 = vpop.f32.mrf.mxu0
      %v3708 = vadd.f32 %v3619, %v3707
      %v3709 = vpop.f32.mrf.mxu0
      %v3710 = vadd.f32 %v3621, %v3709
      %3711 = vmatmul.bf16.gmra.mxu0 %v2907
      %v3712 = vpop.f32.mrf.mxu0
      %v3713 = vadd.f32 %v3624, %v3712
      %v3714 = vpop.f32.mrf.mxu0
      %v3715 = vadd.f32 %v3626, %v3714
      %3716 = vmatmul.bf16.gmra.mxu0 %v2916
      %v3717 = vpop.f32.mrf.mxu0
      %v3718 = vadd.f32 %v3629, %v3717
      %v3719 = vpop.f32.mrf.mxu0
      %v3720 = vadd.f32 %v3631, %v3719
      %3721 = vmatmul.bf16.gmra.mxu0 %v2925
      %v3722 = vpop.f32.mrf.mxu0
      %v3723 = vadd.f32 %v3634, %v3722
      %v3724 = vpop.f32.mrf.mxu0
      %v3725 = vadd.f32 %v3636, %v3724
      %3726 = vmatmul.bf16.gmra.mxu0 %v2934
      %v3727 = vpop.f32.mrf.mxu0
      %v3728 = vadd.f32 %v3639, %v3727
      %v3729 = vpop.f32.mrf.mxu0
      %v3730 = vadd.f32 %v3641, %v3729
      %3731 = vmatmul.bf16.gmra.mxu0 %v2943
      %v3732 = vpop.f32.mrf.mxu0
      %v3733 = vadd.f32 %v3644, %v3732
      %v3734 = vpop.f32.mrf.mxu0
      %v3735 = vadd.f32 %v3646, %v3734
      %3736 = vmatmul.bf16.gmra.mxu0 %v2952
      %v3737 = vpop.f32.mrf.mxu0
      %v3738 = vadd.f32 %v3649, %v3737
      %v3739 = vpop.f32.mrf.mxu0
      %v3740 = vadd.f32 %v3651, %v3739
      %3741 = vmatmul.bf16.gmra.mxu0 %v2961
      %v3742 = vpop.f32.mrf.mxu0
      %v3743 = vadd.f32 %v3654, %v3742
      %v3744 = vpop.f32.mrf.mxu0
      %v3745 = vadd.f32 %v3656, %v3744
      %3746 = vmatmul.bf16.gmra.mxu0 %v2970
      %v3747 = vpop.f32.mrf.mxu0
      %v3748 = vadd.f32 %v3659, %v3747
      %v3749 = vpop.f32.mrf.mxu0
      %v3750 = vadd.f32 %v3661, %v3749
      %3751 = vmatmul.bf16.gmra.mxu0 %v2979
      %v3752 = vpop.f32.mrf.mxu0
      %v3753 = vadd.f32 %v3664, %v3752
      %v3754 = vpop.f32.mrf.mxu0
      %v3755 = vadd.f32 %v3666, %v3754
      %3756 = vmatmul.bf16.gmra.mxu0 %v2988
      %v3757 = vpop.f32.mrf.mxu0
      %v3758 = vadd.f32 %v3669, %v3757
      %v3759 = vpop.f32.mrf.mxu0
      %v3760 = vadd.f32 %v3671, %v3759
      %3761 = vmatmul.bf16.gmra.mxu0 %v2997
      %v3762 = vpop.f32.mrf.mxu0
      %v3763 = vadd.f32 %v3674, %v3762
      %v3764 = vpop.f32.mrf.mxu0
      %v3765 = vadd.f32 %v3676, %v3764
      %3766 = vmatmul.bf16.gmra.mxu0 %v3006
      %v3767 = vpop.f32.mrf.mxu0
      %v3768 = vadd.f32 %v3679, %v3767
      %v3769 = vpop.f32.mrf.mxu0
      %v3770 = vadd.f32 %v3681, %v3769
      %3771 = vmatmul.bf16.gmra.mxu0 %v3015
      %v3772 = vpop.f32.mrf.mxu0
      %v3773 = vadd.f32 %v3684, %v3772
      %v3774 = vpop.f32.mrf.mxu0
      %v3775 = vadd.f32 %v3686, %v3774
      %3776 = vdwg.mxu0
      %3777 = vmatpush.bf16.msra.mxu0 %v3478
      %3778 = vmatpush.bf16.msra.mxu0 %v3477
      %3779 = vmatpush.bf16.msra.mxu0 %v3476
      %3780 = vmatpush.bf16.msra.mxu0 %v3475
      %3781 = vmatpush.bf16.msra.mxu0 %v3474
      %3782 = vmatpush.bf16.msra.mxu0 %v3473
      %3783 = vmatpush.bf16.msra.mxu0 %v3472
      %3784 = vmatpush.bf16.msra.mxu0 %v3471
      %3785 = vmatmul.bf16.gmra.mxu0 %v2881
      %v3786 = vpop.f32.mrf.mxu0
      %v3787 = vadd.f32 %v3698, %v3786
      %v3788 = vpop.f32.mrf.mxu0
      %v3789 = vadd.f32 %v3700, %v3788
      %3790 = vmatmul.bf16.gmra.mxu0 %v2890
      %v3791 = vpop.f32.mrf.mxu0
      %v3792 = vadd.f32 %v3703, %v3791
      %v3793 = vpop.f32.mrf.mxu0
      %v3794 = vadd.f32 %v3705, %v3793
      %3795 = vmatmul.bf16.gmra.mxu0 %v2899
      %v3796 = vpop.f32.mrf.mxu0
      %v3797 = vadd.f32 %v3708, %v3796
      %v3798 = vpop.f32.mrf.mxu0
      %v3799 = vadd.f32 %v3710, %v3798
      %3800 = vmatmul.bf16.gmra.mxu0 %v2908
      %v3801 = vpop.f32.mrf.mxu0
      %v3802 = vadd.f32 %v3713, %v3801
      %v3803 = vpop.f32.mrf.mxu0
      %v3804 = vadd.f32 %v3715, %v3803
      %3805 = vmatmul.bf16.gmra.mxu0 %v2917
      %v3806 = vpop.f32.mrf.mxu0
      %v3807 = vadd.f32 %v3718, %v3806
      %v3808 = vpop.f32.mrf.mxu0
      %v3809 = vadd.f32 %v3720, %v3808
      %3810 = vmatmul.bf16.gmra.mxu0 %v2926
      %v3811 = vpop.f32.mrf.mxu0
      %v3812 = vadd.f32 %v3723, %v3811
      %v3813 = vpop.f32.mrf.mxu0
      %v3814 = vadd.f32 %v3725, %v3813
      %3815 = vmatmul.bf16.gmra.mxu0 %v2935
      %v3816 = vpop.f32.mrf.mxu0
      %v3817 = vadd.f32 %v3728, %v3816
      %v3818 = vpop.f32.mrf.mxu0
      %v3819 = vadd.f32 %v3730, %v3818
      %3820 = vmatmul.bf16.gmra.mxu0 %v2944
      %v3821 = vpop.f32.mrf.mxu0
      %v3822 = vadd.f32 %v3733, %v3821
      %v3823 = vpop.f32.mrf.mxu0
      %v3824 = vadd.f32 %v3735, %v3823
      %3825 = vmatmul.bf16.gmra.mxu0 %v2953
      %v3826 = vpop.f32.mrf.mxu0
      %v3827 = vadd.f32 %v3738, %v3826
      %v3828 = vpop.f32.mrf.mxu0
      %v3829 = vadd.f32 %v3740, %v3828
      %3830 = vmatmul.bf16.gmra.mxu0 %v2962
      %v3831 = vpop.f32.mrf.mxu0
      %v3832 = vadd.f32 %v3743, %v3831
      %v3833 = vpop.f32.mrf.mxu0
      %v3834 = vadd.f32 %v3745, %v3833
      %3835 = vmatmul.bf16.gmra.mxu0 %v2971
      %v3836 = vpop.f32.mrf.mxu0
      %v3837 = vadd.f32 %v3748, %v3836
      %v3838 = vpop.f32.mrf.mxu0
      %v3839 = vadd.f32 %v3750, %v3838
      %3840 = vmatmul.bf16.gmra.mxu0 %v2980
      %v3841 = vpop.f32.mrf.mxu0
      %v3842 = vadd.f32 %v3753, %v3841
      %v3843 = vpop.f32.mrf.mxu0
      %v3844 = vadd.f32 %v3755, %v3843
      %3845 = vmatmul.bf16.gmra.mxu0 %v2989
      %v3846 = vpop.f32.mrf.mxu0
      %v3847 = vadd.f32 %v3758, %v3846
      %v3848 = vpop.f32.mrf.mxu0
      %v3849 = vadd.f32 %v3760, %v3848
      %3850 = vmatmul.bf16.gmra.mxu0 %v2998
      %v3851 = vpop.f32.mrf.mxu0
      %v3852 = vadd.f32 %v3763, %v3851
      %v3853 = vpop.f32.mrf.mxu0
      %v3854 = vadd.f32 %v3765, %v3853
      %3855 = vmatmul.bf16.gmra.mxu0 %v3007
      %v3856 = vpop.f32.mrf.mxu0
      %v3857 = vadd.f32 %v3768, %v3856
      %v3858 = vpop.f32.mrf.mxu0
      %v3859 = vadd.f32 %v3770, %v3858
      %3860 = vmatmul.bf16.gmra.mxu0 %v3016
      %v3861 = vpop.f32.mrf.mxu0
      %v3862 = vadd.f32 %v3773, %v3861
      %v3863 = vpop.f32.mrf.mxu0
      %v3864 = vadd.f32 %v3775, %v3863
      %3865 = vdwg.mxu0
      %3866 = vmatpush.bf16.msra.mxu0 %v3486
      %3867 = vmatpush.bf16.msra.mxu0 %v3485
      %3868 = vmatpush.bf16.msra.mxu0 %v3484
      %3869 = vmatpush.bf16.msra.mxu0 %v3483
      %3870 = vmatpush.bf16.msra.mxu0 %v3482
      %3871 = vmatpush.bf16.msra.mxu0 %v3481
      %3872 = vmatpush.bf16.msra.mxu0 %v3480
      %3873 = vmatpush.bf16.msra.mxu0 %v3479
      %3874 = vmatmul.bf16.gmra.mxu0 %v2882
      %v3875 = vpop.f32.mrf.mxu0
      %v3876 = vadd.f32 %v3787, %v3875
      %v3877 = vpop.f32.mrf.mxu0
      %v3878 = vadd.f32 %v3789, %v3877
      %3879 = vmatmul.bf16.gmra.mxu0 %v2891
      %v3880 = vpop.f32.mrf.mxu0
      %v3881 = vadd.f32 %v3792, %v3880
      %v3882 = vpop.f32.mrf.mxu0
      %v3883 = vadd.f32 %v3794, %v3882
      %3884 = vmatmul.bf16.gmra.mxu0 %v2900
      %v3885 = vpop.f32.mrf.mxu0
      %v3886 = vadd.f32 %v3797, %v3885
      %v3887 = vpop.f32.mrf.mxu0
      %v3888 = vadd.f32 %v3799, %v3887
      %3889 = vmatmul.bf16.gmra.mxu0 %v2909
      %v3890 = vpop.f32.mrf.mxu0
      %v3891 = vadd.f32 %v3802, %v3890
      %v3892 = vpop.f32.mrf.mxu0
      %v3893 = vadd.f32 %v3804, %v3892
      %3894 = vmatmul.bf16.gmra.mxu0 %v2918
      %v3895 = vpop.f32.mrf.mxu0
      %v3896 = vadd.f32 %v3807, %v3895
      %v3897 = vpop.f32.mrf.mxu0
      %v3898 = vadd.f32 %v3809, %v3897
      %3899 = vmatmul.bf16.gmra.mxu0 %v2927
      %v3900 = vpop.f32.mrf.mxu0
      %v3901 = vadd.f32 %v3812, %v3900
      %v3902 = vpop.f32.mrf.mxu0
      %v3903 = vadd.f32 %v3814, %v3902
      %3904 = vmatmul.bf16.gmra.mxu0 %v2936
      %v3905 = vpop.f32.mrf.mxu0
      %v3906 = vadd.f32 %v3817, %v3905
      %v3907 = vpop.f32.mrf.mxu0
      %v3908 = vadd.f32 %v3819, %v3907
      %3909 = vmatmul.bf16.gmra.mxu0 %v2945
      %v3910 = vpop.f32.mrf.mxu0
      %v3911 = vadd.f32 %v3822, %v3910
      %v3912 = vpop.f32.mrf.mxu0
      %v3913 = vadd.f32 %v3824, %v3912
      %3914 = vmatmul.bf16.gmra.mxu0 %v2954
      %v3915 = vpop.f32.mrf.mxu0
      %v3916 = vadd.f32 %v3827, %v3915
      %v3917 = vpop.f32.mrf.mxu0
      %v3918 = vadd.f32 %v3829, %v3917
      %3919 = vmatmul.bf16.gmra.mxu0 %v2963
      %v3920 = vpop.f32.mrf.mxu0
      %v3921 = vadd.f32 %v3832, %v3920
      %v3922 = vpop.f32.mrf.mxu0
      %v3923 = vadd.f32 %v3834, %v3922
      %3924 = vmatmul.bf16.gmra.mxu0 %v2972
      %v3925 = vpop.f32.mrf.mxu0
      %v3926 = vadd.f32 %v3837, %v3925
      %v3927 = vpop.f32.mrf.mxu0
      %v3928 = vadd.f32 %v3839, %v3927
      %3929 = vmatmul.bf16.gmra.mxu0 %v2981
      %v3930 = vpop.f32.mrf.mxu0
      %v3931 = vadd.f32 %v3842, %v3930
      %v3932 = vpop.f32.mrf.mxu0
      %v3933 = vadd.f32 %v3844, %v3932
      %3934 = vmatmul.bf16.gmra.mxu0 %v2990
      %v3935 = vpop.f32.mrf.mxu0
      %v3936 = vadd.f32 %v3847, %v3935
      %v3937 = vpop.f32.mrf.mxu0
      %v3938 = vadd.f32 %v3849, %v3937
      %3939 = vmatmul.bf16.gmra.mxu0 %v2999
      %v3940 = vpop.f32.mrf.mxu0
      %v3941 = vadd.f32 %v3852, %v3940
      %v3942 = vpop.f32.mrf.mxu0
      %v3943 = vadd.f32 %v3854, %v3942
      %3944 = vmatmul.bf16.gmra.mxu0 %v3008
      %v3945 = vpop.f32.mrf.mxu0
      %v3946 = vadd.f32 %v3857, %v3945
      %v3947 = vpop.f32.mrf.mxu0
      %v3948 = vadd.f32 %v3859, %v3947
      %3949 = vmatmul.bf16.gmra.mxu0 %v3017
      %v3950 = vpop.f32.mrf.mxu0
      %v3951 = vadd.f32 %v3862, %v3950
      %v3952 = vpop.f32.mrf.mxu0
      %v3953 = vadd.f32 %v3864, %v3952
      %3954 = vdwg.mxu0
      %3955 = vmatpush.bf16.msra.mxu0 %v3494
      %3956 = vmatpush.bf16.msra.mxu0 %v3493
      %3957 = vmatpush.bf16.msra.mxu0 %v3492
      %3958 = vmatpush.bf16.msra.mxu0 %v3491
      %3959 = vmatpush.bf16.msra.mxu0 %v3490
      %3960 = vmatpush.bf16.msra.mxu0 %v3489
      %3961 = vmatpush.bf16.msra.mxu0 %v3488
      %3962 = vmatpush.bf16.msra.mxu0 %v3487
      %3963 = vmatmul.bf16.gmra.mxu0 %v2883
      %v3964 = vpop.f32.mrf.mxu0
      %v3965 = vadd.f32 %v3876, %v3964
      %v3966 = vpop.f32.mrf.mxu0
      %v3967 = vadd.f32 %v3878, %v3966
      %3968 = vmatmul.bf16.gmra.mxu0 %v2892
      %v3969 = vpop.f32.mrf.mxu0
      %v3970 = vadd.f32 %v3881, %v3969
      %v3971 = vpop.f32.mrf.mxu0
      %v3972 = vadd.f32 %v3883, %v3971
      %3973 = vmatmul.bf16.gmra.mxu0 %v2901
      %v3974 = vpop.f32.mrf.mxu0
      %v3975 = vadd.f32 %v3886, %v3974
      %v3976 = vpop.f32.mrf.mxu0
      %v3977 = vadd.f32 %v3888, %v3976
      %3978 = vmatmul.bf16.gmra.mxu0 %v2910
      %v3979 = vpop.f32.mrf.mxu0
      %v3980 = vadd.f32 %v3891, %v3979
      %v3981 = vpop.f32.mrf.mxu0
      %v3982 = vadd.f32 %v3893, %v3981
      %3983 = vmatmul.bf16.gmra.mxu0 %v2919
      %v3984 = vpop.f32.mrf.mxu0
      %v3985 = vadd.f32 %v3896, %v3984
      %v3986 = vpop.f32.mrf.mxu0
      %v3987 = vadd.f32 %v3898, %v3986
      %3988 = vmatmul.bf16.gmra.mxu0 %v2928
      %v3989 = vpop.f32.mrf.mxu0
      %v3990 = vadd.f32 %v3901, %v3989
      %v3991 = vpop.f32.mrf.mxu0
      %v3992 = vadd.f32 %v3903, %v3991
      %3993 = vmatmul.bf16.gmra.mxu0 %v2937
      %v3994 = vpop.f32.mrf.mxu0
      %v3995 = vadd.f32 %v3906, %v3994
      %v3996 = vpop.f32.mrf.mxu0
      %v3997 = vadd.f32 %v3908, %v3996
      %3998 = vmatmul.bf16.gmra.mxu0 %v2946
      %v3999 = vpop.f32.mrf.mxu0
      %v4000 = vadd.f32 %v3911, %v3999
      %v4001 = vpop.f32.mrf.mxu0
      %v4002 = vadd.f32 %v3913, %v4001
      %4003 = vmatmul.bf16.gmra.mxu0 %v2955
      %v4004 = vpop.f32.mrf.mxu0
      %v4005 = vadd.f32 %v3916, %v4004
      %v4006 = vpop.f32.mrf.mxu0
      %v4007 = vadd.f32 %v3918, %v4006
      %4008 = vmatmul.bf16.gmra.mxu0 %v2964
      %v4009 = vpop.f32.mrf.mxu0
      %v4010 = vadd.f32 %v3921, %v4009
      %v4011 = vpop.f32.mrf.mxu0
      %v4012 = vadd.f32 %v3923, %v4011
      %4013 = vmatmul.bf16.gmra.mxu0 %v2973
      %v4014 = vpop.f32.mrf.mxu0
      %v4015 = vadd.f32 %v3926, %v4014
      %v4016 = vpop.f32.mrf.mxu0
      %v4017 = vadd.f32 %v3928, %v4016
      %4018 = vmatmul.bf16.gmra.mxu0 %v2982
      %v4019 = vpop.f32.mrf.mxu0
      %v4020 = vadd.f32 %v3931, %v4019
      %v4021 = vpop.f32.mrf.mxu0
      %v4022 = vadd.f32 %v3933, %v4021
      %4023 = vmatmul.bf16.gmra.mxu0 %v2991
      %v4024 = vpop.f32.mrf.mxu0
      %v4025 = vadd.f32 %v3936, %v4024
      %v4026 = vpop.f32.mrf.mxu0
      %v4027 = vadd.f32 %v3938, %v4026
      %4028 = vmatmul.bf16.gmra.mxu0 %v3000
      %v4029 = vpop.f32.mrf.mxu0
      %v4030 = vadd.f32 %v3941, %v4029
      %v4031 = vpop.f32.mrf.mxu0
      %v4032 = vadd.f32 %v3943, %v4031
      %4033 = vmatmul.bf16.gmra.mxu0 %v3009
      %v4034 = vpop.f32.mrf.mxu0
      %v4035 = vadd.f32 %v3946, %v4034
      %v4036 = vpop.f32.mrf.mxu0
      %v4037 = vadd.f32 %v3948, %v4036
      %4038 = vmatmul.bf16.gmra.mxu0 %v3018
      %v4039 = vpop.f32.mrf.mxu0
      %v4040 = vadd.f32 %v3951, %v4039
      %v4041 = vpop.f32.mrf.mxu0
      %v4042 = vadd.f32 %v3953, %v4041
      %4043 = vdwg.mxu0
      %4044 = vmatpush.bf16.msra.mxu0 %v3502
      %4045 = vmatpush.bf16.msra.mxu0 %v3501
      %4046 = vmatpush.bf16.msra.mxu0 %v3500
      %4047 = vmatpush.bf16.msra.mxu0 %v3499
      %4048 = vmatpush.bf16.msra.mxu0 %v3498
      %4049 = vmatpush.bf16.msra.mxu0 %v3497
      %4050 = vmatpush.bf16.msra.mxu0 %v3496
      %4051 = vmatpush.bf16.msra.mxu0 %v3495
      %4052 = vmatmul.bf16.gmra.mxu0 %v2884
      %v4053 = vpop.f32.mrf.mxu0
      %v4054 = vadd.f32 %v3965, %v4053
      %v4055 = vpop.f32.mrf.mxu0
      %v4056 = vadd.f32 %v3967, %v4055
      %4057 = vmatmul.bf16.gmra.mxu0 %v2893
      %v4058 = vpop.f32.mrf.mxu0
      %v4059 = vadd.f32 %v3970, %v4058
      %v4060 = vpop.f32.mrf.mxu0
      %v4061 = vadd.f32 %v3972, %v4060
      %4062 = vmatmul.bf16.gmra.mxu0 %v2902
      %v4063 = vpop.f32.mrf.mxu0
      %v4064 = vadd.f32 %v3975, %v4063
      %v4065 = vpop.f32.mrf.mxu0
      %v4066 = vadd.f32 %v3977, %v4065
      %4067 = vmatmul.bf16.gmra.mxu0 %v2911
      %v4068 = vpop.f32.mrf.mxu0
      %v4069 = vadd.f32 %v3980, %v4068
      %v4070 = vpop.f32.mrf.mxu0
      %v4071 = vadd.f32 %v3982, %v4070
      %4072 = vmatmul.bf16.gmra.mxu0 %v2920
      %v4073 = vpop.f32.mrf.mxu0
      %v4074 = vadd.f32 %v3985, %v4073
      %v4075 = vpop.f32.mrf.mxu0
      %v4076 = vadd.f32 %v3987, %v4075
      %4077 = vmatmul.bf16.gmra.mxu0 %v2929
      %v4078 = vpop.f32.mrf.mxu0
      %v4079 = vadd.f32 %v3990, %v4078
      %v4080 = vpop.f32.mrf.mxu0
      %v4081 = vadd.f32 %v3992, %v4080
      %4082 = vmatmul.bf16.gmra.mxu0 %v2938
      %v4083 = vpop.f32.mrf.mxu0
      %v4084 = vadd.f32 %v3995, %v4083
      %v4085 = vpop.f32.mrf.mxu0
      %v4086 = vadd.f32 %v3997, %v4085
      %4087 = vmatmul.bf16.gmra.mxu0 %v2947
      %v4088 = vpop.f32.mrf.mxu0
      %v4089 = vadd.f32 %v4000, %v4088
      %v4090 = vpop.f32.mrf.mxu0
      %v4091 = vadd.f32 %v4002, %v4090
      %4092 = vmatmul.bf16.gmra.mxu0 %v2956
      %v4093 = vpop.f32.mrf.mxu0
      %v4094 = vadd.f32 %v4005, %v4093
      %v4095 = vpop.f32.mrf.mxu0
      %v4096 = vadd.f32 %v4007, %v4095
      %4097 = vmatmul.bf16.gmra.mxu0 %v2965
      %v4098 = vpop.f32.mrf.mxu0
      %v4099 = vadd.f32 %v4010, %v4098
      %v4100 = vpop.f32.mrf.mxu0
      %v4101 = vadd.f32 %v4012, %v4100
      %4102 = vmatmul.bf16.gmra.mxu0 %v2974
      %v4103 = vpop.f32.mrf.mxu0
      %v4104 = vadd.f32 %v4015, %v4103
      %v4105 = vpop.f32.mrf.mxu0
      %v4106 = vadd.f32 %v4017, %v4105
      %4107 = vmatmul.bf16.gmra.mxu0 %v2983
      %v4108 = vpop.f32.mrf.mxu0
      %v4109 = vadd.f32 %v4020, %v4108
      %v4110 = vpop.f32.mrf.mxu0
      %v4111 = vadd.f32 %v4022, %v4110
      %4112 = vmatmul.bf16.gmra.mxu0 %v2992
      %v4113 = vpop.f32.mrf.mxu0
      %v4114 = vadd.f32 %v4025, %v4113
      %v4115 = vpop.f32.mrf.mxu0
      %v4116 = vadd.f32 %v4027, %v4115
      %4117 = vmatmul.bf16.gmra.mxu0 %v3001
      %v4118 = vpop.f32.mrf.mxu0
      %v4119 = vadd.f32 %v4030, %v4118
      %v4120 = vpop.f32.mrf.mxu0
      %v4121 = vadd.f32 %v4032, %v4120
      %4122 = vmatmul.bf16.gmra.mxu0 %v3010
      %v4123 = vpop.f32.mrf.mxu0
      %v4124 = vadd.f32 %v4035, %v4123
      %v4125 = vpop.f32.mrf.mxu0
      %v4126 = vadd.f32 %v4037, %v4125
      %4127 = vmatmul.bf16.gmra.mxu0 %v3019
      %v4128 = vpop.f32.mrf.mxu0
      %v4129 = vadd.f32 %v4040, %v4128
      %v4130 = vpop.f32.mrf.mxu0
      %v4131 = vadd.f32 %v4042, %v4130
      %4132 = vdwg.mxu0
      %4133 = vmatpush.bf16.msra.mxu0 %v3510
      %4134 = vmatpush.bf16.msra.mxu0 %v3509
      %4135 = vmatpush.bf16.msra.mxu0 %v3508
      %4136 = vmatpush.bf16.msra.mxu0 %v3507
      %4137 = vmatpush.bf16.msra.mxu0 %v3506
      %4138 = vmatpush.bf16.msra.mxu0 %v3505
      %4139 = vmatpush.bf16.msra.mxu0 %v3504
      %4140 = vmatpush.bf16.msra.mxu0 %v3503
      %4141 = vmatmul.bf16.gmra.mxu0 %v2885
      %v4142 = vpop.f32.mrf.mxu0
      %v4143 = vadd.f32 %v4054, %v4142
      %v4144 = vpop.f32.mrf.mxu0
      %v4145 = vadd.f32 %v4056, %v4144
      %4146 = vmatmul.bf16.gmra.mxu0 %v2894
      %v4147 = vpop.f32.mrf.mxu0
      %v4148 = vadd.f32 %v4059, %v4147
      %v4149 = vpop.f32.mrf.mxu0
      %v4150 = vadd.f32 %v4061, %v4149
      %4151 = vmatmul.bf16.gmra.mxu0 %v2903
      %v4152 = vpop.f32.mrf.mxu0
      %v4153 = vadd.f32 %v4064, %v4152
      %v4154 = vpop.f32.mrf.mxu0
      %v4155 = vadd.f32 %v4066, %v4154
      %4156 = vmatmul.bf16.gmra.mxu0 %v2912
      %v4157 = vpop.f32.mrf.mxu0
      %v4158 = vadd.f32 %v4069, %v4157
      %v4159 = vpop.f32.mrf.mxu0
      %v4160 = vadd.f32 %v4071, %v4159
      %4161 = vmatmul.bf16.gmra.mxu0 %v2921
      %v4162 = vpop.f32.mrf.mxu0
      %v4163 = vadd.f32 %v4074, %v4162
      %v4164 = vpop.f32.mrf.mxu0
      %v4165 = vadd.f32 %v4076, %v4164
      %4166 = vmatmul.bf16.gmra.mxu0 %v2930
      %v4167 = vpop.f32.mrf.mxu0
      %v4168 = vadd.f32 %v4079, %v4167
      %v4169 = vpop.f32.mrf.mxu0
      %v4170 = vadd.f32 %v4081, %v4169
      %4171 = vmatmul.bf16.gmra.mxu0 %v2939
      %v4172 = vpop.f32.mrf.mxu0
      %v4173 = vadd.f32 %v4084, %v4172
      %v4174 = vpop.f32.mrf.mxu0
      %v4175 = vadd.f32 %v4086, %v4174
      %4176 = vmatmul.bf16.gmra.mxu0 %v2948
      %v4177 = vpop.f32.mrf.mxu0
      %v4178 = vadd.f32 %v4089, %v4177
      %v4179 = vpop.f32.mrf.mxu0
      %v4180 = vadd.f32 %v4091, %v4179
      %4181 = vmatmul.bf16.gmra.mxu0 %v2957
      %v4182 = vpop.f32.mrf.mxu0
      %v4183 = vadd.f32 %v4094, %v4182
      %v4184 = vpop.f32.mrf.mxu0
      %v4185 = vadd.f32 %v4096, %v4184
      %4186 = vmatmul.bf16.gmra.mxu0 %v2966
      %v4187 = vpop.f32.mrf.mxu0
      %v4188 = vadd.f32 %v4099, %v4187
      %v4189 = vpop.f32.mrf.mxu0
      %v4190 = vadd.f32 %v4101, %v4189
      %4191 = vmatmul.bf16.gmra.mxu0 %v2975
      %v4192 = vpop.f32.mrf.mxu0
      %v4193 = vadd.f32 %v4104, %v4192
      %v4194 = vpop.f32.mrf.mxu0
      %v4195 = vadd.f32 %v4106, %v4194
      %4196 = vmatmul.bf16.gmra.mxu0 %v2984
      %v4197 = vpop.f32.mrf.mxu0
      %v4198 = vadd.f32 %v4109, %v4197
      %v4199 = vpop.f32.mrf.mxu0
      %v4200 = vadd.f32 %v4111, %v4199
      %4201 = vmatmul.bf16.gmra.mxu0 %v2993
      %v4202 = vpop.f32.mrf.mxu0
      %v4203 = vadd.f32 %v4114, %v4202
      %v4204 = vpop.f32.mrf.mxu0
      %v4205 = vadd.f32 %v4116, %v4204
      %4206 = vmatmul.bf16.gmra.mxu0 %v3002
      %v4207 = vpop.f32.mrf.mxu0
      %v4208 = vadd.f32 %v4119, %v4207
      %v4209 = vpop.f32.mrf.mxu0
      %v4210 = vadd.f32 %v4121, %v4209
      %4211 = vmatmul.bf16.gmra.mxu0 %v3011
      %v4212 = vpop.f32.mrf.mxu0
      %v4213 = vadd.f32 %v4124, %v4212
      %v4214 = vpop.f32.mrf.mxu0
      %v4215 = vadd.f32 %v4126, %v4214
      %4216 = vmatmul.bf16.gmra.mxu0 %v3020
      %v4217 = vpop.f32.mrf.mxu0
      %v4218 = vadd.f32 %v4129, %v4217
      %v4219 = vpop.f32.mrf.mxu0
      %v4220 = vadd.f32 %v4131, %v4219
      %4221 = vdwg.mxu0
      %4222 = vmatpush.bf16.msra.mxu0 %v3518
      %4223 = vmatpush.bf16.msra.mxu0 %v3517
      %4224 = vmatpush.bf16.msra.mxu0 %v3516
      %4225 = vmatpush.bf16.msra.mxu0 %v3515
      %4226 = vmatpush.bf16.msra.mxu0 %v3514
      %4227 = vmatpush.bf16.msra.mxu0 %v3513
      %4228 = vmatpush.bf16.msra.mxu0 %v3512
      %4229 = vmatpush.bf16.msra.mxu0 %v3511
      %4230 = vmatmul.bf16.gmra.mxu0 %v2886
      %v4231 = vpop.f32.mrf.mxu0
      %v4232 = vadd.f32 %v4143, %v4231
      %v4233 = vpop.f32.mrf.mxu0
      %v4234 = vadd.f32 %v4145, %v4233
      %4235 = vmatmul.bf16.gmra.mxu0 %v2895
      %v4236 = vpop.f32.mrf.mxu0
      %v4237 = vadd.f32 %v4148, %v4236
      %v4238 = vpop.f32.mrf.mxu0
      %v4239 = vadd.f32 %v4150, %v4238
      %4240 = vmatmul.bf16.gmra.mxu0 %v2904
      %v4241 = vpop.f32.mrf.mxu0
      %v4242 = vadd.f32 %v4153, %v4241
      %v4243 = vpop.f32.mrf.mxu0
      %v4244 = vadd.f32 %v4155, %v4243
      %4245 = vmatmul.bf16.gmra.mxu0 %v2913
      %v4246 = vpop.f32.mrf.mxu0
      %v4247 = vadd.f32 %v4158, %v4246
      %v4248 = vpop.f32.mrf.mxu0
      %v4249 = vadd.f32 %v4160, %v4248
      %4250 = vmatmul.bf16.gmra.mxu0 %v2922
      %v4251 = vpop.f32.mrf.mxu0
      %v4252 = vadd.f32 %v4163, %v4251
      %v4253 = vpop.f32.mrf.mxu0
      %v4254 = vadd.f32 %v4165, %v4253
      %4255 = vmatmul.bf16.gmra.mxu0 %v2931
      %v4256 = vpop.f32.mrf.mxu0
      %v4257 = vadd.f32 %v4168, %v4256
      %v4258 = vpop.f32.mrf.mxu0
      %v4259 = vadd.f32 %v4170, %v4258
      %4260 = vmatmul.bf16.gmra.mxu0 %v2940
      %v4261 = vpop.f32.mrf.mxu0
      %v4262 = vadd.f32 %v4173, %v4261
      %v4263 = vpop.f32.mrf.mxu0
      %v4264 = vadd.f32 %v4175, %v4263
      %4265 = vmatmul.bf16.gmra.mxu0 %v2949
      %v4266 = vpop.f32.mrf.mxu0
      %v4267 = vadd.f32 %v4178, %v4266
      %v4268 = vpop.f32.mrf.mxu0
      %v4269 = vadd.f32 %v4180, %v4268
      %4270 = vmatmul.bf16.gmra.mxu0 %v2958
      %v4271 = vpop.f32.mrf.mxu0
      %v4272 = vadd.f32 %v4183, %v4271
      %v4273 = vpop.f32.mrf.mxu0
      %v4274 = vadd.f32 %v4185, %v4273
      %4275 = vmatmul.bf16.gmra.mxu0 %v2967
      %v4276 = vpop.f32.mrf.mxu0
      %v4277 = vadd.f32 %v4188, %v4276
      %v4278 = vpop.f32.mrf.mxu0
      %v4279 = vadd.f32 %v4190, %v4278
      %4280 = vmatmul.bf16.gmra.mxu0 %v2976
      %v4281 = vpop.f32.mrf.mxu0
      %v4282 = vadd.f32 %v4193, %v4281
      %v4283 = vpop.f32.mrf.mxu0
      %v4284 = vadd.f32 %v4195, %v4283
      %4285 = vmatmul.bf16.gmra.mxu0 %v2985
      %v4286 = vpop.f32.mrf.mxu0
      %v4287 = vadd.f32 %v4198, %v4286
      %v4288 = vpop.f32.mrf.mxu0
      %v4289 = vadd.f32 %v4200, %v4288
      %4290 = vmatmul.bf16.gmra.mxu0 %v2994
      %v4291 = vpop.f32.mrf.mxu0
      %v4292 = vadd.f32 %v4203, %v4291
      %v4293 = vpop.f32.mrf.mxu0
      %v4294 = vadd.f32 %v4205, %v4293
      %4295 = vmatmul.bf16.gmra.mxu0 %v3003
      %v4296 = vpop.f32.mrf.mxu0
      %v4297 = vadd.f32 %v4208, %v4296
      %v4298 = vpop.f32.mrf.mxu0
      %v4299 = vadd.f32 %v4210, %v4298
      %4300 = vmatmul.bf16.gmra.mxu0 %v3012
      %v4301 = vpop.f32.mrf.mxu0
      %v4302 = vadd.f32 %v4213, %v4301
      %v4303 = vpop.f32.mrf.mxu0
      %v4304 = vadd.f32 %v4215, %v4303
      %4305 = vmatmul.bf16.gmra.mxu0 %v3021
      %v4306 = vpop.f32.mrf.mxu0
      %v4307 = vadd.f32 %v4218, %v4306
      %v4308 = vpop.f32.mrf.mxu0
      %v4309 = vadd.f32 %v4220, %v4308
      %4310 = vdwg.mxu0
      %4311 = vmatpush.bf16.msra.mxu0 %v3526
      %4312 = vmatpush.bf16.msra.mxu0 %v3525
      %4313 = vmatpush.bf16.msra.mxu0 %v3524
      %4314 = vmatpush.bf16.msra.mxu0 %v3523
      %4315 = vmatpush.bf16.msra.mxu0 %v3522
      %4316 = vmatpush.bf16.msra.mxu0 %v3521
      %4317 = vmatpush.bf16.msra.mxu0 %v3520
      %4318 = vmatpush.bf16.msra.mxu0 %v3519
      %4319 = vmatmul.bf16.gmra.mxu0 %v2887
      %v4320 = vpop.f32.mrf.mxu0
      %v4321 = vadd.f32 %v4232, %v4320
      %v4322 = vpop.f32.mrf.mxu0
      %v4323 = vadd.f32 %v4234, %v4322
      %4324 = vmatmul.bf16.gmra.mxu0 %v2896
      %v4325 = vpop.f32.mrf.mxu0
      %v4326 = vadd.f32 %v4237, %v4325
      %v4327 = vpop.f32.mrf.mxu0
      %v4328 = vadd.f32 %v4239, %v4327
      %4329 = vmatmul.bf16.gmra.mxu0 %v2905
      %v4330 = vpop.f32.mrf.mxu0
      %v4331 = vadd.f32 %v4242, %v4330
      %v4332 = vpop.f32.mrf.mxu0
      %v4333 = vadd.f32 %v4244, %v4332
      %4334 = vmatmul.bf16.gmra.mxu0 %v2914
      %v4335 = vpop.f32.mrf.mxu0
      %v4336 = vadd.f32 %v4247, %v4335
      %v4337 = vpop.f32.mrf.mxu0
      %v4338 = vadd.f32 %v4249, %v4337
      %4339 = vmatmul.bf16.gmra.mxu0 %v2923
      %v4340 = vpop.f32.mrf.mxu0
      %v4341 = vadd.f32 %v4252, %v4340
      %v4342 = vpop.f32.mrf.mxu0
      %v4343 = vadd.f32 %v4254, %v4342
      %4344 = vmatmul.bf16.gmra.mxu0 %v2932
      %v4345 = vpop.f32.mrf.mxu0
      %v4346 = vadd.f32 %v4257, %v4345
      %v4347 = vpop.f32.mrf.mxu0
      %v4348 = vadd.f32 %v4259, %v4347
      %4349 = vmatmul.bf16.gmra.mxu0 %v2941
      %v4350 = vpop.f32.mrf.mxu0
      %v4351 = vadd.f32 %v4262, %v4350
      %v4352 = vpop.f32.mrf.mxu0
      %v4353 = vadd.f32 %v4264, %v4352
      %4354 = vmatmul.bf16.gmra.mxu0 %v2950
      %v4355 = vpop.f32.mrf.mxu0
      %v4356 = vadd.f32 %v4267, %v4355
      %v4357 = vpop.f32.mrf.mxu0
      %v4358 = vadd.f32 %v4269, %v4357
      %4359 = vmatmul.bf16.gmra.mxu0 %v2959
      %v4360 = vpop.f32.mrf.mxu0
      %v4361 = vadd.f32 %v4272, %v4360
      %v4362 = vpop.f32.mrf.mxu0
      %v4363 = vadd.f32 %v4274, %v4362
      %4364 = vmatmul.bf16.gmra.mxu0 %v2968
      %v4365 = vpop.f32.mrf.mxu0
      %v4366 = vadd.f32 %v4277, %v4365
      %v4367 = vpop.f32.mrf.mxu0
      %v4368 = vadd.f32 %v4279, %v4367
      %4369 = vmatmul.bf16.gmra.mxu0 %v2977
      %v4370 = vpop.f32.mrf.mxu0
      %v4371 = vadd.f32 %v4282, %v4370
      %v4372 = vpop.f32.mrf.mxu0
      %v4373 = vadd.f32 %v4284, %v4372
      %4374 = vmatmul.bf16.gmra.mxu0 %v2986
      %v4375 = vpop.f32.mrf.mxu0
      %v4376 = vadd.f32 %v4287, %v4375
      %v4377 = vpop.f32.mrf.mxu0
      %v4378 = vadd.f32 %v4289, %v4377
      %4379 = vmatmul.bf16.gmra.mxu0 %v2995
      %v4380 = vpop.f32.mrf.mxu0
      %v4381 = vadd.f32 %v4292, %v4380
      %v4382 = vpop.f32.mrf.mxu0
      %v4383 = vadd.f32 %v4294, %v4382
      %4384 = vmatmul.bf16.gmra.mxu0 %v3004
      %v4385 = vpop.f32.mrf.mxu0
      %v4386 = vadd.f32 %v4297, %v4385
      %v4387 = vpop.f32.mrf.mxu0
      %v4388 = vadd.f32 %v4299, %v4387
      %4389 = vmatmul.bf16.gmra.mxu0 %v3013
      %v4390 = vpop.f32.mrf.mxu0
      %v4391 = vadd.f32 %v4302, %v4390
      %v4392 = vpop.f32.mrf.mxu0
      %v4393 = vadd.f32 %v4304, %v4392
      %4394 = vmatmul.bf16.gmra.mxu0 %v3022
      %v4395 = vpop.f32.mrf.mxu0
      %v4396 = vadd.f32 %v4307, %v4395
      %v4397 = vpop.f32.mrf.mxu0
      %v4398 = vadd.f32 %v4309, %v4397
      %4399 = vdwg.mxu0
      %v4400 = vld [vmem:[%s283] sm:$0x1]
      %v4402 = vperm.slane %v4400, 0
      %v4404 = vmul.f32 %v4321, %v4402
      %v4405 = vmul.f32 %v4323, %v4402
      %v4406 = vmul.f32 %v4326, %v4402
      %v4407 = vmul.f32 %v4328, %v4402
      %v4408 = vmul.f32 %v4331, %v4402
      %v4409 = vmul.f32 %v4333, %v4402
      %v4410 = vmul.f32 %v4336, %v4402
      %v4411 = vmul.f32 %v4338, %v4402
      %v4412 = vmul.f32 %v4341, %v4402
      %v4413 = vmul.f32 %v4343, %v4402
      %v4414 = vmul.f32 %v4346, %v4402
      %v4415 = vmul.f32 %v4348, %v4402
      %v4416 = vmul.f32 %v4351, %v4402
      %v4417 = vmul.f32 %v4353, %v4402
      %v4418 = vmul.f32 %v4356, %v4402
      %v4419 = vmul.f32 %v4358, %v4402
      %v4420 = vmul.f32 %v4361, %v4402
      %v4421 = vmul.f32 %v4363, %v4402
      %v4422 = vmul.f32 %v4366, %v4402
      %v4423 = vmul.f32 %v4368, %v4402
      %v4424 = vmul.f32 %v4371, %v4402
      %v4425 = vmul.f32 %v4373, %v4402
      %v4426 = vmul.f32 %v4376, %v4402
      %v4427 = vmul.f32 %v4378, %v4402
      %v4428 = vmul.f32 %v4381, %v4402
      %v4429 = vmul.f32 %v4383, %v4402
      %v4430 = vmul.f32 %v4386, %v4402
      %v4431 = vmul.f32 %v4388, %v4402
      %v4432 = vmul.f32 %v4391, %v4402
      %v4433 = vmul.f32 %v4393, %v4402
      %v4434 = vmul.f32 %v4396, %v4402
      %v4435 = vmul.f32 %v4398, %v4402
      %v4436 = vld [vmem:[%s286] sm:$0x1]
      %v4438 = vperm.slane %v4436, 0
      %v4440 = vadd.f32 %v4404, %v4438
      %v4441 = vadd.f32 %v4405, %v4438
      %v4442 = vadd.f32 %v4406, %v4438
      %v4443 = vadd.f32 %v4407, %v4438
      %v4444 = vadd.f32 %v4408, %v4438
      %v4445 = vadd.f32 %v4409, %v4438
      %v4446 = vadd.f32 %v4410, %v4438
      %v4447 = vadd.f32 %v4411, %v4438
      %v4448 = vadd.f32 %v4412, %v4438
      %v4449 = vadd.f32 %v4413, %v4438
      %v4450 = vadd.f32 %v4414, %v4438
      %v4451 = vadd.f32 %v4415, %v4438
      %v4452 = vadd.f32 %v4416, %v4438
      %v4453 = vadd.f32 %v4417, %v4438
      %v4454 = vadd.f32 %v4418, %v4438
      %v4455 = vadd.f32 %v4419, %v4438
      %v4456 = vadd.f32 %v4420, %v4438
      %v4457 = vadd.f32 %v4421, %v4438
      %v4458 = vadd.f32 %v4422, %v4438
      %v4459 = vadd.f32 %v4423, %v4438
      %v4460 = vadd.f32 %v4424, %v4438
      %v4461 = vadd.f32 %v4425, %v4438
      %v4462 = vadd.f32 %v4426, %v4438
      %v4463 = vadd.f32 %v4427, %v4438
      %v4464 = vadd.f32 %v4428, %v4438
      %v4465 = vadd.f32 %v4429, %v4438
      %v4466 = vadd.f32 %v4430, %v4438
      %v4467 = vadd.f32 %v4431, %v4438
      %v4468 = vadd.f32 %v4432, %v4438
      %v4469 = vadd.f32 %v4433, %v4438
      %v4470 = vadd.f32 %v4434, %v4438
      %v4471 = vadd.f32 %v4435, %v4438
      %v4472 = vmax.f32 %v4440, 0.0
      %v4473 = vmax.f32 %v4441, 0.0
      %v4474 = vmax.f32 %v4442, 0.0
      %v4475 = vmax.f32 %v4443, 0.0
      %v4476 = vmax.f32 %v4444, 0.0
      %v4477 = vmax.f32 %v4445, 0.0
      %v4478 = vmax.f32 %v4446, 0.0
      %v4479 = vmax.f32 %v4447, 0.0
      %v4480 = vmax.f32 %v4448, 0.0
      %v4481 = vmax.f32 %v4449, 0.0
      %v4482 = vmax.f32 %v4450, 0.0
      %v4483 = vmax.f32 %v4451, 0.0
      %v4484 = vmax.f32 %v4452, 0.0
      %v4485 = vmax.f32 %v4453, 0.0
      %v4486 = vmax.f32 %v4454, 0.0
      %v4487 = vmax.f32 %v4455, 0.0
      %v4488 = vmax.f32 %v4456, 0.0
      %v4489 = vmax.f32 %v4457, 0.0
      %v4490 = vmax.f32 %v4458, 0.0
      %v4491 = vmax.f32 %v4459, 0.0
      %v4492 = vmax.f32 %v4460, 0.0
      %v4493 = vmax.f32 %v4461, 0.0
      %v4494 = vmax.f32 %v4462, 0.0
      %v4495 = vmax.f32 %v4463, 0.0
      %v4496 = vmax.f32 %v4464, 0.0
      %v4497 = vmax.f32 %v4465, 0.0
      %v4498 = vmax.f32 %v4466, 0.0
      %v4499 = vmax.f32 %v4467, 0.0
      %v4500 = vmax.f32 %v4468, 0.0
      %v4501 = vmax.f32 %v4469, 0.0
      %v4502 = vmax.f32 %v4470, 0.0
      %v4503 = vmax.f32 %v4471, 0.0
      %4504 = vst [vmem:[%s294] sm:$0xff] %v4472
      %4505 = vst [vmem:[%s294 + $0x8] sm:$0xff] %v4473
      %4506 = vst [vmem:[%s294 + $0x10] sm:$0xff] %v4474
      %4507 = vst [vmem:[%s294 + $0x18] sm:$0xff] %v4475
      %4508 = vst [vmem:[%s294 + $0x20] sm:$0xff] %v4476
      %4509 = vst [vmem:[%s294 + $0x28] sm:$0xff] %v4477
      %4510 = vst [vmem:[%s294 + $0x30] sm:$0xff] %v4478
      %4511 = vst [vmem:[%s294 + $0x38] sm:$0xff] %v4479
      %4512 = vst [vmem:[%s294 + $0x40] sm:$0xff] %v4480
      %4513 = vst [vmem:[%s294 + $0x48] sm:$0xff] %v4481
      %4514 = vst [vmem:[%s294 + $0x50] sm:$0xff] %v4482
      %4515 = vst [vmem:[%s294 + $0x58] sm:$0xff] %v4483
      %4516 = vst [vmem:[%s294 + $0x60] sm:$0xff] %v4484
      %4517 = vst [vmem:[%s294 + $0x68] sm:$0xff] %v4485
      %4518 = vst [vmem:[%s294 + $0x70] sm:$0xff] %v4486
      %4519 = vst [vmem:[%s294 + $0x78] sm:$0xff] %v4487
      %4520 = vst [vmem:[%s294 + $0x80] sm:$0xff] %v4488
      %4521 = vst [vmem:[%s294 + $0x88] sm:$0xff] %v4489
      %4522 = vst [vmem:[%s294 + $0x90] sm:$0xff] %v4490
      %4523 = vst [vmem:[%s294 + $0x98] sm:$0xff] %v4491
      %4524 = vst [vmem:[%s294 + $0xa0] sm:$0xff] %v4492
      %4525 = vst [vmem:[%s294 + $0xa8] sm:$0xff] %v4493
      %4526 = vst [vmem:[%s294 + $0xb0] sm:$0xff] %v4494
      %4527 = vst [vmem:[%s294 + $0xb8] sm:$0xff] %v4495
      %4528 = vst [vmem:[%s294 + $0xc0] sm:$0xff] %v4496
      %4529 = vst [vmem:[%s294 + $0xc8] sm:$0xff] %v4497
      %4530 = vst [vmem:[%s294 + $0xd0] sm:$0xff] %v4498
      %4531 = vst [vmem:[%s294 + $0xd8] sm:$0xff] %v4499
      %4532 = vst [vmem:[%s294 + $0xe0] sm:$0xff] %v4500
      %4533 = vst [vmem:[%s294 + $0xe8] sm:$0xff] %v4501
      %4534 = vst [vmem:[%s294 + $0xf0] sm:$0xff] %v4502
      %4535 = vst [vmem:[%s294 + $0xf8] sm:$0xff] %v4503
      %p4536 = scmp.lt.s32.totalorder %s20, 1
      %s4537 = scalar_select %p4536, %s20, 1
      %p4538 = scmp.lt.s32.totalorder %s21, 0
      %s4539 = scalar_select %p4538, %s21, 0
      %s4540 = smul.addr %s4537, 32
      %s4541 = sadd.s32 %s4539, %s4540
      %s4542 = smul.addr %s4541, 8
      %s4543 = scalar_lea.vmem %s4, %s4542
      // Predicated region
      $region37: #{aspp_module_forward.1} parent=35 // pred_check
        %p4544 = pneg %p162
      $region38: #{aspp_module_forward.1} parent=35 // pred_check_branch
        %4546 = sbr.rel (%p4544) target = $region40
      $region39: #{aspp_module_forward.1} parent=35 // pred_region
        _
      $region40: #{aspp_module_forward.1} parent=35 // pred_fallthru
        _
    $region36: #{aspp_module_forward.1} parent=5 // pred_fallthru
      _
    %p4547 = scmp.le.s32.totalorder 2, %s10
    // Predicated region
    $region41: #{aspp_module_forward.1} parent=5 // pred_check
      %p4548 = pneg %p4547
    $region42: #{aspp_module_forward.1} parent=5 // pred_check_branch
      %4550 = sbr.rel (%p4548) target = $region44
    $region43: #{aspp_module_forward.1} parent=5 // pred_region
      %s4551 = ssub.s32 %s10, 2
      // Predicated region
      $region45: #{aspp_module_forward.1} parent=43 // pred_check
        %p4552 = pneg %p168
      $region46: #{aspp_module_forward.1} parent=43 // pred_check_branch
        %4554 = sbr.rel (%p4552) target = $region48
      $region47: #{aspp_module_forward.1} parent=43 // pred_region
        %p4555 = scmp.lt.s32.totalorder %s23, 1
        %s4556 = scalar_select %p4555, %s23, 1
        %p4557 = scmp.lt.s32.totalorder %s24, 0
        %s4558 = scalar_select %p4557, %s24, 0
        %s4559 = smul.addr %s4556, 32
        %s4560 = sadd.s32 %s4558, %s4559
        %s4561 = smul.addr %s4560, 8
        %s4562 = scalar_lea.vmem %s4, %s4561
      $region48: #{aspp_module_forward.1} parent=43 // pred_fallthru
        _
    $region44: #{aspp_module_forward.1} parent=5 // pred_fallthru
      _
  $region6: #{aspp_module_forward.1} parent=0 // loop_footer
    %s14 = sadd.s32 1, %s10
  $region7: #{aspp_module_forward.1} parent=0 // loop_footer_branch
    %9 = sbr.rel target = $region3
  $region8: #{aspp_module_forward.1} parent=0 // loop_exit
    _

</llo_original>
